<compile_context>
chip_gen: v7x
topology: tpu7x:2x2x1
jax: 0.10.0
libtpu: 0.0.40
codegen_flags: <defaults>
</compile_context>

<pallas_src>
import functools

import jax
import jax.numpy as jnp
from jax.experimental import pallas as pl
from jax.experimental.pallas import tpu as pltpu


def _row_tile(m, target):
    """Row-tile size: the full dim if small, else `target` (multiple of 8)."""
    return m if m <= target else target


# ---------------------------------------------------------------------------
# Pallas kernels
# ---------------------------------------------------------------------------
def _conv_pool_kernel(a_ref, b_ref, c_ref, d_ref, w_ref, bias_ref, o_ref):
    """Fused conv(matmul) + bias + ReLU + 2x2/stride-2 max pool.

    a..d are the im2col column tiles of the four 2x2 pool positions.
    pool(relu(conv + b)) == relu(max_i(cols_i @ W) + b) because ReLU is
    monotone and the bias is shared across the four positions.
    """
    w = w_ref[...]
    ya = jnp.dot(a_ref[...], w, preferred_element_type=jnp.float32)
    yb = jnp.dot(b_ref[...], w, preferred_element_type=jnp.float32)
    yc = jnp.dot(c_ref[...], w, preferred_element_type=jnp.float32)
    yd = jnp.dot(d_ref[...], w, preferred_element_type=jnp.float32)
    y = jnp.maximum(jnp.maximum(ya, yb), jnp.maximum(yc, yd)) + bias_ref[...]
    o_ref[...] = jnp.maximum(y, 0.0)


def _fc_fused_kernel(x_ref, w1_ref, b1_ref, w2_ref, b2_ref, w3_ref, b3_ref, o_ref):
    h = jnp.dot(x_ref[...], w1_ref[...], preferred_element_type=jnp.float32) + b1_ref[...]
    h = jnp.maximum(h, 0.0)
    h = jnp.dot(h, w2_ref[...], preferred_element_type=jnp.float32) + b2_ref[...]
    h = jnp.maximum(h, 0.0)
    o_ref[...] = jnp.dot(h, w3_ref[...], preferred_element_type=jnp.float32) + b3_ref[...]


# ---------------------------------------------------------------------------
# Pallas wrappers
# ---------------------------------------------------------------------------
def pallas_conv_relu_pool(x, wmat, bias, *, k, tm=512):
    """x: (N, H, W, C) NHWC -> conv(k, valid, stride 1) + bias + ReLU + 2x2 pool.

    Returns (N, OHP, OWP, Cout) with OHP=(H-k+1)//2, OWP=(W-k+1)//2.
    wmat: (k*k*C, Cout) rows ordered (kh, kw, cin); bias: (1, Cout).
    """
    # TODO(synk): move patch extraction into the kernel (per-tap accumulation
    # over a full-image block) to avoid the k*k activation expansion in HBM.
    n, h, w_, c = x.shape
    oh, ow = h - k + 1, w_ - k + 1
    ohp, owp = oh // 2, ow // 2
    kk_c = k * k * c
    cout = wmat.shape[1]

    # Four im2col matrices, one per 2x2 pool position; rows ordered (n, ohp, owp),
    # columns ordered (kh, kw, cin) to match wmat.
    views = []
    for pi in range(2):
        for pj in range(2):
            taps = [x[:, pi + kh: pi + kh + 2 * ohp: 2,
                       pj + kw: pj + kw + 2 * owp: 2, :]
                    for kh in range(k) for kw in range(k)]
            views.append(jnp.concatenate(taps, axis=-1).reshape(n * ohp * owp, kk_c))

    M = n * ohp * owp
    tm = _row_tile(M, tm)
    row_spec = pl.BlockSpec((tm, kk_c), lambda i: (i, 0))
    full = lambda i: (0, 0)
    out = pl.pallas_call(
        _conv_pool_kernel,
        out_shape=jax.ShapeDtypeStruct((M, cout), jnp.float32),
        grid=(pl.cdiv(M, tm),),
        in_specs=[row_spec, row_spec, row_spec, row_spec,
                  pl.BlockSpec((kk_c, cout), full),   # weight resident across grid
                  pl.BlockSpec((1, cout), full)],
        out_specs=pl.BlockSpec((tm, cout), lambda i: (i, 0)),
        compiler_params=pltpu.CompilerParams(dimension_semantics=("parallel",)),
    )(*views, wmat, bias)
    return out.reshape(n, ohp, owp, cout)


def pallas_fc_fused(x, w1, b1, w2, b2, w3, b3, *, tm=256):
    """Fused fc1(ReLU) -> fc2(ReLU) -> fc3; all weights resident in VMEM."""
    M, K1 = x.shape
    H1, H2, NO = w1.shape[1], w2.shape[1], w3.shape[1]
    tm = _row_tile(M, tm)
    full = lambda i: (0, 0)
    return pl.pallas_call(
        _fc_fused_kernel,
        out_shape=jax.ShapeDtypeStruct((M, NO), jnp.float32),
        grid=(pl.cdiv(M, tm),),
        in_specs=[
            pl.BlockSpec((tm, K1), lambda i: (i, 0)),
            pl.BlockSpec((K1, H1), full),
            pl.BlockSpec((1, H1), full),
            pl.BlockSpec((H1, H2), full),
            pl.BlockSpec((1, H2), full),
            pl.BlockSpec((H2, NO), full),
            pl.BlockSpec((1, NO), full),
        ],
        out_specs=pl.BlockSpec((tm, NO), lambda i: (i, 0)),
        compiler_params=pltpu.CompilerParams(dimension_semantics=("parallel",)),
    )(x, w1, b1, w2, b2, w3, b3)


# ---------------------------------------------------------------------------
# Parameters
# ---------------------------------------------------------------------------
def init_params(key):
    """PyTorch-layout parameters (same shapes/init bounds as nn.Conv2d/Linear)."""
    ks = jax.random.split(key, 10)

    def u(k, shape, fan_in):
        bound = 1.0 / float(fan_in) ** 0.5
        return jax.random.uniform(k, shape, jnp.float32, -bound, bound)

    return {
        "conv1_w": u(ks[0], (6, 3, 5, 5), 3 * 5 * 5),
        "conv1_b": u(ks[1], (6,), 3 * 5 * 5),
        "conv2_w": u(ks[2], (16, 6, 5, 5), 6 * 5 * 5),
        "conv2_b": u(ks[3], (16,), 6 * 5 * 5),
        "fc1_w": u(ks[4], (120, 400), 400),
        "fc1_b": u(ks[5], (120,), 400),
        "fc2_w": u(ks[6], (84, 120), 120),
        "fc2_b": u(ks[7], (84,), 120),
        "fc3_w": u(ks[8], (10, 84), 84),
        "fc3_b": u(ks[9], (10,), 84),
    }


def prepare_params(p):
    """One-time conversion of PyTorch-layout params to matmul-ready matrices."""
    def conv_mat(w):  # (Cout, Cin, KH, KW) -> (KH*KW*Cin, Cout), rows (kh, kw, cin)
        cout = w.shape[0]
        return jnp.transpose(w, (2, 3, 1, 0)).reshape(-1, cout)

    # torch fc1 columns index the CHW flatten of (16,5,5); permute to the HWC
    # flatten order produced by our NHWC activations.
    fc1 = jnp.transpose(p["fc1_w"].reshape(120, 16, 5, 5), (2, 3, 1, 0)).reshape(400, 120)
    return {
        "conv1_wm": conv_mat(p["conv1_w"]), "conv1_b": p["conv1_b"].reshape(1, -1),
        "conv2_wm": conv_mat(p["conv2_w"]), "conv2_b": p["conv2_b"].reshape(1, -1),
        "fc1_wm": fc1,                      "fc1_b": p["fc1_b"].reshape(1, -1),
        "fc2_wm": p["fc2_w"].T,             "fc2_b": p["fc2_b"].reshape(1, -1),
        "fc3_wm": p["fc3_w"].T,             "fc3_b": p["fc3_b"].reshape(1, -1),
    }


# ---------------------------------------------------------------------------
# Model forward (semantics of SimpleCNN_2.forward)
# ---------------------------------------------------------------------------
def simple_cnn_2_forward(p, x_nchw):
    x = jnp.transpose(x_nchw, (0, 2, 3, 1))                          # NCHW -> NHWC (once)
    x = pallas_conv_relu_pool(x, p["conv1_wm"], p["conv1_b"], k=5)   # (N, 14, 14, 6)
    x = pallas_conv_relu_pool(x, p["conv2_wm"], p["conv2_b"], k=5)   # (N, 5, 5, 16)
    x = x.reshape(x.shape[0], 5 * 5 * 16)                            # (N, 400), HWC order
    x = pallas_fc_fused(x, p["fc1_wm"], p["fc1_b"],
                        p["fc2_wm"], p["fc2_b"],
                        p["fc3_wm"], p["fc3_b"])                     # (N, 10)
    return x


if __name__ == "__main__":
    key = jax.random.PRNGKey(0)
    pkey, xkey = jax.random.split(key)
    params = prepare_params(init_params(pkey))
    # CIFAR10-shaped input (batch=2); 32x32 spatial is required by fc1 = 16*5*5.
    x = jax.random.normal(xkey, (2, 3, 32, 32), jnp.float32)
    out = jax.jit(simple_cnn_2_forward)(params, x)
    out = jax.block_until_ready(out)
    assert out.shape == (2, 10), out.shape
    print("KERNEL_OK")
</pallas_src>

<mosaic_0001>
module attributes {stable_mosaic.version = 11 : i64} {
  func.func @_conv_pool_kernel(%arg0: i32, %arg1: memref<392x75xf32, #tpu.memory_space<vmem>>, %arg2: memref<392x75xf32, #tpu.memory_space<vmem>>, %arg3: memref<392x75xf32, #tpu.memory_space<vmem>>, %arg4: memref<392x75xf32, #tpu.memory_space<vmem>>, %arg5: memref<75x6xf32, #tpu.memory_space<vmem>>, %arg6: memref<1x6xf32, #tpu.memory_space<vmem>>, %arg7: memref<392x6xf32, #tpu.memory_space<vmem>>) attributes {dimension_semantics = [#tpu.dimension_semantics<parallel>], iteration_bounds = array<i64: 1>, scalar_prefetch = 0 : i64, scratch_operands = 0 : i64, tpu.core_type = #tpu.core_type<tc>, window_params = [{transform_indices = @transform_0, window_bounds = array<i64: 392, 75>}, {transform_indices = @transform_1, window_bounds = array<i64: 392, 75>}, {transform_indices = @transform_2, window_bounds = array<i64: 392, 75>}, {transform_indices = @transform_3, window_bounds = array<i64: 392, 75>}, {pipeline_mode = #tpu.pipeline_mode<synchronous>, transform_indices = @transform_4, window_bounds = array<i64: 75, 6>}, {pipeline_mode = #tpu.pipeline_mode<synchronous>, transform_indices = @transform_5, window_bounds = array<i64: 1, 6>}, {transform_indices = @transform_6, window_bounds = array<i64: 392, 6>}]} {
    %c0 = arith.constant 0 : index
    %c0_0 = arith.constant 0 : index
    %0 = vector.load %arg5[%c0, %c0_0] : memref<75x6xf32, #tpu.memory_space<vmem>>, vector<75x6xf32>
    %c0_1 = arith.constant 0 : index
    %c0_2 = arith.constant 0 : index
    %1 = vector.load %arg1[%c0_1, %c0_2] : memref<392x75xf32, #tpu.memory_space<vmem>>, vector<392x75xf32>
    %cst = arith.constant dense<0.000000e+00> : vector<392x6xf32>
    %2 = tpu.matmul %1, %0, %cst {dimension_numbers = #tpu.dot_dimension_numbers<[1], [0], [0], [1], [0, 0, 1, 1], [], []>} : vector<392x75xf32>, vector<75x6xf32>, vector<392x6xf32> -> vector<392x6xf32>
    %c0_3 = arith.constant 0 : index
    %c0_4 = arith.constant 0 : index
    %3 = vector.load %arg2[%c0_3, %c0_4] : memref<392x75xf32, #tpu.memory_space<vmem>>, vector<392x75xf32>
    %cst_5 = arith.constant dense<0.000000e+00> : vector<392x6xf32>
    %4 = tpu.matmul %3, %0, %cst_5 {dimension_numbers = #tpu.dot_dimension_numbers<[1], [0], [0], [1], [0, 0, 1, 1], [], []>} : vector<392x75xf32>, vector<75x6xf32>, vector<392x6xf32> -> vector<392x6xf32>
    %c0_6 = arith.constant 0 : index
    %c0_7 = arith.constant 0 : index
    %5 = vector.load %arg3[%c0_6, %c0_7] : memref<392x75xf32, #tpu.memory_space<vmem>>, vector<392x75xf32>
    %cst_8 = arith.constant dense<0.000000e+00> : vector<392x6xf32>
    %6 = tpu.matmul %5, %0, %cst_8 {dimension_numbers = #tpu.dot_dimension_numbers<[1], [0], [0], [1], [0, 0, 1, 1], [], []>} : vector<392x75xf32>, vector<75x6xf32>, vector<392x6xf32> -> vector<392x6xf32>
    %c0_9 = arith.constant 0 : index
    %c0_10 = arith.constant 0 : index
    %7 = vector.load %arg4[%c0_9, %c0_10] : memref<392x75xf32, #tpu.memory_space<vmem>>, vector<392x75xf32>
    %cst_11 = arith.constant dense<0.000000e+00> : vector<392x6xf32>
    %8 = tpu.matmul %7, %0, %cst_11 {dimension_numbers = #tpu.dot_dimension_numbers<[1], [0], [0], [1], [0, 0, 1, 1], [], []>} : vector<392x75xf32>, vector<75x6xf32>, vector<392x6xf32> -> vector<392x6xf32>
    %9 = arith.maximumf %2, %4 : vector<392x6xf32>
    %10 = arith.maximumf %6, %8 : vector<392x6xf32>
    %11 = arith.maximumf %9, %10 : vector<392x6xf32>
    %c0_12 = arith.constant 0 : index
    %c0_13 = arith.constant 0 : index
    %12 = vector.load %arg6[%c0_12, %c0_13] : memref<1x6xf32, #tpu.memory_space<vmem>>, vector<1x6xf32>
    %13 = vector.broadcast %12 : vector<1x6xf32> to vector<392x6xf32>
    %14 = arith.addf %11, %13 : vector<392x6xf32>
    %cst_14 = arith.constant 0.000000e+00 : f32
    %15 = vector.broadcast %cst_14 : f32 to vector<392x6xf32>
    %16 = arith.maximumf %14, %15 : vector<392x6xf32>
    %c0_15 = arith.constant 0 : index
    %c0_16 = arith.constant 0 : index
    %17 = vector.load %arg7[%c0_15, %c0_16] : memref<392x6xf32, #tpu.memory_space<vmem>>, vector<392x6xf32>
    tpu.vector_store %arg7[%c0_15, %c0_16], %16 {strides = array<i32>} : memref<392x6xf32, #tpu.memory_space<vmem>>, vector<392x6xf32>,
    return
  }
  func.func @transform_0(%arg0: i32) -> (i32, i32) {
    %c0_i32 = arith.constant 0 : i32
    %c0_i32_0 = arith.constant 0 : i32
    return %arg0, %c0_i32 : i32, i32
  }
  func.func @transform_1(%arg0: i32) -> (i32, i32) {
    %c0_i32 = arith.constant 0 : i32
    %c0_i32_0 = arith.constant 0 : i32
    return %arg0, %c0_i32 : i32, i32
  }
  func.func @transform_2(%arg0: i32) -> (i32, i32) {
    %c0_i32 = arith.constant 0 : i32
    %c0_i32_0 = arith.constant 0 : i32
    return %arg0, %c0_i32 : i32, i32
  }
  func.func @transform_3(%arg0: i32) -> (i32, i32) {
    %c0_i32 = arith.constant 0 : i32
    %c0_i32_0 = arith.constant 0 : i32
    return %arg0, %c0_i32 : i32, i32
  }
  func.func @transform_4(%arg0: i32) -> (i32, i32) {
    %c0_i32 = arith.constant 0 : i32
    %c0_i32_0 = arith.constant 0 : i32
    %c0_i32_1 = arith.constant 0 : i32
    return %c0_i32, %c0_i32_0 : i32, i32
  }
  func.func @transform_5(%arg0: i32) -> (i32, i32) {
    %c0_i32 = arith.constant 0 : i32
    %c0_i32_0 = arith.constant 0 : i32
    %c0_i32_1 = arith.constant 0 : i32
    return %c0_i32, %c0_i32_0 : i32, i32
  }
  func.func @transform_6(%arg0: i32) -> (i32, i32) {
    %c0_i32 = arith.constant 0 : i32
    %c0_i32_0 = arith.constant 0 : i32
    return %arg0, %c0_i32 : i32, i32
  }
}

module attributes {stable_mosaic.version = 11 : i64} {
  func.func @_conv_pool_kernel(%arg0: i32, %arg1: memref<50x150xf32, #tpu.memory_space<vmem>>, %arg2: memref<50x150xf32, #tpu.memory_space<vmem>>, %arg3: memref<50x150xf32, #tpu.memory_space<vmem>>, %arg4: memref<50x150xf32, #tpu.memory_space<vmem>>, %arg5: memref<150x16xf32, #tpu.memory_space<vmem>>, %arg6: memref<1x16xf32, #tpu.memory_space<vmem>>, %arg7: memref<50x16xf32, #tpu.memory_space<vmem>>) attributes {dimension_semantics = [#tpu.dimension_semantics<parallel>], iteration_bounds = array<i64: 1>, scalar_prefetch = 0 : i64, scratch_operands = 0 : i64, tpu.core_type = #tpu.core_type<tc>, window_params = [{transform_indices = @transform_0, window_bounds = array<i64: 50, 150>}, {transform_indices = @transform_1, window_bounds = array<i64: 50, 150>}, {transform_indices = @transform_2, window_bounds = array<i64: 50, 150>}, {transform_indices = @transform_3, window_bounds = array<i64: 50, 150>}, {pipeline_mode = #tpu.pipeline_mode<synchronous>, transform_indices = @transform_4, window_bounds = array<i64: 150, 16>}, {pipeline_mode = #tpu.pipeline_mode<synchronous>, transform_indices = @transform_5, window_bounds = array<i64: 1, 16>}, {transform_indices = @transform_6, window_bounds = array<i64: 50, 16>}]} {
    %c0 = arith.constant 0 : index
    %c0_0 = arith.constant 0 : index
    %0 = vector.load %arg5[%c0, %c0_0] : memref<150x16xf32, #tpu.memory_space<vmem>>, vector<150x16xf32>
    %c0_1 = arith.constant 0 : index
    %c0_2 = arith.constant 0 : index
    %1 = vector.load %arg1[%c0_1, %c0_2] : memref<50x150xf32, #tpu.memory_space<vmem>>, vector<50x150xf32>
    %cst = arith.constant dense<0.000000e+00> : vector<50x16xf32>
    %2 = tpu.matmul %1, %0, %cst {dimension_numbers = #tpu.dot_dimension_numbers<[1], [0], [0], [1], [0, 0, 1, 1], [], []>} : vector<50x150xf32>, vector<150x16xf32>, vector<50x16xf32> -> vector<50x16xf32>
    %c0_3 = arith.constant 0 : index
    %c0_4 = arith.constant 0 : index
    %3 = vector.load %arg2[%c0_3, %c0_4] : memref<50x150xf32, #tpu.memory_space<vmem>>, vector<50x150xf32>
    %cst_5 = arith.constant dense<0.000000e+00> : vector<50x16xf32>
    %4 = tpu.matmul %3, %0, %cst_5 {dimension_numbers = #tpu.dot_dimension_numbers<[1], [0], [0], [1], [0, 0, 1, 1], [], []>} : vector<50x150xf32>, vector<150x16xf32>, vector<50x16xf32> -> vector<50x16xf32>
    %c0_6 = arith.constant 0 : index
    %c0_7 = arith.constant 0 : index
    %5 = vector.load %arg3[%c0_6, %c0_7] : memref<50x150xf32, #tpu.memory_space<vmem>>, vector<50x150xf32>
    %cst_8 = arith.constant dense<0.000000e+00> : vector<50x16xf32>
    %6 = tpu.matmul %5, %0, %cst_8 {dimension_numbers = #tpu.dot_dimension_numbers<[1], [0], [0], [1], [0, 0, 1, 1], [], []>} : vector<50x150xf32>, vector<150x16xf32>, vector<50x16xf32> -> vector<50x16xf32>
    %c0_9 = arith.constant 0 : index
    %c0_10 = arith.constant 0 : index
    %7 = vector.load %arg4[%c0_9, %c0_10] : memref<50x150xf32, #tpu.memory_space<vmem>>, vector<50x150xf32>
    %cst_11 = arith.constant dense<0.000000e+00> : vector<50x16xf32>
    %8 = tpu.matmul %7, %0, %cst_11 {dimension_numbers = #tpu.dot_dimension_numbers<[1], [0], [0], [1], [0, 0, 1, 1], [], []>} : vector<50x150xf32>, vector<150x16xf32>, vector<50x16xf32> -> vector<50x16xf32>
    %9 = arith.maximumf %2, %4 : vector<50x16xf32>
    %10 = arith.maximumf %6, %8 : vector<50x16xf32>
    %11 = arith.maximumf %9, %10 : vector<50x16xf32>
    %c0_12 = arith.constant 0 : index
    %c0_13 = arith.constant 0 : index
    %12 = vector.load %arg6[%c0_12, %c0_13] : memref<1x16xf32, #tpu.memory_space<vmem>>, vector<1x16xf32>
    %13 = vector.broadcast %12 : vector<1x16xf32> to vector<50x16xf32>
    %14 = arith.addf %11, %13 : vector<50x16xf32>
    %cst_14 = arith.constant 0.000000e+00 : f32
    %15 = vector.broadcast %cst_14 : f32 to vector<50x16xf32>
    %16 = arith.maximumf %14, %15 : vector<50x16xf32>
    %c0_15 = arith.constant 0 : index
    %c0_16 = arith.constant 0 : index
    %17 = vector.load %arg7[%c0_15, %c0_16] : memref<50x16xf32, #tpu.memory_space<vmem>>, vector<50x16xf32>
    tpu.vector_store %arg7[%c0_15, %c0_16], %16 {strides = array<i32>} : memref<50x16xf32, #tpu.memory_space<vmem>>, vector<50x16xf32>,
    return
  }
  func.func @transform_0(%arg0: i32) -> (i32, i32) {
    %c0_i32 = arith.constant 0 : i32
    %c0_i32_0 = arith.constant 0 : i32
    return %arg0, %c0_i32 : i32, i32
  }
  func.func @transform_1(%arg0: i32) -> (i32, i32) {
    %c0_i32 = arith.constant 0 : i32
    %c0_i32_0 = arith.constant 0 : i32
    return %arg0, %c0_i32 : i32, i32
  }
  func.func @transform_2(%arg0: i32) -> (i32, i32) {
    %c0_i32 = arith.constant 0 : i32
    %c0_i32_0 = arith.constant 0 : i32
    return %arg0, %c0_i32 : i32, i32
  }
  func.func @transform_3(%arg0: i32) -> (i32, i32) {
    %c0_i32 = arith.constant 0 : i32
    %c0_i32_0 = arith.constant 0 : i32
    return %arg0, %c0_i32 : i32, i32
  }
  func.func @transform_4(%arg0: i32) -> (i32, i32) {
    %c0_i32 = arith.constant 0 : i32
    %c0_i32_0 = arith.constant 0 : i32
    %c0_i32_1 = arith.constant 0 : i32
    return %c0_i32, %c0_i32_0 : i32, i32
  }
  func.func @transform_5(%arg0: i32) -> (i32, i32) {
    %c0_i32 = arith.constant 0 : i32
    %c0_i32_0 = arith.constant 0 : i32
    %c0_i32_1 = arith.constant 0 : i32
    return %c0_i32, %c0_i32_0 : i32, i32
  }
  func.func @transform_6(%arg0: i32) -> (i32, i32) {
    %c0_i32 = arith.constant 0 : i32
    %c0_i32_0 = arith.constant 0 : i32
    return %arg0, %c0_i32 : i32, i32
  }
}

module attributes {stable_mosaic.version = 11 : i64} {
  func.func @_fc_fused_kernel(%arg0: i32, %arg1: memref<2x400xf32, #tpu.memory_space<vmem>>, %arg2: memref<400x120xf32, #tpu.memory_space<vmem>>, %arg3: memref<1x120xf32, #tpu.memory_space<vmem>>, %arg4: memref<120x84xf32, #tpu.memory_space<vmem>>, %arg5: memref<1x84xf32, #tpu.memory_space<vmem>>, %arg6: memref<84x10xf32, #tpu.memory_space<vmem>>, %arg7: memref<1x10xf32, #tpu.memory_space<vmem>>, %arg8: memref<2x10xf32, #tpu.memory_space<vmem>>) attributes {dimension_semantics = [#tpu.dimension_semantics<parallel>], iteration_bounds = array<i64: 1>, scalar_prefetch = 0 : i64, scratch_operands = 0 : i64, tpu.core_type = #tpu.core_type<tc>, window_params = [{transform_indices = @transform_0, window_bounds = array<i64: 2, 400>}, {pipeline_mode = #tpu.pipeline_mode<synchronous>, transform_indices = @transform_1, window_bounds = array<i64: 400, 120>}, {pipeline_mode = #tpu.pipeline_mode<synchronous>, transform_indices = @transform_2, window_bounds = array<i64: 1, 120>}, {pipeline_mode = #tpu.pipeline_mode<synchronous>, transform_indices = @transform_3, window_bounds = array<i64: 120, 84>}, {pipeline_mode = #tpu.pipeline_mode<synchronous>, transform_indices = @transform_4, window_bounds = array<i64: 1, 84>}, {pipeline_mode = #tpu.pipeline_mode<synchronous>, transform_indices = @transform_5, window_bounds = array<i64: 84, 10>}, {pipeline_mode = #tpu.pipeline_mode<synchronous>, transform_indices = @transform_6, window_bounds = array<i64: 1, 10>}, {transform_indices = @transform_7, window_bounds = array<i64: 2, 10>}]} {
    %c0 = arith.constant 0 : index
    %c0_0 = arith.constant 0 : index
    %0 = vector.load %arg1[%c0, %c0_0] : memref<2x400xf32, #tpu.memory_space<vmem>>, vector<2x400xf32>
    %c0_1 = arith.constant 0 : index
    %c0_2 = arith.constant 0 : index
    %1 = vector.load %arg2[%c0_1, %c0_2] : memref<400x120xf32, #tpu.memory_space<vmem>>, vector<400x120xf32>
    %cst = arith.constant dense<0.000000e+00> : vector<2x120xf32>
    %2 = tpu.matmul %0, %1, %cst {dimension_numbers = #tpu.dot_dimension_numbers<[1], [0], [0], [1], [0, 0, 1, 1], [], []>} : vector<2x400xf32>, vector<400x120xf32>, vector<2x120xf32> -> vector<2x120xf32>
    %c0_3 = arith.constant 0 : index
    %c0_4 = arith.constant 0 : index
    %3 = vector.load %arg3[%c0_3, %c0_4] : memref<1x120xf32, #tpu.memory_space<vmem>>, vector<1x120xf32>
    %4 = vector.broadcast %3 : vector<1x120xf32> to vector<2x120xf32>
    %5 = arith.addf %2, %4 : vector<2x120xf32>
    %cst_5 = arith.constant 0.000000e+00 : f32
    %6 = vector.broadcast %cst_5 : f32 to vector<2x120xf32>
    %7 = arith.maximumf %5, %6 : vector<2x120xf32>
    %c0_6 = arith.constant 0 : index
    %c0_7 = arith.constant 0 : index
    %8 = vector.load %arg4[%c0_6, %c0_7] : memref<120x84xf32, #tpu.memory_space<vmem>>, vector<120x84xf32>
    %cst_8 = arith.constant dense<0.000000e+00> : vector<2x84xf32>
    %9 = tpu.matmul %7, %8, %cst_8 {dimension_numbers = #tpu.dot_dimension_numbers<[1], [0], [0], [1], [0, 0, 1, 1], [], []>} : vector<2x120xf32>, vector<120x84xf32>, vector<2x84xf32> -> vector<2x84xf32>
    %c0_9 = arith.constant 0 : index
    %c0_10 = arith.constant 0 : index
    %10 = vector.load %arg5[%c0_9, %c0_10] : memref<1x84xf32, #tpu.memory_space<vmem>>, vector<1x84xf32>
    %11 = vector.broadcast %10 : vector<1x84xf32> to vector<2x84xf32>
    %12 = arith.addf %9, %11 : vector<2x84xf32>
    %cst_11 = arith.constant 0.000000e+00 : f32
    %13 = vector.broadcast %cst_11 : f32 to vector<2x84xf32>
    %14 = arith.maximumf %12, %13 : vector<2x84xf32>
    %c0_12 = arith.constant 0 : index
    %c0_13 = arith.constant 0 : index
    %15 = vector.load %arg6[%c0_12, %c0_13] : memref<84x10xf32, #tpu.memory_space<vmem>>, vector<84x10xf32>
    %cst_14 = arith.constant dense<0.000000e+00> : vector<2x10xf32>
    %16 = tpu.matmul %14, %15, %cst_14 {dimension_numbers = #tpu.dot_dimension_numbers<[1], [0], [0], [1], [0, 0, 1, 1], [], []>} : vector<2x84xf32>, vector<84x10xf32>, vector<2x10xf32> -> vector<2x10xf32>
    %c0_15 = arith.constant 0 : index
    %c0_16 = arith.constant 0 : index
    %17 = vector.load %arg7[%c0_15, %c0_16] : memref<1x10xf32, #tpu.memory_space<vmem>>, vector<1x10xf32>
    %18 = vector.broadcast %17 : vector<1x10xf32> to vector<2x10xf32>
    %19 = arith.addf %16, %18 : vector<2x10xf32>
    %c0_17 = arith.constant 0 : index
    %c0_18 = arith.constant 0 : index
    %20 = vector.load %arg8[%c0_17, %c0_18] : memref<2x10xf32, #tpu.memory_space<vmem>>, vector<2x10xf32>
    tpu.vector_store %arg8[%c0_17, %c0_18], %19 {strides = array<i32>} : memref<2x10xf32, #tpu.memory_space<vmem>>, vector<2x10xf32>,
    return
  }
  func.func @transform_0(%arg0: i32) -> (i32, i32) {
    %c0_i32 = arith.constant 0 : i32
    %c0_i32_0 = arith.constant 0 : i32
    return %arg0, %c0_i32 : i32, i32
  }
  func.func @transform_1(%arg0: i32) -> (i32, i32) {
    %c0_i32 = arith.constant 0 : i32
    %c0_i32_0 = arith.constant 0 : i32
    %c0_i32_1 = arith.constant 0 : i32
    return %c0_i32, %c0_i32_0 : i32, i32
  }
  func.func @transform_2(%arg0: i32) -> (i32, i32) {
    %c0_i32 = arith.constant 0 : i32
    %c0_i32_0 = arith.constant 0 : i32
    %c0_i32_1 = arith.constant 0 : i32
    return %c0_i32, %c0_i32_0 : i32, i32
  }
  func.func @transform_3(%arg0: i32) -> (i32, i32) {
    %c0_i32 = arith.constant 0 : i32
    %c0_i32_0 = arith.constant 0 : i32
    %c0_i32_1 = arith.constant 0 : i32
    return %c0_i32, %c0_i32_0 : i32, i32
  }
  func.func @transform_4(%arg0: i32) -> (i32, i32) {
    %c0_i32 = arith.constant 0 : i32
    %c0_i32_0 = arith.constant 0 : i32
    %c0_i32_1 = arith.constant 0 : i32
    return %c0_i32, %c0_i32_0 : i32, i32
  }
  func.func @transform_5(%arg0: i32) -> (i32, i32) {
    %c0_i32 = arith.constant 0 : i32
    %c0_i32_0 = arith.constant 0 : i32
    %c0_i32_1 = arith.constant 0 : i32
    return %c0_i32, %c0_i32_0 : i32, i32
  }
  func.func @transform_6(%arg0: i32) -> (i32, i32) {
    %c0_i32 = arith.constant 0 : i32
    %c0_i32_0 = arith.constant 0 : i32
    %c0_i32_1 = arith.constant 0 : i32
    return %c0_i32, %c0_i32_0 : i32, i32
  }
  func.func @transform_7(%arg0: i32) -> (i32, i32) {
    %c0_i32 = arith.constant 0 : i32
    %c0_i32_0 = arith.constant 0 : i32
    return %arg0, %c0_i32 : i32, i32
  }
}

</mosaic_0001>

<llo_original>
// kernel: simple_cnn_2_forward.3
$region0: #{simple_cnn_2_forward.3}
  #allocation0 [shape = 'u32[]', space=smem, size = 0x4, offset = 0x4, fixed_abs, tag = 'smem constant byte address 0x4 - core index']
  #allocation1 [shape = 'u32[144,128]{1,0:T(1,128)}', space=vmem, size = 0x12000, scoped, tag = 'internal scratch']
  %s0 = inlined_call_operand.vmem [shape: f32[392,75], index: 0, kind: input, shape index: {}]
  %s1 = inlined_call_operand.vmem [shape: f32[392,75], index: 1, kind: input, shape index: {}]
  %s2 = inlined_call_operand.vmem [shape: f32[392,75], index: 2, kind: input, shape index: {}]
  %s3 = inlined_call_operand.vmem [shape: f32[392,75], index: 3, kind: input, shape index: {}]
  %s4 = inlined_call_operand.vmem [shape: f32[75,6], index: 4, kind: input, shape index: {}]
  %s5 = inlined_call_operand.vmem [shape: f32[1,6], index: 5, kind: input, shape index: {}]
  %s6 = inlined_call_operand.vmem [shape: f32[392,6], index: 6, kind: output, shape index: {}]
  %s7 = sld [smem:[#allocation0]]
  $region34: #{simple_cnn_2_forward.3} parent=0
    _
  %s9 = ssub.s32 1, %s7
  %s10 = scalar_select 0, %s9, %s7
  // Predicated region
  $region2: #{simple_cnn_2_forward.3} parent=0 // pred_check
    _
  $region3: #{simple_cnn_2_forward.3} parent=0 // pred_check_branch
    %12 = sbr.rel (0) target = $region5
  $region4: #{simple_cnn_2_forward.3} parent=0 // pred_region
    _
  $region5: #{simple_cnn_2_forward.3} parent=0 // pred_fallthru
    _
  // Predicated region
  $region6: #{simple_cnn_2_forward.3} parent=0 // pred_check
    _
  $region7: #{simple_cnn_2_forward.3} parent=0 // pred_check_branch
    %14 = sbr.rel (0) target = $region9
  $region8: #{simple_cnn_2_forward.3} parent=0 // pred_region
    _
  $region9: #{simple_cnn_2_forward.3} parent=0 // pred_fallthru
    _
  // Predicated region
  $region10: #{simple_cnn_2_forward.3} parent=0 // pred_check
    _
  $region11: #{simple_cnn_2_forward.3} parent=0 // pred_check_branch
    %16 = sbr.rel (0) target = $region13
  $region12: #{simple_cnn_2_forward.3} parent=0 // pred_region
    _
  $region13: #{simple_cnn_2_forward.3} parent=0 // pred_fallthru
    _
  // Predicated region
  $region14: #{simple_cnn_2_forward.3} parent=0 // pred_check
    _
  $region15: #{simple_cnn_2_forward.3} parent=0 // pred_check_branch
    %18 = sbr.rel (0) target = $region17
  $region16: #{simple_cnn_2_forward.3} parent=0 // pred_region
    _
  $region17: #{simple_cnn_2_forward.3} parent=0 // pred_fallthru
    _
  // Predicated region
  $region18: #{simple_cnn_2_forward.3} parent=0 // pred_check
    _
  $region19: #{simple_cnn_2_forward.3} parent=0 // pred_check_branch
    %20 = sbr.rel (0) target = $region21
  $region20: #{simple_cnn_2_forward.3} parent=0 // pred_region
    _
  $region21: #{simple_cnn_2_forward.3} parent=0 // pred_fallthru
    _
  // Predicated region
  $region22: #{simple_cnn_2_forward.3} parent=0 // pred_check
    _
  $region23: #{simple_cnn_2_forward.3} parent=0 // pred_check_branch
    %22 = sbr.rel (0) target = $region25
  $region24: #{simple_cnn_2_forward.3} parent=0 // pred_region
    _
  $region25: #{simple_cnn_2_forward.3} parent=0 // pred_fallthru
    _
  %v23 = vld [vmem:[%s4] sm:$0xff]
  %v24 = vld [vmem:[%s4 + $0x8] sm:$0xff]
  %v25 = vld [vmem:[%s4 + $0x10] sm:$0xff]
  %v26 = vld [vmem:[%s4 + $0x18] sm:$0xff]
  %v27 = vld [vmem:[%s4 + $0x20] sm:$0xff]
  %v28 = vld [vmem:[%s4 + $0x28] sm:$0xff]
  %v29 = vld [vmem:[%s4 + $0x30] sm:$0xff]
  %v30 = vld [vmem:[%s4 + $0x38] sm:$0xff]
  %v31 = vld [vmem:[%s4 + $0x40] sm:$0xff]
  %v32 = vld [vmem:[%s4 + $0x48] sm:$0x7]
  %v33 = vld [vmem:[%s0] sm:$0xff]
  %v34 = vld [vmem:[%s0 + $0x8] sm:$0xff]
  %v35 = vld [vmem:[%s0 + $0x10] sm:$0xff]
  %v36 = vld [vmem:[%s0 + $0x18] sm:$0xff]
  %v37 = vld [vmem:[%s0 + $0x20] sm:$0xff]
  %v38 = vld [vmem:[%s0 + $0x28] sm:$0xff]
  %v39 = vld [vmem:[%s0 + $0x30] sm:$0xff]
  %v40 = vld [vmem:[%s0 + $0x38] sm:$0xff]
  %v41 = vld [vmem:[%s0 + $0x40] sm:$0xff]
  %v42 = vld [vmem:[%s0 + $0x48] sm:$0xff]
  %v43 = vld [vmem:[%s0 + $0x50] sm:$0xff]
  %v44 = vld [vmem:[%s0 + $0x58] sm:$0xff]
  %v45 = vld [vmem:[%s0 + $0x60] sm:$0xff]
  %v46 = vld [vmem:[%s0 + $0x68] sm:$0xff]
  %v47 = vld [vmem:[%s0 + $0x70] sm:$0xff]
  %v48 = vld [vmem:[%s0 + $0x78] sm:$0xff]
  %v49 = vld [vmem:[%s0 + $0x80] sm:$0xff]
  %v50 = vld [vmem:[%s0 + $0x88] sm:$0xff]
  %v51 = vld [vmem:[%s0 + $0x90] sm:$0xff]
  %v52 = vld [vmem:[%s0 + $0x98] sm:$0xff]
  %v53 = vld [vmem:[%s0 + $0xa0] sm:$0xff]
  %v54 = vld [vmem:[%s0 + $0xa8] sm:$0xff]
  %v55 = vld [vmem:[%s0 + $0xb0] sm:$0xff]
  %v56 = vld [vmem:[%s0 + $0xb8] sm:$0xff]
  %v57 = vld [vmem:[%s0 + $0xc0] sm:$0xff]
  %v58 = vld [vmem:[%s0 + $0xc8] sm:$0xff]
  %v59 = vld [vmem:[%s0 + $0xd0] sm:$0xff]
  %v60 = vld [vmem:[%s0 + $0xd8] sm:$0xff]
  %v61 = vld [vmem:[%s0 + $0xe0] sm:$0xff]
  %v62 = vld [vmem:[%s0 + $0xe8] sm:$0xff]
  %v63 = vld [vmem:[%s0 + $0xf0] sm:$0xff]
  %v64 = vld [vmem:[%s0 + $0xf8] sm:$0xff]
  %v65 = vld [vmem:[%s0 + $0x100] sm:$0xff]
  %v66 = vld [vmem:[%s0 + $0x108] sm:$0xff]
  %v67 = vld [vmem:[%s0 + $0x110] sm:$0xff]
  %v68 = vld [vmem:[%s0 + $0x118] sm:$0xff]
  %v69 = vld [vmem:[%s0 + $0x120] sm:$0xff]
  %v70 = vld [vmem:[%s0 + $0x128] sm:$0xff]
  %v71 = vld [vmem:[%s0 + $0x130] sm:$0xff]
  %v72 = vld [vmem:[%s0 + $0x138] sm:$0xff]
  %v73 = vld [vmem:[%s0 + $0x140] sm:$0xff]
  %v74 = vld [vmem:[%s0 + $0x148] sm:$0xff]
  %v75 = vld [vmem:[%s0 + $0x150] sm:$0xff]
  %v76 = vld [vmem:[%s0 + $0x158] sm:$0xff]
  %v77 = vld [vmem:[%s0 + $0x160] sm:$0xff]
  %v78 = vld [vmem:[%s0 + $0x168] sm:$0xff]
  %v79 = vld [vmem:[%s0 + $0x170] sm:$0xff]
  %v80 = vld [vmem:[%s0 + $0x178] sm:$0xff]
  %v81 = vld [vmem:[%s0 + $0x180] sm:$0xff]
  %vm82 = vcmask 613376
  %v84 = vsel %vm82, %v33, 0
  %v87 = vsel %vm82, %v34, 0
  %v90 = vsel %vm82, %v35, 0
  %v93 = vsel %vm82, %v36, 0
  %v96 = vsel %vm82, %v37, 0
  %v99 = vsel %vm82, %v38, 0
  %v102 = vsel %vm82, %v39, 0
  %v105 = vsel %vm82, %v40, 0
  %v108 = vsel %vm82, %v41, 0
  %v111 = vsel %vm82, %v42, 0
  %v114 = vsel %vm82, %v43, 0
  %v117 = vsel %vm82, %v44, 0
  %v120 = vsel %vm82, %v45, 0
  %v123 = vsel %vm82, %v46, 0
  %v126 = vsel %vm82, %v47, 0
  %v129 = vsel %vm82, %v48, 0
  %v132 = vsel %vm82, %v49, 0
  %v135 = vsel %vm82, %v50, 0
  %v138 = vsel %vm82, %v51, 0
  %v141 = vsel %vm82, %v52, 0
  %v144 = vsel %vm82, %v53, 0
  %v147 = vsel %vm82, %v54, 0
  %v150 = vsel %vm82, %v55, 0
  %v153 = vsel %vm82, %v56, 0
  %v156 = vsel %vm82, %v57, 0
  %v159 = vsel %vm82, %v58, 0
  %v162 = vsel %vm82, %v59, 0
  %v165 = vsel %vm82, %v60, 0
  %v168 = vsel %vm82, %v61, 0
  %v171 = vsel %vm82, %v62, 0
  %v174 = vsel %vm82, %v63, 0
  %v177 = vsel %vm82, %v64, 0
  %v180 = vsel %vm82, %v65, 0
  %v183 = vsel %vm82, %v66, 0
  %v186 = vsel %vm82, %v67, 0
  %v189 = vsel %vm82, %v68, 0
  %v192 = vsel %vm82, %v69, 0
  %v195 = vsel %vm82, %v70, 0
  %v198 = vsel %vm82, %v71, 0
  %v201 = vsel %vm82, %v72, 0
  %v204 = vsel %vm82, %v73, 0
  %v207 = vsel %vm82, %v74, 0
  %v210 = vsel %vm82, %v75, 0
  %v213 = vsel %vm82, %v76, 0
  %v216 = vsel %vm82, %v77, 0
  %v219 = vsel %vm82, %v78, 0
  %v222 = vsel %vm82, %v79, 0
  %v225 = vsel %vm82, %v80, 0
  %v228 = vsel %vm82, %v81, 0
  %vm230 = vcmask 1042432
  %v232 = vsel %vm230, %v32, 0
  %234 = vmatprep.subr.mxu0 0.0
  %235 = vmatpush1.msra.mxu0 %v23
  %236 = vmatprep.subr.mxu0 0.0
  %237 = vmatpush1.msra.mxu0 %v24
  %238 = vmatprep.subr.mxu0 0.0
  %239 = vmatpush1.msra.mxu0 %v25
  %240 = vmatprep.subr.mxu0 0.0
  %241 = vmatpush1.msra.mxu0 %v26
  %242 = vmatprep.subr.mxu0 0.0
  %243 = vmatpush1.msra.mxu0 %v27
  %244 = vmatprep.subr.mxu0 0.0
  %245 = vmatpush1.msra.mxu0 %v28
  %246 = vmatprep.subr.mxu0 0.0
  %247 = vmatpush1.msra.mxu0 %v29
  %248 = vmatprep.subr.mxu0 0.0
  %249 = vmatpush1.msra.mxu0 %v30
  %250 = vmatprep.subr.mxu0 0.0
  %251 = vmatpush1.msra.mxu0 %v31
  %252 = vmatprep.subr.mxu0 0.0
  %253 = vmatpush1.msra.mxu0 %v232
  %254 = vmatprep.subr.mxu0 0.0
  %255 = vmatpush1.msra.mxu0 0.0
  %256 = vmatprep.subr.mxu0 0.0
  %257 = vmatpush1.msra.mxu0 0.0
  %258 = vmatprep.subr.mxu0 0.0
  %259 = vmatpush1.msra.mxu0 0.0
  %260 = vmatprep.subr.mxu0 0.0
  %261 = vmatpush1.msra.mxu0 0.0
  %262 = vmatprep.subr.mxu0 0.0
  %263 = vmatpush1.msra.mxu0 0.0
  %264 = vmatprep.subr.mxu0 0.0
  %265 = vmatpush1.msra.mxu0 0.0
  %266 = vmatprep.subr.mxu0 0.0
  %267 = vmatpush1.msra.mxu0 0.0
  %268 = vmatprep.subr.mxu0 0.0
  %269 = vmatpush1.msra.mxu0 0.0
  %270 = vmatprep.subr.mxu0 0.0
  %271 = vmatpush1.msra.mxu0 0.0
  %272 = vmatprep.subr.mxu0 0.0
  %273 = vmatpush1.msra.mxu0 0.0
  %274 = vmatprep.subr.mxu0 0.0
  %275 = vmatpush1.msra.mxu0 0.0
  %276 = vmatprep.subr.mxu0 0.0
  %277 = vmatpush1.msra.mxu0 0.0
  %278 = vmatprep.subr.mxu0 0.0
  %279 = vmatpush1.msra.mxu0 0.0
  %280 = vmatprep.subr.mxu0 0.0
  %281 = vmatpush1.msra.mxu0 0.0
  %282 = vmatprep.subr.mxu0 0.0
  %283 = vmatpush1.msra.mxu0 0.0
  %284 = vmatprep.subr.mxu0 0.0
  %285 = vmatpush1.msra.mxu0 0.0
  %286 = vmatprep.subr.mxu0 0.0
  %287 = vmatpush1.msra.mxu0 0.0
  %288 = vmatprep.subr.mxu0 0.0
  %289 = vmatpush1.msra.mxu0 0.0
  %290 = vmatprep.subr.mxu0 0.0
  %291 = vmatpush1.msra.mxu0 0.0
  %292 = vmatprep.subr.mxu0 0.0
  %293 = vmatpush1.msra.mxu0 0.0
  %294 = vmatprep.subr.mxu0 0.0
  %295 = vmatpush1.msra.mxu0 0.0
  %296 = vmatprep.subr.mxu0 0.0
  %297 = vmatpush1.msra.mxu0 0.0
  %298 = vmatprep.mubr.f32.mxu0 0.0
  %299 = vmatmul.mubr.f32.gmra.mrb[0].mxu0 %v84
  %v300 = vpop.f32.mrb[0].mxu0
  %v301 = vadd.f32 0.0, %v300
  %v302 = vpop.f32.mrb[0].mxu0
  %303 = vmatprep.mubr.f32.mxu0 0.0
  %304 = vmatmul.mubr.f32.gmra.mrb[0].mxu0 %v87
  %v305 = vpop.f32.mrb[0].mxu0
  %v306 = vadd.f32 0.0, %v305
  %v307 = vpop.f32.mrb[0].mxu0
  %308 = vmatprep.mubr.f32.mxu0 0.0
  %309 = vmatmul.mubr.f32.gmra.mrb[0].mxu0 %v90
  %v310 = vpop.f32.mrb[0].mxu0
  %v311 = vadd.f32 0.0, %v310
  %v312 = vpop.f32.mrb[0].mxu0
  %313 = vmatprep.mubr.f32.mxu0 0.0
  %314 = vmatmul.mubr.f32.gmra.mrb[0].mxu0 %v93
  %v315 = vpop.f32.mrb[0].mxu0
  %v316 = vadd.f32 0.0, %v315
  %v317 = vpop.f32.mrb[0].mxu0
  %318 = vmatprep.mubr.f32.mxu0 0.0
  %319 = vmatmul.mubr.f32.gmra.mrb[0].mxu0 %v96
  %v320 = vpop.f32.mrb[0].mxu0
  %v321 = vadd.f32 0.0, %v320
  %v322 = vpop.f32.mrb[0].mxu0
  %323 = vmatprep.mubr.f32.mxu0 0.0
  %324 = vmatmul.mubr.f32.gmra.mrb[0].mxu0 %v99
  %v325 = vpop.f32.mrb[0].mxu0
  %v326 = vadd.f32 0.0, %v325
  %v327 = vpop.f32.mrb[0].mxu0
  %328 = vmatprep.mubr.f32.mxu0 0.0
  %329 = vmatmul.mubr.f32.gmra.mrb[0].mxu0 %v102
  %v330 = vpop.f32.mrb[0].mxu0
  %v331 = vadd.f32 0.0, %v330
  %v332 = vpop.f32.mrb[0].mxu0
  %333 = vmatprep.mubr.f32.mxu0 0.0
  %334 = vmatmul.mubr.f32.gmra.mrb[0].mxu0 %v105
  %v335 = vpop.f32.mrb[0].mxu0
  %v336 = vadd.f32 0.0, %v335
  %v337 = vpop.f32.mrb[0].mxu0
  %338 = vmatprep.mubr.f32.mxu0 0.0
  %339 = vmatmul.mubr.f32.gmra.mrb[0].mxu0 %v108
  %v340 = vpop.f32.mrb[0].mxu0
  %v341 = vadd.f32 0.0, %v340
  %v342 = vpop.f32.mrb[0].mxu0
  %343 = vmatprep.mubr.f32.mxu0 0.0
  %344 = vmatmul.mubr.f32.gmra.mrb[0].mxu0 %v111
  %v345 = vpop.f32.mrb[0].mxu0
  %v346 = vadd.f32 0.0, %v345
  %v347 = vpop.f32.mrb[0].mxu0
  %348 = vmatprep.mubr.f32.mxu0 0.0
  %349 = vmatmul.mubr.f32.gmra.mrb[0].mxu0 %v114
  %v350 = vpop.f32.mrb[0].mxu0
  %v351 = vadd.f32 0.0, %v350
  %v352 = vpop.f32.mrb[0].mxu0
  %353 = vmatprep.mubr.f32.mxu0 0.0
  %354 = vmatmul.mubr.f32.gmra.mrb[0].mxu0 %v117
  %v355 = vpop.f32.mrb[0].mxu0
  %v356 = vadd.f32 0.0, %v355
  %v357 = vpop.f32.mrb[0].mxu0
  %358 = vmatprep.mubr.f32.mxu0 0.0
  %359 = vmatmul.mubr.f32.gmra.mrb[0].mxu0 %v120
  %v360 = vpop.f32.mrb[0].mxu0
  %v361 = vadd.f32 0.0, %v360
  %v362 = vpop.f32.mrb[0].mxu0
  %363 = vmatprep.mubr.f32.mxu0 0.0
  %364 = vmatmul.mubr.f32.gmra.mrb[0].mxu0 %v123
  %v365 = vpop.f32.mrb[0].mxu0
  %v366 = vadd.f32 0.0, %v365
  %v367 = vpop.f32.mrb[0].mxu0
  %368 = vmatprep.mubr.f32.mxu0 0.0
  %369 = vmatmul.mubr.f32.gmra.mrb[0].mxu0 %v126
  %v370 = vpop.f32.mrb[0].mxu0
  %v371 = vadd.f32 0.0, %v370
  %v372 = vpop.f32.mrb[0].mxu0
  %373 = vmatprep.mubr.f32.mxu0 0.0
  %374 = vmatmul.mubr.f32.gmra.mrb[0].mxu0 %v129
  %v375 = vpop.f32.mrb[0].mxu0
  %v376 = vadd.f32 0.0, %v375
  %v377 = vpop.f32.mrb[0].mxu0
  %378 = vmatprep.mubr.f32.mxu0 0.0
  %379 = vmatmul.mubr.f32.gmra.mrb[0].mxu0 %v132
  %v380 = vpop.f32.mrb[0].mxu0
  %v381 = vadd.f32 0.0, %v380
  %v382 = vpop.f32.mrb[0].mxu0
  %383 = vmatprep.mubr.f32.mxu0 0.0
  %384 = vmatmul.mubr.f32.gmra.mrb[0].mxu0 %v135
  %v385 = vpop.f32.mrb[0].mxu0
  %v386 = vadd.f32 0.0, %v385
  %v387 = vpop.f32.mrb[0].mxu0
  %388 = vmatprep.mubr.f32.mxu0 0.0
  %389 = vmatmul.mubr.f32.gmra.mrb[0].mxu0 %v138
  %v390 = vpop.f32.mrb[0].mxu0
  %v391 = vadd.f32 0.0, %v390
  %v392 = vpop.f32.mrb[0].mxu0
  %393 = vmatprep.mubr.f32.mxu0 0.0
  %394 = vmatmul.mubr.f32.gmra.mrb[0].mxu0 %v141
  %v395 = vpop.f32.mrb[0].mxu0
  %v396 = vadd.f32 0.0, %v395
  %v397 = vpop.f32.mrb[0].mxu0
  %398 = vmatprep.mubr.f32.mxu0 0.0
  %399 = vmatmul.mubr.f32.gmra.mrb[0].mxu0 %v144
  %v400 = vpop.f32.mrb[0].mxu0
  %v401 = vadd.f32 0.0, %v400
  %v402 = vpop.f32.mrb[0].mxu0
  %403 = vmatprep.mubr.f32.mxu0 0.0
  %404 = vmatmul.mubr.f32.gmra.mrb[0].mxu0 %v147
  %v405 = vpop.f32.mrb[0].mxu0
  %v406 = vadd.f32 0.0, %v405
  %v407 = vpop.f32.mrb[0].mxu0
  %408 = vmatprep.mubr.f32.mxu0 0.0
  %409 = vmatmul.mubr.f32.gmra.mrb[0].mxu0 %v150
  %v410 = vpop.f32.mrb[0].mxu0
  %v411 = vadd.f32 0.0, %v410
  %v412 = vpop.f32.mrb[0].mxu0
  %413 = vmatprep.mubr.f32.mxu0 0.0
  %414 = vmatmul.mubr.f32.gmra.mrb[0].mxu0 %v153
  %v415 = vpop.f32.mrb[0].mxu0
  %v416 = vadd.f32 0.0, %v415
  %v417 = vpop.f32.mrb[0].mxu0
  %418 = vmatprep.mubr.f32.mxu0 0.0
  %419 = vmatmul.mubr.f32.gmra.mrb[0].mxu0 %v156
  %v420 = vpop.f32.mrb[0].mxu0
  %v421 = vadd.f32 0.0, %v420
  %v422 = vpop.f32.mrb[0].mxu0
  %423 = vmatprep.mubr.f32.mxu0 0.0
  %424 = vmatmul.mubr.f32.gmra.mrb[0].mxu0 %v159
  %v425 = vpop.f32.mrb[0].mxu0
  %v426 = vadd.f32 0.0, %v425
  %v427 = vpop.f32.mrb[0].mxu0
  %428 = vmatprep.mubr.f32.mxu0 0.0
  %429 = vmatmul.mubr.f32.gmra.mrb[0].mxu0 %v162
  %v430 = vpop.f32.mrb[0].mxu0
  %v431 = vadd.f32 0.0, %v430
  %v432 = vpop.f32.mrb[0].mxu0
  %433 = vmatprep.mubr.f32.mxu0 0.0
  %434 = vmatmul.mubr.f32.gmra.mrb[0].mxu0 %v165
  %v435 = vpop.f32.mrb[0].mxu0
  %v436 = vadd.f32 0.0, %v435
  %v437 = vpop.f32.mrb[0].mxu0
  %438 = vmatprep.mubr.f32.mxu0 0.0
  %439 = vmatmul.mubr.f32.gmra.mrb[0].mxu0 %v168
  %v440 = vpop.f32.mrb[0].mxu0
  %v441 = vadd.f32 0.0, %v440
  %v442 = vpop.f32.mrb[0].mxu0
  %443 = vmatprep.mubr.f32.mxu0 0.0
  %444 = vmatmul.mubr.f32.gmra.mrb[0].mxu0 %v171
  %v445 = vpop.f32.mrb[0].mxu0
  %v446 = vadd.f32 0.0, %v445
  %v447 = vpop.f32.mrb[0].mxu0
  %448 = vmatprep.mubr.f32.mxu0 0.0
  %449 = vmatmul.mubr.f32.gmra.mrb[0].mxu0 %v174
  %v450 = vpop.f32.mrb[0].mxu0
  %v451 = vadd.f32 0.0, %v450
  %v452 = vpop.f32.mrb[0].mxu0
  %453 = vmatprep.mubr.f32.mxu0 0.0
  %454 = vmatmul.mubr.f32.gmra.mrb[0].mxu0 %v177
  %v455 = vpop.f32.mrb[0].mxu0
  %v456 = vadd.f32 0.0, %v455
  %v457 = vpop.f32.mrb[0].mxu0
  %458 = vmatprep.mubr.f32.mxu0 0.0
  %459 = vmatmul.mubr.f32.gmra.mrb[0].mxu0 %v180
  %v460 = vpop.f32.mrb[0].mxu0
  %v461 = vadd.f32 0.0, %v460
  %v462 = vpop.f32.mrb[0].mxu0
  %463 = vmatprep.mubr.f32.mxu0 0.0
  %464 = vmatmul.mubr.f32.gmra.mrb[0].mxu0 %v183
  %v465 = vpop.f32.mrb[0].mxu0
  %v466 = vadd.f32 0.0, %v465
  %v467 = vpop.f32.mrb[0].mxu0
  %468 = vmatprep.mubr.f32.mxu0 0.0
  %469 = vmatmul.mubr.f32.gmra.mrb[0].mxu0 %v186
  %v470 = vpop.f32.mrb[0].mxu0
  %v471 = vadd.f32 0.0, %v470
  %v472 = vpop.f32.mrb[0].mxu0
  %473 = vmatprep.mubr.f32.mxu0 0.0
  %474 = vmatmul.mubr.f32.gmra.mrb[0].mxu0 %v189
  %v475 = vpop.f32.mrb[0].mxu0
  %v476 = vadd.f32 0.0, %v475
  %v477 = vpop.f32.mrb[0].mxu0
  %478 = vmatprep.mubr.f32.mxu0 0.0
  %479 = vmatmul.mubr.f32.gmra.mrb[0].mxu0 %v192
  %v480 = vpop.f32.mrb[0].mxu0
  %v481 = vadd.f32 0.0, %v480
  %v482 = vpop.f32.mrb[0].mxu0
  %483 = vmatprep.mubr.f32.mxu0 0.0
  %484 = vmatmul.mubr.f32.gmra.mrb[0].mxu0 %v195
  %v485 = vpop.f32.mrb[0].mxu0
  %v486 = vadd.f32 0.0, %v485
  %v487 = vpop.f32.mrb[0].mxu0
  %488 = vmatprep.mubr.f32.mxu0 0.0
  %489 = vmatmul.mubr.f32.gmra.mrb[0].mxu0 %v198
  %v490 = vpop.f32.mrb[0].mxu0
  %v491 = vadd.f32 0.0, %v490
  %v492 = vpop.f32.mrb[0].mxu0
  %493 = vmatprep.mubr.f32.mxu0 0.0
  %494 = vmatmul.mubr.f32.gmra.mrb[0].mxu0 %v201
  %v495 = vpop.f32.mrb[0].mxu0
  %v496 = vadd.f32 0.0, %v495
  %v497 = vpop.f32.mrb[0].mxu0
  %498 = vmatprep.mubr.f32.mxu0 0.0
  %499 = vmatmul.mubr.f32.gmra.mrb[0].mxu0 %v204
  %v500 = vpop.f32.mrb[0].mxu0
  %v501 = vadd.f32 0.0, %v500
  %v502 = vpop.f32.mrb[0].mxu0
  %503 = vmatprep.mubr.f32.mxu0 0.0
  %504 = vmatmul.mubr.f32.gmra.mrb[0].mxu0 %v207
  %v505 = vpop.f32.mrb[0].mxu0
  %v506 = vadd.f32 0.0, %v505
  %v507 = vpop.f32.mrb[0].mxu0
  %508 = vmatprep.mubr.f32.mxu0 0.0
  %509 = vmatmul.mubr.f32.gmra.mrb[0].mxu0 %v210
  %v510 = vpop.f32.mrb[0].mxu0
  %v511 = vadd.f32 0.0, %v510
  %v512 = vpop.f32.mrb[0].mxu0
  %513 = vmatprep.mubr.f32.mxu0 0.0
  %514 = vmatmul.mubr.f32.gmra.mrb[0].mxu0 %v213
  %v515 = vpop.f32.mrb[0].mxu0
  %v516 = vadd.f32 0.0, %v515
  %v517 = vpop.f32.mrb[0].mxu0
  %518 = vmatprep.mubr.f32.mxu0 0.0
  %519 = vmatmul.mubr.f32.gmra.mrb[0].mxu0 %v216
  %v520 = vpop.f32.mrb[0].mxu0
  %v521 = vadd.f32 0.0, %v520
  %v522 = vpop.f32.mrb[0].mxu0
  %523 = vmatprep.mubr.f32.mxu0 0.0
  %524 = vmatmul.mubr.f32.gmra.mrb[0].mxu0 %v219
  %v525 = vpop.f32.mrb[0].mxu0
  %v526 = vadd.f32 0.0, %v525
  %v527 = vpop.f32.mrb[0].mxu0
  %528 = vmatprep.mubr.f32.mxu0 0.0
  %529 = vmatmul.mubr.f32.gmra.mrb[0].mxu0 %v222
  %v530 = vpop.f32.mrb[0].mxu0
  %v531 = vadd.f32 0.0, %v530
  %v532 = vpop.f32.mrb[0].mxu0
  %533 = vmatprep.mubr.f32.mxu0 0.0
  %534 = vmatmul.mubr.f32.gmra.mrb[0].mxu0 %v225
  %v535 = vpop.f32.mrb[0].mxu0
  %v536 = vadd.f32 0.0, %v535
  %v537 = vpop.f32.mrb[0].mxu0
  %538 = vmatprep.mubr.f32.mxu0 0.0
  %539 = vmatmul.mubr.f32.gmra.mrb[0].mxu0 %v228
  %v540 = vpop.f32.mrb[0].mxu0
  %v541 = vadd.f32 0.0, %v540
  %v542 = vpop.f32.mrb[0].mxu0
  %543 = vdwg.mxu0
  %v544 = vld [vmem:[%s1] sm:$0xff]
  %v545 = vld [vmem:[%s1 + $0x8] sm:$0xff]
  %v546 = vld [vmem:[%s1 + $0x10] sm:$0xff]
  %v547 = vld [vmem:[%s1 + $0x18] sm:$0xff]
  %v548 = vld [vmem:[%s1 + $0x20] sm:$0xff]
  %v549 = vld [vmem:[%s1 + $0x28] sm:$0xff]
  %v550 = vld [vmem:[%s1 + $0x30] sm:$0xff]
  %v551 = vld [vmem:[%s1 + $0x38] sm:$0xff]
  %v552 = vld [vmem:[%s1 + $0x40] sm:$0xff]
  %v553 = vld [vmem:[%s1 + $0x48] sm:$0xff]
  %v554 = vld [vmem:[%s1 + $0x50] sm:$0xff]
  %v555 = vld [vmem:[%s1 + $0x58] sm:$0xff]
  %v556 = vld [vmem:[%s1 + $0x60] sm:$0xff]
  %v557 = vld [vmem:[%s1 + $0x68] sm:$0xff]
  %v558 = vld [vmem:[%s1 + $0x70] sm:$0xff]
  %v559 = vld [vmem:[%s1 + $0x78] sm:$0xff]
  %v560 = vld [vmem:[%s1 + $0x80] sm:$0xff]
  %v561 = vld [vmem:[%s1 + $0x88] sm:$0xff]
  %v562 = vld [vmem:[%s1 + $0x90] sm:$0xff]
  %v563 = vld [vmem:[%s1 + $0x98] sm:$0xff]
  %v564 = vld [vmem:[%s1 + $0xa0] sm:$0xff]
  %v565 = vld [vmem:[%s1 + $0xa8] sm:$0xff]
  %v566 = vld [vmem:[%s1 + $0xb0] sm:$0xff]
  %v567 = vld [vmem:[%s1 + $0xb8] sm:$0xff]
  %v568 = vld [vmem:[%s1 + $0xc0] sm:$0xff]
  %v569 = vld [vmem:[%s1 + $0xc8] sm:$0xff]
  %v570 = vld [vmem:[%s1 + $0xd0] sm:$0xff]
  %v571 = vld [vmem:[%s1 + $0xd8] sm:$0xff]
  %v572 = vld [vmem:[%s1 + $0xe0] sm:$0xff]
  %v573 = vld [vmem:[%s1 + $0xe8] sm:$0xff]
  %v574 = vld [vmem:[%s1 + $0xf0] sm:$0xff]
  %v575 = vld [vmem:[%s1 + $0xf8] sm:$0xff]
  %v576 = vld [vmem:[%s1 + $0x100] sm:$0xff]
  %v577 = vld [vmem:[%s1 + $0x108] sm:$0xff]
  %v578 = vld [vmem:[%s1 + $0x110] sm:$0xff]
  %v579 = vld [vmem:[%s1 + $0x118] sm:$0xff]
  %v580 = vld [vmem:[%s1 + $0x120] sm:$0xff]
  %v581 = vld [vmem:[%s1 + $0x128] sm:$0xff]
  %v582 = vld [vmem:[%s1 + $0x130] sm:$0xff]
  %v583 = vld [vmem:[%s1 + $0x138] sm:$0xff]
  %v584 = vld [vmem:[%s1 + $0x140] sm:$0xff]
  %v585 = vld [vmem:[%s1 + $0x148] sm:$0xff]
  %v586 = vld [vmem:[%s1 + $0x150] sm:$0xff]
  %v587 = vld [vmem:[%s1 + $0x158] sm:$0xff]
  %v588 = vld [vmem:[%s1 + $0x160] sm:$0xff]
  %v589 = vld [vmem:[%s1 + $0x168] sm:$0xff]
  %v590 = vld [vmem:[%s1 + $0x170] sm:$0xff]
  %v591 = vld [vmem:[%s1 + $0x178] sm:$0xff]
  %v592 = vld [vmem:[%s1 + $0x180] sm:$0xff]
  %v594 = vsel %vm82, %v544, 0
  %v597 = vsel %vm82, %v545, 0
  %v600 = vsel %vm82, %v546, 0
  %v603 = vsel %vm82, %v547, 0
  %v606 = vsel %vm82, %v548, 0
  %v609 = vsel %vm82, %v549, 0
  %v612 = vsel %vm82, %v550, 0
  %v615 = vsel %vm82, %v551, 0
  %v618 = vsel %vm82, %v552, 0
  %v621 = vsel %vm82, %v553, 0
  %v624 = vsel %vm82, %v554, 0
  %v627 = vsel %vm82, %v555, 0
  %v630 = vsel %vm82, %v556, 0
  %v633 = vsel %vm82, %v557, 0
  %v636 = vsel %vm82, %v558, 0
  %v639 = vsel %vm82, %v559, 0
  %v642 = vsel %vm82, %v560, 0
  %v645 = vsel %vm82, %v561, 0
  %v648 = vsel %vm82, %v562, 0
  %v651 = vsel %vm82, %v563, 0
  %v654 = vsel %vm82, %v564, 0
  %v657 = vsel %vm82, %v565, 0
  %v660 = vsel %vm82, %v566, 0
  %v663 = vsel %vm82, %v567, 0
  %v666 = vsel %vm82, %v568, 0
  %v669 = vsel %vm82, %v569, 0
  %v672 = vsel %vm82, %v570, 0
  %v675 = vsel %vm82, %v571, 0
  %v678 = vsel %vm82, %v572, 0
  %v681 = vsel %vm82, %v573, 0
  %v684 = vsel %vm82, %v574, 0
  %v687 = vsel %vm82, %v575, 0
  %v690 = vsel %vm82, %v576, 0
  %v693 = vsel %vm82, %v577, 0
  %v696 = vsel %vm82, %v578, 0
  %v699 = vsel %vm82, %v579, 0
  %v702 = vsel %vm82, %v580, 0
  %v705 = vsel %vm82, %v581, 0
  %v708 = vsel %vm82, %v582, 0
  %v711 = vsel %vm82, %v583, 0
  %v714 = vsel %vm82, %v584, 0
  %v717 = vsel %vm82, %v585, 0
  %v720 = vsel %vm82, %v586, 0
  %v723 = vsel %vm82, %v587, 0
  %v726 = vsel %vm82, %v588, 0
  %v729 = vsel %vm82, %v589, 0
  %v732 = vsel %vm82, %v590, 0
  %v735 = vsel %vm82, %v591, 0
  %v738 = vsel %vm82, %v592, 0
  %740 = vmatprep.subr.mxu0 0.0
  %741 = vmatpush1.msra.mxu0 %v23
  %742 = vmatprep.subr.mxu0 0.0
  %743 = vmatpush1.msra.mxu0 %v24
  %744 = vmatprep.subr.mxu0 0.0
  %745 = vmatpush1.msra.mxu0 %v25
  %746 = vmatprep.subr.mxu0 0.0
  %747 = vmatpush1.msra.mxu0 %v26
  %748 = vmatprep.subr.mxu0 0.0
  %749 = vmatpush1.msra.mxu0 %v27
  %750 = vmatprep.subr.mxu0 0.0
  %751 = vmatpush1.msra.mxu0 %v28
  %752 = vmatprep.subr.mxu0 0.0
  %753 = vmatpush1.msra.mxu0 %v29
  %754 = vmatprep.subr.mxu0 0.0
  %755 = vmatpush1.msra.mxu0 %v30
  %756 = vmatprep.subr.mxu0 0.0
  %757 = vmatpush1.msra.mxu0 %v31
  %758 = vmatprep.subr.mxu0 0.0
  %759 = vmatpush1.msra.mxu0 %v232
  %760 = vmatprep.subr.mxu0 0.0
  %761 = vmatpush1.msra.mxu0 0.0
  %762 = vmatprep.subr.mxu0 0.0
  %763 = vmatpush1.msra.mxu0 0.0
  %764 = vmatprep.subr.mxu0 0.0
  %765 = vmatpush1.msra.mxu0 0.0
  %766 = vmatprep.subr.mxu0 0.0
  %767 = vmatpush1.msra.mxu0 0.0
  %768 = vmatprep.subr.mxu0 0.0
  %769 = vmatpush1.msra.mxu0 0.0
  %770 = vmatprep.subr.mxu0 0.0
  %771 = vmatpush1.msra.mxu0 0.0
  %772 = vmatprep.subr.mxu0 0.0
  %773 = vmatpush1.msra.mxu0 0.0
  %774 = vmatprep.subr.mxu0 0.0
  %775 = vmatpush1.msra.mxu0 0.0
  %776 = vmatprep.subr.mxu0 0.0
  %777 = vmatpush1.msra.mxu0 0.0
  %778 = vmatprep.subr.mxu0 0.0
  %779 = vmatpush1.msra.mxu0 0.0
  %780 = vmatprep.subr.mxu0 0.0
  %781 = vmatpush1.msra.mxu0 0.0
  %782 = vmatprep.subr.mxu0 0.0
  %783 = vmatpush1.msra.mxu0 0.0
  %784 = vmatprep.subr.mxu0 0.0
  %785 = vmatpush1.msra.mxu0 0.0
  %786 = vmatprep.subr.mxu0 0.0
  %787 = vmatpush1.msra.mxu0 0.0
  %788 = vmatprep.subr.mxu0 0.0
  %789 = vmatpush1.msra.mxu0 0.0
  %790 = vmatprep.subr.mxu0 0.0
  %791 = vmatpush1.msra.mxu0 0.0
  %792 = vmatprep.subr.mxu0 0.0
  %793 = vmatpush1.msra.mxu0 0.0
  %794 = vmatprep.subr.mxu0 0.0
  %795 = vmatpush1.msra.mxu0 0.0
  %796 = vmatprep.subr.mxu0 0.0
  %797 = vmatpush1.msra.mxu0 0.0
  %798 = vmatprep.subr.mxu0 0.0
  %799 = vmatpush1.msra.mxu0 0.0
  %800 = vmatprep.subr.mxu0 0.0
  %801 = vmatpush1.msra.mxu0 0.0
  %802 = vmatprep.subr.mxu0 0.0
  %803 = vmatpush1.msra.mxu0 0.0
  %804 = vmatprep.mubr.f32.mxu0 0.0
  %805 = vmatmul.mubr.f32.gmra.mrb[0].mxu0 %v594
  %v806 = vpop.f32.mrb[0].mxu0
  %v807 = vadd.f32 0.0, %v806
  %v808 = vpop.f32.mrb[0].mxu0
  %809 = vmatprep.mubr.f32.mxu0 0.0
  %810 = vmatmul.mubr.f32.gmra.mrb[0].mxu0 %v597
  %v811 = vpop.f32.mrb[0].mxu0
  %v812 = vadd.f32 0.0, %v811
  %v813 = vpop.f32.mrb[0].mxu0
  %814 = vmatprep.mubr.f32.mxu0 0.0
  %815 = vmatmul.mubr.f32.gmra.mrb[0].mxu0 %v600
  %v816 = vpop.f32.mrb[0].mxu0
  %v817 = vadd.f32 0.0, %v816
  %v818 = vpop.f32.mrb[0].mxu0
  %819 = vmatprep.mubr.f32.mxu0 0.0
  %820 = vmatmul.mubr.f32.gmra.mrb[0].mxu0 %v603
  %v821 = vpop.f32.mrb[0].mxu0
  %v822 = vadd.f32 0.0, %v821
  %v823 = vpop.f32.mrb[0].mxu0
  %824 = vmatprep.mubr.f32.mxu0 0.0
  %825 = vmatmul.mubr.f32.gmra.mrb[0].mxu0 %v606
  %v826 = vpop.f32.mrb[0].mxu0
  %v827 = vadd.f32 0.0, %v826
  %v828 = vpop.f32.mrb[0].mxu0
  %829 = vmatprep.mubr.f32.mxu0 0.0
  %830 = vmatmul.mubr.f32.gmra.mrb[0].mxu0 %v609
  %v831 = vpop.f32.mrb[0].mxu0
  %v832 = vadd.f32 0.0, %v831
  %v833 = vpop.f32.mrb[0].mxu0
  %834 = vmatprep.mubr.f32.mxu0 0.0
  %835 = vmatmul.mubr.f32.gmra.mrb[0].mxu0 %v612
  %v836 = vpop.f32.mrb[0].mxu0
  %v837 = vadd.f32 0.0, %v836
  %v838 = vpop.f32.mrb[0].mxu0
  %839 = vmatprep.mubr.f32.mxu0 0.0
  %840 = vmatmul.mubr.f32.gmra.mrb[0].mxu0 %v615
  %v841 = vpop.f32.mrb[0].mxu0
  %v842 = vadd.f32 0.0, %v841
  %v843 = vpop.f32.mrb[0].mxu0
  %844 = vmatprep.mubr.f32.mxu0 0.0
  %845 = vmatmul.mubr.f32.gmra.mrb[0].mxu0 %v618
  %v846 = vpop.f32.mrb[0].mxu0
  %v847 = vadd.f32 0.0, %v846
  %v848 = vpop.f32.mrb[0].mxu0
  %849 = vmatprep.mubr.f32.mxu0 0.0
  %850 = vmatmul.mubr.f32.gmra.mrb[0].mxu0 %v621
  %v851 = vpop.f32.mrb[0].mxu0
  %v852 = vadd.f32 0.0, %v851
  %v853 = vpop.f32.mrb[0].mxu0
  %854 = vmatprep.mubr.f32.mxu0 0.0
  %855 = vmatmul.mubr.f32.gmra.mrb[0].mxu0 %v624
  %v856 = vpop.f32.mrb[0].mxu0
  %v857 = vadd.f32 0.0, %v856
  %v858 = vpop.f32.mrb[0].mxu0
  %859 = vmatprep.mubr.f32.mxu0 0.0
  %860 = vmatmul.mubr.f32.gmra.mrb[0].mxu0 %v627
  %v861 = vpop.f32.mrb[0].mxu0
  %v862 = vadd.f32 0.0, %v861
  %v863 = vpop.f32.mrb[0].mxu0
  %864 = vmatprep.mubr.f32.mxu0 0.0
  %865 = vmatmul.mubr.f32.gmra.mrb[0].mxu0 %v630
  %v866 = vpop.f32.mrb[0].mxu0
  %v867 = vadd.f32 0.0, %v866
  %v868 = vpop.f32.mrb[0].mxu0
  %869 = vmatprep.mubr.f32.mxu0 0.0
  %870 = vmatmul.mubr.f32.gmra.mrb[0].mxu0 %v633
  %v871 = vpop.f32.mrb[0].mxu0
  %v872 = vadd.f32 0.0, %v871
  %v873 = vpop.f32.mrb[0].mxu0
  %874 = vmatprep.mubr.f32.mxu0 0.0
  %875 = vmatmul.mubr.f32.gmra.mrb[0].mxu0 %v636
  %v876 = vpop.f32.mrb[0].mxu0
  %v877 = vadd.f32 0.0, %v876
  %v878 = vpop.f32.mrb[0].mxu0
  %879 = vmatprep.mubr.f32.mxu0 0.0
  %880 = vmatmul.mubr.f32.gmra.mrb[0].mxu0 %v639
  %v881 = vpop.f32.mrb[0].mxu0
  %v882 = vadd.f32 0.0, %v881
  %v883 = vpop.f32.mrb[0].mxu0
  %884 = vmatprep.mubr.f32.mxu0 0.0
  %885 = vmatmul.mubr.f32.gmra.mrb[0].mxu0 %v642
  %v886 = vpop.f32.mrb[0].mxu0
  %v887 = vadd.f32 0.0, %v886
  %v888 = vpop.f32.mrb[0].mxu0
  %889 = vmatprep.mubr.f32.mxu0 0.0
  %890 = vmatmul.mubr.f32.gmra.mrb[0].mxu0 %v645
  %v891 = vpop.f32.mrb[0].mxu0
  %v892 = vadd.f32 0.0, %v891
  %v893 = vpop.f32.mrb[0].mxu0
  %894 = vmatprep.mubr.f32.mxu0 0.0
  %895 = vmatmul.mubr.f32.gmra.mrb[0].mxu0 %v648
  %v896 = vpop.f32.mrb[0].mxu0
  %v897 = vadd.f32 0.0, %v896
  %v898 = vpop.f32.mrb[0].mxu0
  %899 = vmatprep.mubr.f32.mxu0 0.0
  %900 = vmatmul.mubr.f32.gmra.mrb[0].mxu0 %v651
  %v901 = vpop.f32.mrb[0].mxu0
  %v902 = vadd.f32 0.0, %v901
  %v903 = vpop.f32.mrb[0].mxu0
  %904 = vmatprep.mubr.f32.mxu0 0.0
  %905 = vmatmul.mubr.f32.gmra.mrb[0].mxu0 %v654
  %v906 = vpop.f32.mrb[0].mxu0
  %v907 = vadd.f32 0.0, %v906
  %v908 = vpop.f32.mrb[0].mxu0
  %909 = vmatprep.mubr.f32.mxu0 0.0
  %910 = vmatmul.mubr.f32.gmra.mrb[0].mxu0 %v657
  %v911 = vpop.f32.mrb[0].mxu0
  %v912 = vadd.f32 0.0, %v911
  %v913 = vpop.f32.mrb[0].mxu0
  %914 = vmatprep.mubr.f32.mxu0 0.0
  %915 = vmatmul.mubr.f32.gmra.mrb[0].mxu0 %v660
  %v916 = vpop.f32.mrb[0].mxu0
  %v917 = vadd.f32 0.0, %v916
  %v918 = vpop.f32.mrb[0].mxu0
  %919 = vmatprep.mubr.f32.mxu0 0.0
  %920 = vmatmul.mubr.f32.gmra.mrb[0].mxu0 %v663
  %v921 = vpop.f32.mrb[0].mxu0
  %v922 = vadd.f32 0.0, %v921
  %v923 = vpop.f32.mrb[0].mxu0
  %924 = vmatprep.mubr.f32.mxu0 0.0
  %925 = vmatmul.mubr.f32.gmra.mrb[0].mxu0 %v666
  %v926 = vpop.f32.mrb[0].mxu0
  %v927 = vadd.f32 0.0, %v926
  %v928 = vpop.f32.mrb[0].mxu0
  %929 = vmatprep.mubr.f32.mxu0 0.0
  %930 = vmatmul.mubr.f32.gmra.mrb[0].mxu0 %v669
  %v931 = vpop.f32.mrb[0].mxu0
  %v932 = vadd.f32 0.0, %v931
  %v933 = vpop.f32.mrb[0].mxu0
  %934 = vmatprep.mubr.f32.mxu0 0.0
  %935 = vmatmul.mubr.f32.gmra.mrb[0].mxu0 %v672
  %v936 = vpop.f32.mrb[0].mxu0
  %v937 = vadd.f32 0.0, %v936
  %v938 = vpop.f32.mrb[0].mxu0
  %939 = vmatprep.mubr.f32.mxu0 0.0
  %940 = vmatmul.mubr.f32.gmra.mrb[0].mxu0 %v675
  %v941 = vpop.f32.mrb[0].mxu0
  %v942 = vadd.f32 0.0, %v941
  %v943 = vpop.f32.mrb[0].mxu0
  %944 = vmatprep.mubr.f32.mxu0 0.0
  %945 = vmatmul.mubr.f32.gmra.mrb[0].mxu0 %v678
  %v946 = vpop.f32.mrb[0].mxu0
  %v947 = vadd.f32 0.0, %v946
  %v948 = vpop.f32.mrb[0].mxu0
  %949 = vmatprep.mubr.f32.mxu0 0.0
  %950 = vmatmul.mubr.f32.gmra.mrb[0].mxu0 %v681
  %v951 = vpop.f32.mrb[0].mxu0
  %v952 = vadd.f32 0.0, %v951
  %v953 = vpop.f32.mrb[0].mxu0
  %954 = vmatprep.mubr.f32.mxu0 0.0
  %955 = vmatmul.mubr.f32.gmra.mrb[0].mxu0 %v684
  %v956 = vpop.f32.mrb[0].mxu0
  %v957 = vadd.f32 0.0, %v956
  %v958 = vpop.f32.mrb[0].mxu0
  %959 = vmatprep.mubr.f32.mxu0 0.0
  %960 = vmatmul.mubr.f32.gmra.mrb[0].mxu0 %v687
  %v961 = vpop.f32.mrb[0].mxu0
  %v962 = vadd.f32 0.0, %v961
  %v963 = vpop.f32.mrb[0].mxu0
  %964 = vmatprep.mubr.f32.mxu0 0.0
  %965 = vmatmul.mubr.f32.gmra.mrb[0].mxu0 %v690
  %v966 = vpop.f32.mrb[0].mxu0
  %v967 = vadd.f32 0.0, %v966
  %v968 = vpop.f32.mrb[0].mxu0
  %969 = vmatprep.mubr.f32.mxu0 0.0
  %970 = vmatmul.mubr.f32.gmra.mrb[0].mxu0 %v693
  %v971 = vpop.f32.mrb[0].mxu0
  %v972 = vadd.f32 0.0, %v971
  %v973 = vpop.f32.mrb[0].mxu0
  %974 = vmatprep.mubr.f32.mxu0 0.0
  %975 = vmatmul.mubr.f32.gmra.mrb[0].mxu0 %v696
  %v976 = vpop.f32.mrb[0].mxu0
  %v977 = vadd.f32 0.0, %v976
  %v978 = vpop.f32.mrb[0].mxu0
  %979 = vmatprep.mubr.f32.mxu0 0.0
  %980 = vmatmul.mubr.f32.gmra.mrb[0].mxu0 %v699
  %v981 = vpop.f32.mrb[0].mxu0
  %v982 = vadd.f32 0.0, %v981
  %v983 = vpop.f32.mrb[0].mxu0
  %984 = vmatprep.mubr.f32.mxu0 0.0
  %985 = vmatmul.mubr.f32.gmra.mrb[0].mxu0 %v702
  %v986 = vpop.f32.mrb[0].mxu0
  %v987 = vadd.f32 0.0, %v986
  %v988 = vpop.f32.mrb[0].mxu0
  %989 = vmatprep.mubr.f32.mxu0 0.0
  %990 = vmatmul.mubr.f32.gmra.mrb[0].mxu0 %v705
  %v991 = vpop.f32.mrb[0].mxu0
  %v992 = vadd.f32 0.0, %v991
  %v993 = vpop.f32.mrb[0].mxu0
  %994 = vmatprep.mubr.f32.mxu0 0.0
  %995 = vmatmul.mubr.f32.gmra.mrb[0].mxu0 %v708
  %v996 = vpop.f32.mrb[0].mxu0
  %v997 = vadd.f32 0.0, %v996
  %v998 = vpop.f32.mrb[0].mxu0
  %999 = vmatprep.mubr.f32.mxu0 0.0
  %1000 = vmatmul.mubr.f32.gmra.mrb[0].mxu0 %v711
  %v1001 = vpop.f32.mrb[0].mxu0
  %v1002 = vadd.f32 0.0, %v1001
  %v1003 = vpop.f32.mrb[0].mxu0
  %1004 = vmatprep.mubr.f32.mxu0 0.0
  %1005 = vmatmul.mubr.f32.gmra.mrb[0].mxu0 %v714
  %v1006 = vpop.f32.mrb[0].mxu0
  %v1007 = vadd.f32 0.0, %v1006
  %v1008 = vpop.f32.mrb[0].mxu0
  %1009 = vmatprep.mubr.f32.mxu0 0.0
  %1010 = vmatmul.mubr.f32.gmra.mrb[0].mxu0 %v717
  %v1011 = vpop.f32.mrb[0].mxu0
  %v1012 = vadd.f32 0.0, %v1011
  %v1013 = vpop.f32.mrb[0].mxu0
  %1014 = vmatprep.mubr.f32.mxu0 0.0
  %1015 = vmatmul.mubr.f32.gmra.mrb[0].mxu0 %v720
  %v1016 = vpop.f32.mrb[0].mxu0
  %v1017 = vadd.f32 0.0, %v1016
  %v1018 = vpop.f32.mrb[0].mxu0
  %1019 = vmatprep.mubr.f32.mxu0 0.0
  %1020 = vmatmul.mubr.f32.gmra.mrb[0].mxu0 %v723
  %v1021 = vpop.f32.mrb[0].mxu0
  %v1022 = vadd.f32 0.0, %v1021
  %v1023 = vpop.f32.mrb[0].mxu0
  %1024 = vmatprep.mubr.f32.mxu0 0.0
  %1025 = vmatmul.mubr.f32.gmra.mrb[0].mxu0 %v726
  %v1026 = vpop.f32.mrb[0].mxu0
  %v1027 = vadd.f32 0.0, %v1026
  %v1028 = vpop.f32.mrb[0].mxu0
  %1029 = vmatprep.mubr.f32.mxu0 0.0
  %1030 = vmatmul.mubr.f32.gmra.mrb[0].mxu0 %v729
  %v1031 = vpop.f32.mrb[0].mxu0
  %v1032 = vadd.f32 0.0, %v1031
  %v1033 = vpop.f32.mrb[0].mxu0
  %1034 = vmatprep.mubr.f32.mxu0 0.0
  %1035 = vmatmul.mubr.f32.gmra.mrb[0].mxu0 %v732
  %v1036 = vpop.f32.mrb[0].mxu0
  %v1037 = vadd.f32 0.0, %v1036
  %v1038 = vpop.f32.mrb[0].mxu0
  %1039 = vmatprep.mubr.f32.mxu0 0.0
  %1040 = vmatmul.mubr.f32.gmra.mrb[0].mxu0 %v735
  %v1041 = vpop.f32.mrb[0].mxu0
  %v1042 = vadd.f32 0.0, %v1041
  %v1043 = vpop.f32.mrb[0].mxu0
  %1044 = vmatprep.mubr.f32.mxu0 0.0
  %1045 = vmatmul.mubr.f32.gmra.mrb[0].mxu0 %v738
  %v1046 = vpop.f32.mrb[0].mxu0
  %v1047 = vadd.f32 0.0, %v1046
  %v1048 = vpop.f32.mrb[0].mxu0
  %1049 = vdwg.mxu0
  %v1050 = vld [vmem:[%s2] sm:$0xff]
  %v1051 = vld [vmem:[%s2 + $0x8] sm:$0xff]
  %v1052 = vld [vmem:[%s2 + $0x10] sm:$0xff]
  %v1053 = vld [vmem:[%s2 + $0x18] sm:$0xff]
  %v1054 = vld [vmem:[%s2 + $0x20] sm:$0xff]
  %v1055 = vld [vmem:[%s2 + $0x28] sm:$0xff]
  %v1056 = vld [vmem:[%s2 + $0x30] sm:$0xff]
  %v1057 = vld [vmem:[%s2 + $0x38] sm:$0xff]
  %v1058 = vld [vmem:[%s2 + $0x40] sm:$0xff]
  %v1059 = vld [vmem:[%s2 + $0x48] sm:$0xff]
  %v1060 = vld [vmem:[%s2 + $0x50] sm:$0xff]
  %v1061 = vld [vmem:[%s2 + $0x58] sm:$0xff]
  %v1062 = vld [vmem:[%s2 + $0x60] sm:$0xff]
  %v1063 = vld [vmem:[%s2 + $0x68] sm:$0xff]
  %v1064 = vld [vmem:[%s2 + $0x70] sm:$0xff]
  %v1065 = vld [vmem:[%s2 + $0x78] sm:$0xff]
  %v1066 = vld [vmem:[%s2 + $0x80] sm:$0xff]
  %v1067 = vld [vmem:[%s2 + $0x88] sm:$0xff]
  %v1068 = vld [vmem:[%s2 + $0x90] sm:$0xff]
  %v1069 = vld [vmem:[%s2 + $0x98] sm:$0xff]
  %v1070 = vld [vmem:[%s2 + $0xa0] sm:$0xff]
  %v1071 = vld [vmem:[%s2 + $0xa8] sm:$0xff]
  %v1072 = vld [vmem:[%s2 + $0xb0] sm:$0xff]
  %v1073 = vld [vmem:[%s2 + $0xb8] sm:$0xff]
  %v1074 = vld [vmem:[%s2 + $0xc0] sm:$0xff]
  %v1075 = vld [vmem:[%s2 + $0xc8] sm:$0xff]
  %v1076 = vld [vmem:[%s2 + $0xd0] sm:$0xff]
  %v1077 = vld [vmem:[%s2 + $0xd8] sm:$0xff]
  %v1078 = vld [vmem:[%s2 + $0xe0] sm:$0xff]
  %v1079 = vld [vmem:[%s2 + $0xe8] sm:$0xff]
  %v1080 = vld [vmem:[%s2 + $0xf0] sm:$0xff]
  %v1081 = vld [vmem:[%s2 + $0xf8] sm:$0xff]
  %v1082 = vld [vmem:[%s2 + $0x100] sm:$0xff]
  %v1083 = vld [vmem:[%s2 + $0x108] sm:$0xff]
  %v1084 = vld [vmem:[%s2 + $0x110] sm:$0xff]
  %v1085 = vld [vmem:[%s2 + $0x118] sm:$0xff]
  %v1086 = vld [vmem:[%s2 + $0x120] sm:$0xff]
  %v1087 = vld [vmem:[%s2 + $0x128] sm:$0xff]
  %v1088 = vld [vmem:[%s2 + $0x130] sm:$0xff]
  %v1089 = vld [vmem:[%s2 + $0x138] sm:$0xff]
  %v1090 = vld [vmem:[%s2 + $0x140] sm:$0xff]
  %v1091 = vld [vmem:[%s2 + $0x148] sm:$0xff]
  %v1092 = vld [vmem:[%s2 + $0x150] sm:$0xff]
  %v1093 = vld [vmem:[%s2 + $0x158] sm:$0xff]
  %v1094 = vld [vmem:[%s2 + $0x160] sm:$0xff]
  %v1095 = vld [vmem:[%s2 + $0x168] sm:$0xff]
  %v1096 = vld [vmem:[%s2 + $0x170] sm:$0xff]
  %v1097 = vld [vmem:[%s2 + $0x178] sm:$0xff]
  %v1098 = vld [vmem:[%s2 + $0x180] sm:$0xff]
  %v1100 = vsel %vm82, %v1050, 0
  %v1103 = vsel %vm82, %v1051, 0
  %v1106 = vsel %vm82, %v1052, 0
  %v1109 = vsel %vm82, %v1053, 0
  %v1112 = vsel %vm82, %v1054, 0
  %v1115 = vsel %vm82, %v1055, 0
  %v1118 = vsel %vm82, %v1056, 0
  %v1121 = vsel %vm82, %v1057, 0
  %v1124 = vsel %vm82, %v1058, 0
  %v1127 = vsel %vm82, %v1059, 0
  %v1130 = vsel %vm82, %v1060, 0
  %v1133 = vsel %vm82, %v1061, 0
  %v1136 = vsel %vm82, %v1062, 0
  %v1139 = vsel %vm82, %v1063, 0
  %v1142 = vsel %vm82, %v1064, 0
  %v1145 = vsel %vm82, %v1065, 0
  %v1148 = vsel %vm82, %v1066, 0
  %v1151 = vsel %vm82, %v1067, 0
  %v1154 = vsel %vm82, %v1068, 0
  %v1157 = vsel %vm82, %v1069, 0
  %v1160 = vsel %vm82, %v1070, 0
  %v1163 = vsel %vm82, %v1071, 0
  %v1166 = vsel %vm82, %v1072, 0
  %v1169 = vsel %vm82, %v1073, 0
  %v1172 = vsel %vm82, %v1074, 0
  %v1175 = vsel %vm82, %v1075, 0
  %v1178 = vsel %vm82, %v1076, 0
  %v1181 = vsel %vm82, %v1077, 0
  %v1184 = vsel %vm82, %v1078, 0
  %v1187 = vsel %vm82, %v1079, 0
  %v1190 = vsel %vm82, %v1080, 0
  %v1193 = vsel %vm82, %v1081, 0
  %v1196 = vsel %vm82, %v1082, 0
  %v1199 = vsel %vm82, %v1083, 0
  %v1202 = vsel %vm82, %v1084, 0
  %v1205 = vsel %vm82, %v1085, 0
  %v1208 = vsel %vm82, %v1086, 0
  %v1211 = vsel %vm82, %v1087, 0
  %v1214 = vsel %vm82, %v1088, 0
  %v1217 = vsel %vm82, %v1089, 0
  %v1220 = vsel %vm82, %v1090, 0
  %v1223 = vsel %vm82, %v1091, 0
  %v1226 = vsel %vm82, %v1092, 0
  %v1229 = vsel %vm82, %v1093, 0
  %v1232 = vsel %vm82, %v1094, 0
  %v1235 = vsel %vm82, %v1095, 0
  %v1238 = vsel %vm82, %v1096, 0
  %v1241 = vsel %vm82, %v1097, 0
  %v1244 = vsel %vm82, %v1098, 0
  %1246 = vmatprep.subr.mxu0 0.0
  %1247 = vmatpush1.msra.mxu0 %v23
  %1248 = vmatprep.subr.mxu0 0.0
  %1249 = vmatpush1.msra.mxu0 %v24
  %1250 = vmatprep.subr.mxu0 0.0
  %1251 = vmatpush1.msra.mxu0 %v25
  %1252 = vmatprep.subr.mxu0 0.0
  %1253 = vmatpush1.msra.mxu0 %v26
  %1254 = vmatprep.subr.mxu0 0.0
  %1255 = vmatpush1.msra.mxu0 %v27
  %1256 = vmatprep.subr.mxu0 0.0
  %1257 = vmatpush1.msra.mxu0 %v28
  %1258 = vmatprep.subr.mxu0 0.0
  %1259 = vmatpush1.msra.mxu0 %v29
  %1260 = vmatprep.subr.mxu0 0.0
  %1261 = vmatpush1.msra.mxu0 %v30
  %1262 = vmatprep.subr.mxu0 0.0
  %1263 = vmatpush1.msra.mxu0 %v31
  %1264 = vmatprep.subr.mxu0 0.0
  %1265 = vmatpush1.msra.mxu0 %v232
  %1266 = vmatprep.subr.mxu0 0.0
  %1267 = vmatpush1.msra.mxu0 0.0
  %1268 = vmatprep.subr.mxu0 0.0
  %1269 = vmatpush1.msra.mxu0 0.0
  %1270 = vmatprep.subr.mxu0 0.0
  %1271 = vmatpush1.msra.mxu0 0.0
  %1272 = vmatprep.subr.mxu0 0.0
  %1273 = vmatpush1.msra.mxu0 0.0
  %1274 = vmatprep.subr.mxu0 0.0
  %1275 = vmatpush1.msra.mxu0 0.0
  %1276 = vmatprep.subr.mxu0 0.0
  %1277 = vmatpush1.msra.mxu0 0.0
  %1278 = vmatprep.subr.mxu0 0.0
  %1279 = vmatpush1.msra.mxu0 0.0
  %1280 = vmatprep.subr.mxu0 0.0
  %1281 = vmatpush1.msra.mxu0 0.0
  %1282 = vmatprep.subr.mxu0 0.0
  %1283 = vmatpush1.msra.mxu0 0.0
  %1284 = vmatprep.subr.mxu0 0.0
  %1285 = vmatpush1.msra.mxu0 0.0
  %1286 = vmatprep.subr.mxu0 0.0
  %1287 = vmatpush1.msra.mxu0 0.0
  %1288 = vmatprep.subr.mxu0 0.0
  %1289 = vmatpush1.msra.mxu0 0.0
  %1290 = vmatprep.subr.mxu0 0.0
  %1291 = vmatpush1.msra.mxu0 0.0
  %1292 = vmatprep.subr.mxu0 0.0
  %1293 = vmatpush1.msra.mxu0 0.0
  %1294 = vmatprep.subr.mxu0 0.0
  %1295 = vmatpush1.msra.mxu0 0.0
  %1296 = vmatprep.subr.mxu0 0.0
  %1297 = vmatpush1.msra.mxu0 0.0
  %1298 = vmatprep.subr.mxu0 0.0
  %1299 = vmatpush1.msra.mxu0 0.0
  %1300 = vmatprep.subr.mxu0 0.0
  %1301 = vmatpush1.msra.mxu0 0.0
  %1302 = vmatprep.subr.mxu0 0.0
  %1303 = vmatpush1.msra.mxu0 0.0
  %1304 = vmatprep.subr.mxu0 0.0
  %1305 = vmatpush1.msra.mxu0 0.0
  %1306 = vmatprep.subr.mxu0 0.0
  %1307 = vmatpush1.msra.mxu0 0.0
  %1308 = vmatprep.subr.mxu0 0.0
  %1309 = vmatpush1.msra.mxu0 0.0
  %1310 = vmatprep.mubr.f32.mxu0 0.0
  %1311 = vmatmul.mubr.f32.gmra.mrb[0].mxu0 %v1100
  %v1312 = vpop.f32.mrb[0].mxu0
  %v1313 = vadd.f32 0.0, %v1312
  %v1314 = vpop.f32.mrb[0].mxu0
  %1315 = vmatprep.mubr.f32.mxu0 0.0
  %1316 = vmatmul.mubr.f32.gmra.mrb[0].mxu0 %v1103
  %v1317 = vpop.f32.mrb[0].mxu0
  %v1318 = vadd.f32 0.0, %v1317
  %v1319 = vpop.f32.mrb[0].mxu0
  %1320 = vmatprep.mubr.f32.mxu0 0.0
  %1321 = vmatmul.mubr.f32.gmra.mrb[0].mxu0 %v1106
  %v1322 = vpop.f32.mrb[0].mxu0
  %v1323 = vadd.f32 0.0, %v1322
  %v1324 = vpop.f32.mrb[0].mxu0
  %1325 = vmatprep.mubr.f32.mxu0 0.0
  %1326 = vmatmul.mubr.f32.gmra.mrb[0].mxu0 %v1109
  %v1327 = vpop.f32.mrb[0].mxu0
  %v1328 = vadd.f32 0.0, %v1327
  %v1329 = vpop.f32.mrb[0].mxu0
  %1330 = vmatprep.mubr.f32.mxu0 0.0
  %1331 = vmatmul.mubr.f32.gmra.mrb[0].mxu0 %v1112
  %v1332 = vpop.f32.mrb[0].mxu0
  %v1333 = vadd.f32 0.0, %v1332
  %v1334 = vpop.f32.mrb[0].mxu0
  %1335 = vmatprep.mubr.f32.mxu0 0.0
  %1336 = vmatmul.mubr.f32.gmra.mrb[0].mxu0 %v1115
  %v1337 = vpop.f32.mrb[0].mxu0
  %v1338 = vadd.f32 0.0, %v1337
  %v1339 = vpop.f32.mrb[0].mxu0
  %1340 = vmatprep.mubr.f32.mxu0 0.0
  %1341 = vmatmul.mubr.f32.gmra.mrb[0].mxu0 %v1118
  %v1342 = vpop.f32.mrb[0].mxu0
  %v1343 = vadd.f32 0.0, %v1342
  %v1344 = vpop.f32.mrb[0].mxu0
  %1345 = vmatprep.mubr.f32.mxu0 0.0
  %1346 = vmatmul.mubr.f32.gmra.mrb[0].mxu0 %v1121
  %v1347 = vpop.f32.mrb[0].mxu0
  %v1348 = vadd.f32 0.0, %v1347
  %v1349 = vpop.f32.mrb[0].mxu0
  %1350 = vmatprep.mubr.f32.mxu0 0.0
  %1351 = vmatmul.mubr.f32.gmra.mrb[0].mxu0 %v1124
  %v1352 = vpop.f32.mrb[0].mxu0
  %v1353 = vadd.f32 0.0, %v1352
  %v1354 = vpop.f32.mrb[0].mxu0
  %1355 = vmatprep.mubr.f32.mxu0 0.0
  %1356 = vmatmul.mubr.f32.gmra.mrb[0].mxu0 %v1127
  %v1357 = vpop.f32.mrb[0].mxu0
  %v1358 = vadd.f32 0.0, %v1357
  %v1359 = vpop.f32.mrb[0].mxu0
  %1360 = vmatprep.mubr.f32.mxu0 0.0
  %1361 = vmatmul.mubr.f32.gmra.mrb[0].mxu0 %v1130
  %v1362 = vpop.f32.mrb[0].mxu0
  %v1363 = vadd.f32 0.0, %v1362
  %v1364 = vpop.f32.mrb[0].mxu0
  %1365 = vmatprep.mubr.f32.mxu0 0.0
  %1366 = vmatmul.mubr.f32.gmra.mrb[0].mxu0 %v1133
  %v1367 = vpop.f32.mrb[0].mxu0
  %v1368 = vadd.f32 0.0, %v1367
  %v1369 = vpop.f32.mrb[0].mxu0
  %1370 = vmatprep.mubr.f32.mxu0 0.0
  %1371 = vmatmul.mubr.f32.gmra.mrb[0].mxu0 %v1136
  %v1372 = vpop.f32.mrb[0].mxu0
  %v1373 = vadd.f32 0.0, %v1372
  %v1374 = vpop.f32.mrb[0].mxu0
  %1375 = vmatprep.mubr.f32.mxu0 0.0
  %1376 = vmatmul.mubr.f32.gmra.mrb[0].mxu0 %v1139
  %v1377 = vpop.f32.mrb[0].mxu0
  %v1378 = vadd.f32 0.0, %v1377
  %v1379 = vpop.f32.mrb[0].mxu0
  %1380 = vmatprep.mubr.f32.mxu0 0.0
  %1381 = vmatmul.mubr.f32.gmra.mrb[0].mxu0 %v1142
  %v1382 = vpop.f32.mrb[0].mxu0
  %v1383 = vadd.f32 0.0, %v1382
  %v1384 = vpop.f32.mrb[0].mxu0
  %1385 = vmatprep.mubr.f32.mxu0 0.0
  %1386 = vmatmul.mubr.f32.gmra.mrb[0].mxu0 %v1145
  %v1387 = vpop.f32.mrb[0].mxu0
  %v1388 = vadd.f32 0.0, %v1387
  %v1389 = vpop.f32.mrb[0].mxu0
  %1390 = vmatprep.mubr.f32.mxu0 0.0
  %1391 = vmatmul.mubr.f32.gmra.mrb[0].mxu0 %v1148
  %v1392 = vpop.f32.mrb[0].mxu0
  %v1393 = vadd.f32 0.0, %v1392
  %v1394 = vpop.f32.mrb[0].mxu0
  %1395 = vmatprep.mubr.f32.mxu0 0.0
  %1396 = vmatmul.mubr.f32.gmra.mrb[0].mxu0 %v1151
  %v1397 = vpop.f32.mrb[0].mxu0
  %v1398 = vadd.f32 0.0, %v1397
  %v1399 = vpop.f32.mrb[0].mxu0
  %1400 = vmatprep.mubr.f32.mxu0 0.0
  %1401 = vmatmul.mubr.f32.gmra.mrb[0].mxu0 %v1154
  %v1402 = vpop.f32.mrb[0].mxu0
  %v1403 = vadd.f32 0.0, %v1402
  %v1404 = vpop.f32.mrb[0].mxu0
  %1405 = vmatprep.mubr.f32.mxu0 0.0
  %1406 = vmatmul.mubr.f32.gmra.mrb[0].mxu0 %v1157
  %v1407 = vpop.f32.mrb[0].mxu0
  %v1408 = vadd.f32 0.0, %v1407
  %v1409 = vpop.f32.mrb[0].mxu0
  %1410 = vmatprep.mubr.f32.mxu0 0.0
  %1411 = vmatmul.mubr.f32.gmra.mrb[0].mxu0 %v1160
  %v1412 = vpop.f32.mrb[0].mxu0
  %v1413 = vadd.f32 0.0, %v1412
  %v1414 = vpop.f32.mrb[0].mxu0
  %1415 = vmatprep.mubr.f32.mxu0 0.0
  %1416 = vmatmul.mubr.f32.gmra.mrb[0].mxu0 %v1163
  %v1417 = vpop.f32.mrb[0].mxu0
  %v1418 = vadd.f32 0.0, %v1417
  %v1419 = vpop.f32.mrb[0].mxu0
  %1420 = vmatprep.mubr.f32.mxu0 0.0
  %1421 = vmatmul.mubr.f32.gmra.mrb[0].mxu0 %v1166
  %v1422 = vpop.f32.mrb[0].mxu0
  %v1423 = vadd.f32 0.0, %v1422
  %v1424 = vpop.f32.mrb[0].mxu0
  %1425 = vmatprep.mubr.f32.mxu0 0.0
  %1426 = vmatmul.mubr.f32.gmra.mrb[0].mxu0 %v1169
  %v1427 = vpop.f32.mrb[0].mxu0
  %v1428 = vadd.f32 0.0, %v1427
  %v1429 = vpop.f32.mrb[0].mxu0
  %1430 = vmatprep.mubr.f32.mxu0 0.0
  %1431 = vmatmul.mubr.f32.gmra.mrb[0].mxu0 %v1172
  %v1432 = vpop.f32.mrb[0].mxu0
  %v1433 = vadd.f32 0.0, %v1432
  %v1434 = vpop.f32.mrb[0].mxu0
  %1435 = vmatprep.mubr.f32.mxu0 0.0
  %1436 = vmatmul.mubr.f32.gmra.mrb[0].mxu0 %v1175
  %v1437 = vpop.f32.mrb[0].mxu0
  %v1438 = vadd.f32 0.0, %v1437
  %v1439 = vpop.f32.mrb[0].mxu0
  %1440 = vmatprep.mubr.f32.mxu0 0.0
  %1441 = vmatmul.mubr.f32.gmra.mrb[0].mxu0 %v1178
  %v1442 = vpop.f32.mrb[0].mxu0
  %v1443 = vadd.f32 0.0, %v1442
  %v1444 = vpop.f32.mrb[0].mxu0
  %1445 = vmatprep.mubr.f32.mxu0 0.0
  %1446 = vmatmul.mubr.f32.gmra.mrb[0].mxu0 %v1181
  %v1447 = vpop.f32.mrb[0].mxu0
  %v1448 = vadd.f32 0.0, %v1447
  %v1449 = vpop.f32.mrb[0].mxu0
  %1450 = vmatprep.mubr.f32.mxu0 0.0
  %1451 = vmatmul.mubr.f32.gmra.mrb[0].mxu0 %v1184
  %v1452 = vpop.f32.mrb[0].mxu0
  %v1453 = vadd.f32 0.0, %v1452
  %v1454 = vpop.f32.mrb[0].mxu0
  %1455 = vmatprep.mubr.f32.mxu0 0.0
  %1456 = vmatmul.mubr.f32.gmra.mrb[0].mxu0 %v1187
  %v1457 = vpop.f32.mrb[0].mxu0
  %v1458 = vadd.f32 0.0, %v1457
  %v1459 = vpop.f32.mrb[0].mxu0
  %1460 = vmatprep.mubr.f32.mxu0 0.0
  %1461 = vmatmul.mubr.f32.gmra.mrb[0].mxu0 %v1190
  %v1462 = vpop.f32.mrb[0].mxu0
  %v1463 = vadd.f32 0.0, %v1462
  %v1464 = vpop.f32.mrb[0].mxu0
  %1465 = vmatprep.mubr.f32.mxu0 0.0
  %1466 = vmatmul.mubr.f32.gmra.mrb[0].mxu0 %v1193
  %v1467 = vpop.f32.mrb[0].mxu0
  %v1468 = vadd.f32 0.0, %v1467
  %v1469 = vpop.f32.mrb[0].mxu0
  %1470 = vmatprep.mubr.f32.mxu0 0.0
  %1471 = vmatmul.mubr.f32.gmra.mrb[0].mxu0 %v1196
  %v1472 = vpop.f32.mrb[0].mxu0
  %v1473 = vadd.f32 0.0, %v1472
  %v1474 = vpop.f32.mrb[0].mxu0
  %1475 = vmatprep.mubr.f32.mxu0 0.0
  %1476 = vmatmul.mubr.f32.gmra.mrb[0].mxu0 %v1199
  %v1477 = vpop.f32.mrb[0].mxu0
  %v1478 = vadd.f32 0.0, %v1477
  %v1479 = vpop.f32.mrb[0].mxu0
  %1480 = vmatprep.mubr.f32.mxu0 0.0
  %1481 = vmatmul.mubr.f32.gmra.mrb[0].mxu0 %v1202
  %v1482 = vpop.f32.mrb[0].mxu0
  %v1483 = vadd.f32 0.0, %v1482
  %v1484 = vpop.f32.mrb[0].mxu0
  %1485 = vmatprep.mubr.f32.mxu0 0.0
  %1486 = vmatmul.mubr.f32.gmra.mrb[0].mxu0 %v1205
  %v1487 = vpop.f32.mrb[0].mxu0
  %v1488 = vadd.f32 0.0, %v1487
  %v1489 = vpop.f32.mrb[0].mxu0
  %1490 = vmatprep.mubr.f32.mxu0 0.0
  %1491 = vmatmul.mubr.f32.gmra.mrb[0].mxu0 %v1208
  %v1492 = vpop.f32.mrb[0].mxu0
  %v1493 = vadd.f32 0.0, %v1492
  %v1494 = vpop.f32.mrb[0].mxu0
  %1495 = vmatprep.mubr.f32.mxu0 0.0
  %1496 = vmatmul.mubr.f32.gmra.mrb[0].mxu0 %v1211
  %v1497 = vpop.f32.mrb[0].mxu0
  %v1498 = vadd.f32 0.0, %v1497
  %v1499 = vpop.f32.mrb[0].mxu0
  %1500 = vmatprep.mubr.f32.mxu0 0.0
  %1501 = vmatmul.mubr.f32.gmra.mrb[0].mxu0 %v1214
  %v1502 = vpop.f32.mrb[0].mxu0
  %v1503 = vadd.f32 0.0, %v1502
  %v1504 = vpop.f32.mrb[0].mxu0
  %1505 = vmatprep.mubr.f32.mxu0 0.0
  %1506 = vmatmul.mubr.f32.gmra.mrb[0].mxu0 %v1217
  %v1507 = vpop.f32.mrb[0].mxu0
  %v1508 = vadd.f32 0.0, %v1507
  %v1509 = vpop.f32.mrb[0].mxu0
  %1510 = vmatprep.mubr.f32.mxu0 0.0
  %1511 = vmatmul.mubr.f32.gmra.mrb[0].mxu0 %v1220
  %v1512 = vpop.f32.mrb[0].mxu0
  %v1513 = vadd.f32 0.0, %v1512
  %v1514 = vpop.f32.mrb[0].mxu0
  %1515 = vmatprep.mubr.f32.mxu0 0.0
  %1516 = vmatmul.mubr.f32.gmra.mrb[0].mxu0 %v1223
  %v1517 = vpop.f32.mrb[0].mxu0
  %v1518 = vadd.f32 0.0, %v1517
  %v1519 = vpop.f32.mrb[0].mxu0
  %1520 = vmatprep.mubr.f32.mxu0 0.0
  %1521 = vmatmul.mubr.f32.gmra.mrb[0].mxu0 %v1226
  %v1522 = vpop.f32.mrb[0].mxu0
  %v1523 = vadd.f32 0.0, %v1522
  %v1524 = vpop.f32.mrb[0].mxu0
  %1525 = vmatprep.mubr.f32.mxu0 0.0
  %1526 = vmatmul.mubr.f32.gmra.mrb[0].mxu0 %v1229
  %v1527 = vpop.f32.mrb[0].mxu0
  %v1528 = vadd.f32 0.0, %v1527
  %v1529 = vpop.f32.mrb[0].mxu0
  %1530 = vmatprep.mubr.f32.mxu0 0.0
  %1531 = vmatmul.mubr.f32.gmra.mrb[0].mxu0 %v1232
  %v1532 = vpop.f32.mrb[0].mxu0
  %v1533 = vadd.f32 0.0, %v1532
  %v1534 = vpop.f32.mrb[0].mxu0
  %1535 = vmatprep.mubr.f32.mxu0 0.0
  %1536 = vmatmul.mubr.f32.gmra.mrb[0].mxu0 %v1235
  %v1537 = vpop.f32.mrb[0].mxu0
  %v1538 = vadd.f32 0.0, %v1537
  %v1539 = vpop.f32.mrb[0].mxu0
  %1540 = vmatprep.mubr.f32.mxu0 0.0
  %1541 = vmatmul.mubr.f32.gmra.mrb[0].mxu0 %v1238
  %v1542 = vpop.f32.mrb[0].mxu0
  %v1543 = vadd.f32 0.0, %v1542
  %v1544 = vpop.f32.mrb[0].mxu0
  %1545 = vmatprep.mubr.f32.mxu0 0.0
  %1546 = vmatmul.mubr.f32.gmra.mrb[0].mxu0 %v1241
  %v1547 = vpop.f32.mrb[0].mxu0
  %v1548 = vadd.f32 0.0, %v1547
  %v1549 = vpop.f32.mrb[0].mxu0
  %1550 = vmatprep.mubr.f32.mxu0 0.0
  %1551 = vmatmul.mubr.f32.gmra.mrb[0].mxu0 %v1244
  %v1552 = vpop.f32.mrb[0].mxu0
  %v1553 = vadd.f32 0.0, %v1552
  %v1554 = vpop.f32.mrb[0].mxu0
  %1555 = vdwg.mxu0
  %v1556 = vld [vmem:[%s3] sm:$0xff]
  %v1557 = vld [vmem:[%s3 + $0x8] sm:$0xff]
  %v1558 = vld [vmem:[%s3 + $0x10] sm:$0xff]
  %v1559 = vld [vmem:[%s3 + $0x18] sm:$0xff]
  %v1560 = vld [vmem:[%s3 + $0x20] sm:$0xff]
  %v1561 = vld [vmem:[%s3 + $0x28] sm:$0xff]
  %v1562 = vld [vmem:[%s3 + $0x30] sm:$0xff]
  %v1563 = vld [vmem:[%s3 + $0x38] sm:$0xff]
  %v1564 = vld [vmem:[%s3 + $0x40] sm:$0xff]
  %v1565 = vld [vmem:[%s3 + $0x48] sm:$0xff]
  %v1566 = vld [vmem:[%s3 + $0x50] sm:$0xff]
  %v1567 = vld [vmem:[%s3 + $0x58] sm:$0xff]
  %v1568 = vld [vmem:[%s3 + $0x60] sm:$0xff]
  %v1569 = vld [vmem:[%s3 + $0x68] sm:$0xff]
  %v1570 = vld [vmem:[%s3 + $0x70] sm:$0xff]
  %v1571 = vld [vmem:[%s3 + $0x78] sm:$0xff]
  %v1572 = vld [vmem:[%s3 + $0x80] sm:$0xff]
  %v1573 = vld [vmem:[%s3 + $0x88] sm:$0xff]
  %v1574 = vld [vmem:[%s3 + $0x90] sm:$0xff]
  %v1575 = vld [vmem:[%s3 + $0x98] sm:$0xff]
  %v1576 = vld [vmem:[%s3 + $0xa0] sm:$0xff]
  %v1577 = vld [vmem:[%s3 + $0xa8] sm:$0xff]
  %v1578 = vld [vmem:[%s3 + $0xb0] sm:$0xff]
  %v1579 = vld [vmem:[%s3 + $0xb8] sm:$0xff]
  %v1580 = vld [vmem:[%s3 + $0xc0] sm:$0xff]
  %v1581 = vld [vmem:[%s3 + $0xc8] sm:$0xff]
  %v1582 = vld [vmem:[%s3 + $0xd0] sm:$0xff]
  %v1583 = vld [vmem:[%s3 + $0xd8] sm:$0xff]
  %v1584 = vld [vmem:[%s3 + $0xe0] sm:$0xff]
  %v1585 = vld [vmem:[%s3 + $0xe8] sm:$0xff]
  %v1586 = vld [vmem:[%s3 + $0xf0] sm:$0xff]
  %v1587 = vld [vmem:[%s3 + $0xf8] sm:$0xff]
  %v1588 = vld [vmem:[%s3 + $0x100] sm:$0xff]
  %v1589 = vld [vmem:[%s3 + $0x108] sm:$0xff]
  %v1590 = vld [vmem:[%s3 + $0x110] sm:$0xff]
  %v1591 = vld [vmem:[%s3 + $0x118] sm:$0xff]
  %v1592 = vld [vmem:[%s3 + $0x120] sm:$0xff]
  %v1593 = vld [vmem:[%s3 + $0x128] sm:$0xff]
  %v1594 = vld [vmem:[%s3 + $0x130] sm:$0xff]
  %v1595 = vld [vmem:[%s3 + $0x138] sm:$0xff]
  %v1596 = vld [vmem:[%s3 + $0x140] sm:$0xff]
  %v1597 = vld [vmem:[%s3 + $0x148] sm:$0xff]
  %v1598 = vld [vmem:[%s3 + $0x150] sm:$0xff]
  %v1599 = vld [vmem:[%s3 + $0x158] sm:$0xff]
  %v1600 = vld [vmem:[%s3 + $0x160] sm:$0xff]
  %v1601 = vld [vmem:[%s3 + $0x168] sm:$0xff]
  %v1602 = vld [vmem:[%s3 + $0x170] sm:$0xff]
  %v1603 = vld [vmem:[%s3 + $0x178] sm:$0xff]
  %v1604 = vld [vmem:[%s3 + $0x180] sm:$0xff]
  %v1606 = vsel %vm82, %v1556, 0
  %v1609 = vsel %vm82, %v1557, 0
  %v1612 = vsel %vm82, %v1558, 0
  %v1615 = vsel %vm82, %v1559, 0
  %v1618 = vsel %vm82, %v1560, 0
  %v1621 = vsel %vm82, %v1561, 0
  %v1624 = vsel %vm82, %v1562, 0
  %v1627 = vsel %vm82, %v1563, 0
  %v1630 = vsel %vm82, %v1564, 0
  %v1633 = vsel %vm82, %v1565, 0
  %v1636 = vsel %vm82, %v1566, 0
  %v1639 = vsel %vm82, %v1567, 0
  %v1642 = vsel %vm82, %v1568, 0
  %v1645 = vsel %vm82, %v1569, 0
  %v1648 = vsel %vm82, %v1570, 0
  %v1651 = vsel %vm82, %v1571, 0
  %v1654 = vsel %vm82, %v1572, 0
  %v1657 = vsel %vm82, %v1573, 0
  %v1660 = vsel %vm82, %v1574, 0
  %v1663 = vsel %vm82, %v1575, 0
  %v1666 = vsel %vm82, %v1576, 0
  %v1669 = vsel %vm82, %v1577, 0
  %v1672 = vsel %vm82, %v1578, 0
  %v1675 = vsel %vm82, %v1579, 0
  %v1678 = vsel %vm82, %v1580, 0
  %v1681 = vsel %vm82, %v1581, 0
  %v1684 = vsel %vm82, %v1582, 0
  %v1687 = vsel %vm82, %v1583, 0
  %v1690 = vsel %vm82, %v1584, 0
  %v1693 = vsel %vm82, %v1585, 0
  %v1696 = vsel %vm82, %v1586, 0
  %v1699 = vsel %vm82, %v1587, 0
  %v1702 = vsel %vm82, %v1588, 0
  %v1705 = vsel %vm82, %v1589, 0
  %v1708 = vsel %vm82, %v1590, 0
  %v1711 = vsel %vm82, %v1591, 0
  %v1714 = vsel %vm82, %v1592, 0
  %v1717 = vsel %vm82, %v1593, 0
  %v1720 = vsel %vm82, %v1594, 0
  %v1723 = vsel %vm82, %v1595, 0
  %v1726 = vsel %vm82, %v1596, 0
  %v1729 = vsel %vm82, %v1597, 0
  %v1732 = vsel %vm82, %v1598, 0
  %v1735 = vsel %vm82, %v1599, 0
  %v1738 = vsel %vm82, %v1600, 0
  %v1741 = vsel %vm82, %v1601, 0
  %v1744 = vsel %vm82, %v1602, 0
  %v1747 = vsel %vm82, %v1603, 0
  %v1750 = vsel %vm82, %v1604, 0
  %1752 = vmatprep.subr.mxu0 0.0
  %1753 = vmatpush1.msra.mxu0 %v23
  %1754 = vmatprep.subr.mxu0 0.0
  %1755 = vmatpush1.msra.mxu0 %v24
  %1756 = vmatprep.subr.mxu0 0.0
  %1757 = vmatpush1.msra.mxu0 %v25
  %1758 = vmatprep.subr.mxu0 0.0
  %1759 = vmatpush1.msra.mxu0 %v26
  %1760 = vmatprep.subr.mxu0 0.0
  %1761 = vmatpush1.msra.mxu0 %v27
  %1762 = vmatprep.subr.mxu0 0.0
  %1763 = vmatpush1.msra.mxu0 %v28
  %1764 = vmatprep.subr.mxu0 0.0
  %1765 = vmatpush1.msra.mxu0 %v29
  %1766 = vmatprep.subr.mxu0 0.0
  %1767 = vmatpush1.msra.mxu0 %v30
  %1768 = vmatprep.subr.mxu0 0.0
  %1769 = vmatpush1.msra.mxu0 %v31
  %1770 = vmatprep.subr.mxu0 0.0
  %1771 = vmatpush1.msra.mxu0 %v232
  %1772 = vmatprep.subr.mxu0 0.0
  %1773 = vmatpush1.msra.mxu0 0.0
  %1774 = vmatprep.subr.mxu0 0.0
  %1775 = vmatpush1.msra.mxu0 0.0
  %1776 = vmatprep.subr.mxu0 0.0
  %1777 = vmatpush1.msra.mxu0 0.0
  %1778 = vmatprep.subr.mxu0 0.0
  %1779 = vmatpush1.msra.mxu0 0.0
  %1780 = vmatprep.subr.mxu0 0.0
  %1781 = vmatpush1.msra.mxu0 0.0
  %1782 = vmatprep.subr.mxu0 0.0
  %1783 = vmatpush1.msra.mxu0 0.0
  %1784 = vmatprep.subr.mxu0 0.0
  %1785 = vmatpush1.msra.mxu0 0.0
  %1786 = vmatprep.subr.mxu0 0.0
  %1787 = vmatpush1.msra.mxu0 0.0
  %1788 = vmatprep.subr.mxu0 0.0
  %1789 = vmatpush1.msra.mxu0 0.0
  %1790 = vmatprep.subr.mxu0 0.0
  %1791 = vmatpush1.msra.mxu0 0.0
  %1792 = vmatprep.subr.mxu0 0.0
  %1793 = vmatpush1.msra.mxu0 0.0
  %1794 = vmatprep.subr.mxu0 0.0
  %1795 = vmatpush1.msra.mxu0 0.0
  %1796 = vmatprep.subr.mxu0 0.0
  %1797 = vmatpush1.msra.mxu0 0.0
  %1798 = vmatprep.subr.mxu0 0.0
  %1799 = vmatpush1.msra.mxu0 0.0
  %1800 = vmatprep.subr.mxu0 0.0
  %1801 = vmatpush1.msra.mxu0 0.0
  %1802 = vmatprep.subr.mxu0 0.0
  %1803 = vmatpush1.msra.mxu0 0.0
  %1804 = vmatprep.subr.mxu0 0.0
  %1805 = vmatpush1.msra.mxu0 0.0
  %1806 = vmatprep.subr.mxu0 0.0
  %1807 = vmatpush1.msra.mxu0 0.0
  %1808 = vmatprep.subr.mxu0 0.0
  %1809 = vmatpush1.msra.mxu0 0.0
  %1810 = vmatprep.subr.mxu0 0.0
  %1811 = vmatpush1.msra.mxu0 0.0
  %1812 = vmatprep.subr.mxu0 0.0
  %1813 = vmatpush1.msra.mxu0 0.0
  %1814 = vmatprep.subr.mxu0 0.0
  %1815 = vmatpush1.msra.mxu0 0.0
  %1816 = vmatprep.mubr.f32.mxu0 0.0
  %1817 = vmatmul.mubr.f32.gmra.mrb[0].mxu0 %v1606
  %v1818 = vpop.f32.mrb[0].mxu0
  %v1819 = vadd.f32 0.0, %v1818
  %v1820 = vpop.f32.mrb[0].mxu0
  %1821 = vmatprep.mubr.f32.mxu0 0.0
  %1822 = vmatmul.mubr.f32.gmra.mrb[0].mxu0 %v1609
  %v1823 = vpop.f32.mrb[0].mxu0
  %v1824 = vadd.f32 0.0, %v1823
  %v1825 = vpop.f32.mrb[0].mxu0
  %1826 = vmatprep.mubr.f32.mxu0 0.0
  %1827 = vmatmul.mubr.f32.gmra.mrb[0].mxu0 %v1612
  %v1828 = vpop.f32.mrb[0].mxu0
  %v1829 = vadd.f32 0.0, %v1828
  %v1830 = vpop.f32.mrb[0].mxu0
  %1831 = vmatprep.mubr.f32.mxu0 0.0
  %1832 = vmatmul.mubr.f32.gmra.mrb[0].mxu0 %v1615
  %v1833 = vpop.f32.mrb[0].mxu0
  %v1834 = vadd.f32 0.0, %v1833
  %v1835 = vpop.f32.mrb[0].mxu0
  %1836 = vmatprep.mubr.f32.mxu0 0.0
  %1837 = vmatmul.mubr.f32.gmra.mrb[0].mxu0 %v1618
  %v1838 = vpop.f32.mrb[0].mxu0
  %v1839 = vadd.f32 0.0, %v1838
  %v1840 = vpop.f32.mrb[0].mxu0
  %1841 = vmatprep.mubr.f32.mxu0 0.0
  %1842 = vmatmul.mubr.f32.gmra.mrb[0].mxu0 %v1621
  %v1843 = vpop.f32.mrb[0].mxu0
  %v1844 = vadd.f32 0.0, %v1843
  %v1845 = vpop.f32.mrb[0].mxu0
  %1846 = vmatprep.mubr.f32.mxu0 0.0
  %1847 = vmatmul.mubr.f32.gmra.mrb[0].mxu0 %v1624
  %v1848 = vpop.f32.mrb[0].mxu0
  %v1849 = vadd.f32 0.0, %v1848
  %v1850 = vpop.f32.mrb[0].mxu0
  %1851 = vmatprep.mubr.f32.mxu0 0.0
  %1852 = vmatmul.mubr.f32.gmra.mrb[0].mxu0 %v1627
  %v1853 = vpop.f32.mrb[0].mxu0
  %v1854 = vadd.f32 0.0, %v1853
  %v1855 = vpop.f32.mrb[0].mxu0
  %1856 = vmatprep.mubr.f32.mxu0 0.0
  %1857 = vmatmul.mubr.f32.gmra.mrb[0].mxu0 %v1630
  %v1858 = vpop.f32.mrb[0].mxu0
  %v1859 = vadd.f32 0.0, %v1858
  %v1860 = vpop.f32.mrb[0].mxu0
  %1861 = vmatprep.mubr.f32.mxu0 0.0
  %1862 = vmatmul.mubr.f32.gmra.mrb[0].mxu0 %v1633
  %v1863 = vpop.f32.mrb[0].mxu0
  %v1864 = vadd.f32 0.0, %v1863
  %v1865 = vpop.f32.mrb[0].mxu0
  %1866 = vmatprep.mubr.f32.mxu0 0.0
  %1867 = vmatmul.mubr.f32.gmra.mrb[0].mxu0 %v1636
  %v1868 = vpop.f32.mrb[0].mxu0
  %v1869 = vadd.f32 0.0, %v1868
  %v1870 = vpop.f32.mrb[0].mxu0
  %1871 = vmatprep.mubr.f32.mxu0 0.0
  %1872 = vmatmul.mubr.f32.gmra.mrb[0].mxu0 %v1639
  %v1873 = vpop.f32.mrb[0].mxu0
  %v1874 = vadd.f32 0.0, %v1873
  %v1875 = vpop.f32.mrb[0].mxu0
  %1876 = vmatprep.mubr.f32.mxu0 0.0
  %1877 = vmatmul.mubr.f32.gmra.mrb[0].mxu0 %v1642
  %v1878 = vpop.f32.mrb[0].mxu0
  %v1879 = vadd.f32 0.0, %v1878
  %v1880 = vpop.f32.mrb[0].mxu0
  %1881 = vmatprep.mubr.f32.mxu0 0.0
  %1882 = vmatmul.mubr.f32.gmra.mrb[0].mxu0 %v1645
  %v1883 = vpop.f32.mrb[0].mxu0
  %v1884 = vadd.f32 0.0, %v1883
  %v1885 = vpop.f32.mrb[0].mxu0
  %1886 = vmatprep.mubr.f32.mxu0 0.0
  %1887 = vmatmul.mubr.f32.gmra.mrb[0].mxu0 %v1648
  %v1888 = vpop.f32.mrb[0].mxu0
  %v1889 = vadd.f32 0.0, %v1888
  %v1890 = vpop.f32.mrb[0].mxu0
  %1891 = vmatprep.mubr.f32.mxu0 0.0
  %1892 = vmatmul.mubr.f32.gmra.mrb[0].mxu0 %v1651
  %v1893 = vpop.f32.mrb[0].mxu0
  %v1894 = vadd.f32 0.0, %v1893
  %v1895 = vpop.f32.mrb[0].mxu0
  %1896 = vmatprep.mubr.f32.mxu0 0.0
  %1897 = vmatmul.mubr.f32.gmra.mrb[0].mxu0 %v1654
  %v1898 = vpop.f32.mrb[0].mxu0
  %v1899 = vadd.f32 0.0, %v1898
  %v1900 = vpop.f32.mrb[0].mxu0
  %1901 = vmatprep.mubr.f32.mxu0 0.0
  %1902 = vmatmul.mubr.f32.gmra.mrb[0].mxu0 %v1657
  %v1903 = vpop.f32.mrb[0].mxu0
  %v1904 = vadd.f32 0.0, %v1903
  %v1905 = vpop.f32.mrb[0].mxu0
  %1906 = vmatprep.mubr.f32.mxu0 0.0
  %1907 = vmatmul.mubr.f32.gmra.mrb[0].mxu0 %v1660
  %v1908 = vpop.f32.mrb[0].mxu0
  %v1909 = vadd.f32 0.0, %v1908
  %v1910 = vpop.f32.mrb[0].mxu0
  %1911 = vmatprep.mubr.f32.mxu0 0.0
  %1912 = vmatmul.mubr.f32.gmra.mrb[0].mxu0 %v1663
  %v1913 = vpop.f32.mrb[0].mxu0
  %v1914 = vadd.f32 0.0, %v1913
  %v1915 = vpop.f32.mrb[0].mxu0
  %1916 = vmatprep.mubr.f32.mxu0 0.0
  %1917 = vmatmul.mubr.f32.gmra.mrb[0].mxu0 %v1666
  %v1918 = vpop.f32.mrb[0].mxu0
  %v1919 = vadd.f32 0.0, %v1918
  %v1920 = vpop.f32.mrb[0].mxu0
  %1921 = vmatprep.mubr.f32.mxu0 0.0
  %1922 = vmatmul.mubr.f32.gmra.mrb[0].mxu0 %v1669
  %v1923 = vpop.f32.mrb[0].mxu0
  %v1924 = vadd.f32 0.0, %v1923
  %v1925 = vpop.f32.mrb[0].mxu0
  %1926 = vmatprep.mubr.f32.mxu0 0.0
  %1927 = vmatmul.mubr.f32.gmra.mrb[0].mxu0 %v1672
  %v1928 = vpop.f32.mrb[0].mxu0
  %v1929 = vadd.f32 0.0, %v1928
  %v1930 = vpop.f32.mrb[0].mxu0
  %1931 = vmatprep.mubr.f32.mxu0 0.0
  %1932 = vmatmul.mubr.f32.gmra.mrb[0].mxu0 %v1675
  %v1933 = vpop.f32.mrb[0].mxu0
  %v1934 = vadd.f32 0.0, %v1933
  %v1935 = vpop.f32.mrb[0].mxu0
  %1936 = vmatprep.mubr.f32.mxu0 0.0
  %1937 = vmatmul.mubr.f32.gmra.mrb[0].mxu0 %v1678
  %v1938 = vpop.f32.mrb[0].mxu0
  %v1939 = vadd.f32 0.0, %v1938
  %v1940 = vpop.f32.mrb[0].mxu0
  %1941 = vmatprep.mubr.f32.mxu0 0.0
  %1942 = vmatmul.mubr.f32.gmra.mrb[0].mxu0 %v1681
  %v1943 = vpop.f32.mrb[0].mxu0
  %v1944 = vadd.f32 0.0, %v1943
  %v1945 = vpop.f32.mrb[0].mxu0
  %1946 = vmatprep.mubr.f32.mxu0 0.0
  %1947 = vmatmul.mubr.f32.gmra.mrb[0].mxu0 %v1684
  %v1948 = vpop.f32.mrb[0].mxu0
  %v1949 = vadd.f32 0.0, %v1948
  %v1950 = vpop.f32.mrb[0].mxu0
  %1951 = vmatprep.mubr.f32.mxu0 0.0
  %1952 = vmatmul.mubr.f32.gmra.mrb[0].mxu0 %v1687
  %v1953 = vpop.f32.mrb[0].mxu0
  %v1954 = vadd.f32 0.0, %v1953
  %v1955 = vpop.f32.mrb[0].mxu0
  %1956 = vmatprep.mubr.f32.mxu0 0.0
  %1957 = vmatmul.mubr.f32.gmra.mrb[0].mxu0 %v1690
  %v1958 = vpop.f32.mrb[0].mxu0
  %v1959 = vadd.f32 0.0, %v1958
  %v1960 = vpop.f32.mrb[0].mxu0
  %1961 = vmatprep.mubr.f32.mxu0 0.0
  %1962 = vmatmul.mubr.f32.gmra.mrb[0].mxu0 %v1693
  %v1963 = vpop.f32.mrb[0].mxu0
  %v1964 = vadd.f32 0.0, %v1963
  %v1965 = vpop.f32.mrb[0].mxu0
  %1966 = vmatprep.mubr.f32.mxu0 0.0
  %1967 = vmatmul.mubr.f32.gmra.mrb[0].mxu0 %v1696
  %v1968 = vpop.f32.mrb[0].mxu0
  %v1969 = vadd.f32 0.0, %v1968
  %v1970 = vpop.f32.mrb[0].mxu0
  %1971 = vmatprep.mubr.f32.mxu0 0.0
  %1972 = vmatmul.mubr.f32.gmra.mrb[0].mxu0 %v1699
  %v1973 = vpop.f32.mrb[0].mxu0
  %v1974 = vadd.f32 0.0, %v1973
  %v1975 = vpop.f32.mrb[0].mxu0
  %1976 = vmatprep.mubr.f32.mxu0 0.0
  %1977 = vmatmul.mubr.f32.gmra.mrb[0].mxu0 %v1702
  %v1978 = vpop.f32.mrb[0].mxu0
  %v1979 = vadd.f32 0.0, %v1978
  %v1980 = vpop.f32.mrb[0].mxu0
  %1981 = vmatprep.mubr.f32.mxu0 0.0
  %1982 = vmatmul.mubr.f32.gmra.mrb[0].mxu0 %v1705
  %v1983 = vpop.f32.mrb[0].mxu0
  %v1984 = vadd.f32 0.0, %v1983
  %v1985 = vpop.f32.mrb[0].mxu0
  %1986 = vmatprep.mubr.f32.mxu0 0.0
  %1987 = vmatmul.mubr.f32.gmra.mrb[0].mxu0 %v1708
  %v1988 = vpop.f32.mrb[0].mxu0
  %v1989 = vadd.f32 0.0, %v1988
  %v1990 = vpop.f32.mrb[0].mxu0
  %1991 = vmatprep.mubr.f32.mxu0 0.0
  %1992 = vmatmul.mubr.f32.gmra.mrb[0].mxu0 %v1711
  %v1993 = vpop.f32.mrb[0].mxu0
  %v1994 = vadd.f32 0.0, %v1993
  %v1995 = vpop.f32.mrb[0].mxu0
  %1996 = vmatprep.mubr.f32.mxu0 0.0
  %1997 = vmatmul.mubr.f32.gmra.mrb[0].mxu0 %v1714
  %v1998 = vpop.f32.mrb[0].mxu0
  %v1999 = vadd.f32 0.0, %v1998
  %v2000 = vpop.f32.mrb[0].mxu0
  %2001 = vmatprep.mubr.f32.mxu0 0.0
  %2002 = vmatmul.mubr.f32.gmra.mrb[0].mxu0 %v1717
  %v2003 = vpop.f32.mrb[0].mxu0
  %v2004 = vadd.f32 0.0, %v2003
  %v2005 = vpop.f32.mrb[0].mxu0
  %2006 = vmatprep.mubr.f32.mxu0 0.0
  %2007 = vmatmul.mubr.f32.gmra.mrb[0].mxu0 %v1720
  %v2008 = vpop.f32.mrb[0].mxu0
  %v2009 = vadd.f32 0.0, %v2008
  %v2010 = vpop.f32.mrb[0].mxu0
  %2011 = vmatprep.mubr.f32.mxu0 0.0
  %2012 = vmatmul.mubr.f32.gmra.mrb[0].mxu0 %v1723
  %v2013 = vpop.f32.mrb[0].mxu0
  %v2014 = vadd.f32 0.0, %v2013
  %v2015 = vpop.f32.mrb[0].mxu0
  %2016 = vmatprep.mubr.f32.mxu0 0.0
  %2017 = vmatmul.mubr.f32.gmra.mrb[0].mxu0 %v1726
  %v2018 = vpop.f32.mrb[0].mxu0
  %v2019 = vadd.f32 0.0, %v2018
  %v2020 = vpop.f32.mrb[0].mxu0
  %2021 = vmatprep.mubr.f32.mxu0 0.0
  %2022 = vmatmul.mubr.f32.gmra.mrb[0].mxu0 %v1729
  %v2023 = vpop.f32.mrb[0].mxu0
  %v2024 = vadd.f32 0.0, %v2023
  %v2025 = vpop.f32.mrb[0].mxu0
  %2026 = vmatprep.mubr.f32.mxu0 0.0
  %2027 = vmatmul.mubr.f32.gmra.mrb[0].mxu0 %v1732
  %v2028 = vpop.f32.mrb[0].mxu0
  %v2029 = vadd.f32 0.0, %v2028
  %v2030 = vpop.f32.mrb[0].mxu0
  %2031 = vmatprep.mubr.f32.mxu0 0.0
  %2032 = vmatmul.mubr.f32.gmra.mrb[0].mxu0 %v1735
  %v2033 = vpop.f32.mrb[0].mxu0
  %v2034 = vadd.f32 0.0, %v2033
  %v2035 = vpop.f32.mrb[0].mxu0
  %2036 = vmatprep.mubr.f32.mxu0 0.0
  %2037 = vmatmul.mubr.f32.gmra.mrb[0].mxu0 %v1738
  %v2038 = vpop.f32.mrb[0].mxu0
  %v2039 = vadd.f32 0.0, %v2038
  %v2040 = vpop.f32.mrb[0].mxu0
  %2041 = vmatprep.mubr.f32.mxu0 0.0
  %2042 = vmatmul.mubr.f32.gmra.mrb[0].mxu0 %v1741
  %v2043 = vpop.f32.mrb[0].mxu0
  %v2044 = vadd.f32 0.0, %v2043
  %v2045 = vpop.f32.mrb[0].mxu0
  %2046 = vmatprep.mubr.f32.mxu0 0.0
  %2047 = vmatmul.mubr.f32.gmra.mrb[0].mxu0 %v1744
  %v2048 = vpop.f32.mrb[0].mxu0
  %v2049 = vadd.f32 0.0, %v2048
  %v2050 = vpop.f32.mrb[0].mxu0
  %2051 = vmatprep.mubr.f32.mxu0 0.0
  %2052 = vmatmul.mubr.f32.gmra.mrb[0].mxu0 %v1747
  %v2053 = vpop.f32.mrb[0].mxu0
  %v2054 = vadd.f32 0.0, %v2053
  %v2055 = vpop.f32.mrb[0].mxu0
  %2056 = vmatprep.mubr.f32.mxu0 0.0
  %2057 = vmatmul.mubr.f32.gmra.mrb[0].mxu0 %v1750
  %v2058 = vpop.f32.mrb[0].mxu0
  %v2059 = vadd.f32 0.0, %v2058
  %v2060 = vpop.f32.mrb[0].mxu0
  %2061 = vdwg.mxu0
  %v2062 = vmax.f32 %v301, %v807
  %v2063 = vmax.f32 %v306, %v812
  %v2064 = vmax.f32 %v311, %v817
  %v2065 = vmax.f32 %v316, %v822
  %v2066 = vmax.f32 %v321, %v827
  %v2067 = vmax.f32 %v326, %v832
  %v2068 = vmax.f32 %v331, %v837
  %v2069 = vmax.f32 %v336, %v842
  %v2070 = vmax.f32 %v341, %v847
  %v2071 = vmax.f32 %v346, %v852
  %v2072 = vmax.f32 %v351, %v857
  %v2073 = vmax.f32 %v356, %v862
  %v2074 = vmax.f32 %v361, %v867
  %v2075 = vmax.f32 %v366, %v872
  %v2076 = vmax.f32 %v371, %v877
  %v2077 = vmax.f32 %v376, %v882
  %v2078 = vmax.f32 %v381, %v887
  %v2079 = vmax.f32 %v386, %v892
  %v2080 = vmax.f32 %v391, %v897
  %v2081 = vmax.f32 %v396, %v902
  %v2082 = vmax.f32 %v401, %v907
  %v2083 = vmax.f32 %v406, %v912
  %v2084 = vmax.f32 %v411, %v917
  %v2085 = vmax.f32 %v416, %v922
  %v2086 = vmax.f32 %v421, %v927
  %v2087 = vmax.f32 %v426, %v932
  %v2088 = vmax.f32 %v431, %v937
  %v2089 = vmax.f32 %v436, %v942
  %v2090 = vmax.f32 %v441, %v947
  %v2091 = vmax.f32 %v446, %v952
  %v2092 = vmax.f32 %v451, %v957
  %v2093 = vmax.f32 %v456, %v962
  %v2094 = vmax.f32 %v461, %v967
  %v2095 = vmax.f32 %v466, %v972
  %v2096 = vmax.f32 %v471, %v977
  %v2097 = vmax.f32 %v476, %v982
  %v2098 = vmax.f32 %v481, %v987
  %v2099 = vmax.f32 %v486, %v992
  %v2100 = vmax.f32 %v491, %v997
  %v2101 = vmax.f32 %v496, %v1002
  %v2102 = vmax.f32 %v501, %v1007
  %v2103 = vmax.f32 %v506, %v1012
  %v2104 = vmax.f32 %v511, %v1017
  %v2105 = vmax.f32 %v516, %v1022
  %v2106 = vmax.f32 %v521, %v1027
  %v2107 = vmax.f32 %v526, %v1032
  %v2108 = vmax.f32 %v531, %v1037
  %v2109 = vmax.f32 %v536, %v1042
  %v2110 = vmax.f32 %v541, %v1047
  %v2111 = vmax.f32 %v1313, %v1819
  %v2112 = vmax.f32 %v1318, %v1824
  %v2113 = vmax.f32 %v1323, %v1829
  %v2114 = vmax.f32 %v1328, %v1834
  %v2115 = vmax.f32 %v1333, %v1839
  %v2116 = vmax.f32 %v1338, %v1844
  %v2117 = vmax.f32 %v1343, %v1849
  %v2118 = vmax.f32 %v1348, %v1854
  %v2119 = vmax.f32 %v1353, %v1859
  %v2120 = vmax.f32 %v1358, %v1864
  %v2121 = vmax.f32 %v1363, %v1869
  %v2122 = vmax.f32 %v1368, %v1874
  %v2123 = vmax.f32 %v1373, %v1879
  %v2124 = vmax.f32 %v1378, %v1884
  %v2125 = vmax.f32 %v1383, %v1889
  %v2126 = vmax.f32 %v1388, %v1894
  %v2127 = vmax.f32 %v1393, %v1899
  %v2128 = vmax.f32 %v1398, %v1904
  %v2129 = vmax.f32 %v1403, %v1909
  %v2130 = vmax.f32 %v1408, %v1914
  %v2131 = vmax.f32 %v1413, %v1919
  %v2132 = vmax.f32 %v1418, %v1924
  %v2133 = vmax.f32 %v1423, %v1929
  %v2134 = vmax.f32 %v1428, %v1934
  %v2135 = vmax.f32 %v1433, %v1939
  %v2136 = vmax.f32 %v1438, %v1944
  %v2137 = vmax.f32 %v1443, %v1949
  %v2138 = vmax.f32 %v1448, %v1954
  %v2139 = vmax.f32 %v1453, %v1959
  %v2140 = vmax.f32 %v1458, %v1964
  %v2141 = vmax.f32 %v1463, %v1969
  %v2142 = vmax.f32 %v1468, %v1974
  %v2143 = vmax.f32 %v1473, %v1979
  %v2144 = vmax.f32 %v1478, %v1984
  %v2145 = vmax.f32 %v1483, %v1989
  %v2146 = vmax.f32 %v1488, %v1994
  %v2147 = vmax.f32 %v1493, %v1999
  %v2148 = vmax.f32 %v1498, %v2004
  %v2149 = vmax.f32 %v1503, %v2009
  %v2150 = vmax.f32 %v1508, %v2014
  %v2151 = vmax.f32 %v1513, %v2019
  %v2152 = vmax.f32 %v1518, %v2024
  %v2153 = vmax.f32 %v1523, %v2029
  %v2154 = vmax.f32 %v1528, %v2034
  %v2155 = vmax.f32 %v1533, %v2039
  %v2156 = vmax.f32 %v1538, %v2044
  %v2157 = vmax.f32 %v1543, %v2049
  %v2158 = vmax.f32 %v1548, %v2054
  %v2159 = vmax.f32 %v1553, %v2059
  %v2160 = vmax.f32 %v2062, %v2111
  %v2161 = vmax.f32 %v2063, %v2112
  %v2162 = vmax.f32 %v2064, %v2113
  %v2163 = vmax.f32 %v2065, %v2114
  %v2164 = vmax.f32 %v2066, %v2115
  %v2165 = vmax.f32 %v2067, %v2116
  %v2166 = vmax.f32 %v2068, %v2117
  %v2167 = vmax.f32 %v2069, %v2118
  %v2168 = vmax.f32 %v2070, %v2119
  %v2169 = vmax.f32 %v2071, %v2120
  %v2170 = vmax.f32 %v2072, %v2121
  %v2171 = vmax.f32 %v2073, %v2122
  %v2172 = vmax.f32 %v2074, %v2123
  %v2173 = vmax.f32 %v2075, %v2124
  %v2174 = vmax.f32 %v2076, %v2125
  %v2175 = vmax.f32 %v2077, %v2126
  %v2176 = vmax.f32 %v2078, %v2127
  %v2177 = vmax.f32 %v2079, %v2128
  %v2178 = vmax.f32 %v2080, %v2129
  %v2179 = vmax.f32 %v2081, %v2130
  %v2180 = vmax.f32 %v2082, %v2131
  %v2181 = vmax.f32 %v2083, %v2132
  %v2182 = vmax.f32 %v2084, %v2133
  %v2183 = vmax.f32 %v2085, %v2134
  %v2184 = vmax.f32 %v2086, %v2135
  %v2185 = vmax.f32 %v2087, %v2136
  %v2186 = vmax.f32 %v2088, %v2137
  %v2187 = vmax.f32 %v2089, %v2138
  %v2188 = vmax.f32 %v2090, %v2139
  %v2189 = vmax.f32 %v2091, %v2140
  %v2190 = vmax.f32 %v2092, %v2141
  %v2191 = vmax.f32 %v2093, %v2142
  %v2192 = vmax.f32 %v2094, %v2143
  %v2193 = vmax.f32 %v2095, %v2144
  %v2194 = vmax.f32 %v2096, %v2145
  %v2195 = vmax.f32 %v2097, %v2146
  %v2196 = vmax.f32 %v2098, %v2147
  %v2197 = vmax.f32 %v2099, %v2148
  %v2198 = vmax.f32 %v2100, %v2149
  %v2199 = vmax.f32 %v2101, %v2150
  %v2200 = vmax.f32 %v2102, %v2151
  %v2201 = vmax.f32 %v2103, %v2152
  %v2202 = vmax.f32 %v2104, %v2153
  %v2203 = vmax.f32 %v2105, %v2154
  %v2204 = vmax.f32 %v2106, %v2155
  %v2205 = vmax.f32 %v2107, %v2156
  %v2206 = vmax.f32 %v2108, %v2157
  %v2207 = vmax.f32 %v2109, %v2158
  %v2208 = vmax.f32 %v2110, %v2159
  %v2209 = vld [vmem:[%s5] sm:$0x1]
  %v2211 = vlaneseq
  %v2212 = vshrl.u32 %v2211, 7
  %v2213 = vsub.s32 0, %v2212
  %v2214 = vrot.slane %v2209, %v2213
  %v2216 = vadd.f32 %v2160, %v2214
  %v2217 = vadd.f32 %v2161, %v2214
  %v2218 = vadd.f32 %v2162, %v2214
  %v2219 = vadd.f32 %v2163, %v2214
  %v2220 = vadd.f32 %v2164, %v2214
  %v2221 = vadd.f32 %v2165, %v2214
  %v2222 = vadd.f32 %v2166, %v2214
  %v2223 = vadd.f32 %v2167, %v2214
  %v2224 = vadd.f32 %v2168, %v2214
  %v2225 = vadd.f32 %v2169, %v2214
  %v2226 = vadd.f32 %v2170, %v2214
  %v2227 = vadd.f32 %v2171, %v2214
  %v2228 = vadd.f32 %v2172, %v2214
  %v2229 = vadd.f32 %v2173, %v2214
  %v2230 = vadd.f32 %v2174, %v2214
  %v2231 = vadd.f32 %v2175, %v2214
  %v2232 = vadd.f32 %v2176, %v2214
  %v2233 = vadd.f32 %v2177, %v2214
  %v2234 = vadd.f32 %v2178, %v2214
  %v2235 = vadd.f32 %v2179, %v2214
  %v2236 = vadd.f32 %v2180, %v2214
  %v2237 = vadd.f32 %v2181, %v2214
  %v2238 = vadd.f32 %v2182, %v2214
  %v2239 = vadd.f32 %v2183, %v2214
  %v2240 = vadd.f32 %v2184, %v2214
  %v2241 = vadd.f32 %v2185, %v2214
  %v2242 = vadd.f32 %v2186, %v2214
  %v2243 = vadd.f32 %v2187, %v2214
  %v2244 = vadd.f32 %v2188, %v2214
  %v2245 = vadd.f32 %v2189, %v2214
  %v2246 = vadd.f32 %v2190, %v2214
  %v2247 = vadd.f32 %v2191, %v2214
  %v2248 = vadd.f32 %v2192, %v2214
  %v2249 = vadd.f32 %v2193, %v2214
  %v2250 = vadd.f32 %v2194, %v2214
  %v2251 = vadd.f32 %v2195, %v2214
  %v2252 = vadd.f32 %v2196, %v2214
  %v2253 = vadd.f32 %v2197, %v2214
  %v2254 = vadd.f32 %v2198, %v2214
  %v2255 = vadd.f32 %v2199, %v2214
  %v2256 = vadd.f32 %v2200, %v2214
  %v2257 = vadd.f32 %v2201, %v2214
  %v2258 = vadd.f32 %v2202, %v2214
  %v2259 = vadd.f32 %v2203, %v2214
  %v2260 = vadd.f32 %v2204, %v2214
  %v2261 = vadd.f32 %v2205, %v2214
  %v2262 = vadd.f32 %v2206, %v2214
  %v2263 = vadd.f32 %v2207, %v2214
  %v2264 = vadd.f32 %v2208, %v2214
  %v2265 = vmax.f32 %v2216, 0.0
  %v2266 = vmax.f32 %v2217, 0.0
  %v2267 = vmax.f32 %v2218, 0.0
  %v2268 = vmax.f32 %v2219, 0.0
  %v2269 = vmax.f32 %v2220, 0.0
  %v2270 = vmax.f32 %v2221, 0.0
  %v2271 = vmax.f32 %v2222, 0.0
  %v2272 = vmax.f32 %v2223, 0.0
  %v2273 = vmax.f32 %v2224, 0.0
  %v2274 = vmax.f32 %v2225, 0.0
  %v2275 = vmax.f32 %v2226, 0.0
  %v2276 = vmax.f32 %v2227, 0.0
  %v2277 = vmax.f32 %v2228, 0.0
  %v2278 = vmax.f32 %v2229, 0.0
  %v2279 = vmax.f32 %v2230, 0.0
  %v2280 = vmax.f32 %v2231, 0.0
  %v2281 = vmax.f32 %v2232, 0.0
  %v2282 = vmax.f32 %v2233, 0.0
  %v2283 = vmax.f32 %v2234, 0.0
  %v2284 = vmax.f32 %v2235, 0.0
  %v2285 = vmax.f32 %v2236, 0.0
  %v2286 = vmax.f32 %v2237, 0.0
  %v2287 = vmax.f32 %v2238, 0.0
  %v2288 = vmax.f32 %v2239, 0.0
  %v2289 = vmax.f32 %v2240, 0.0
  %v2290 = vmax.f32 %v2241, 0.0
  %v2291 = vmax.f32 %v2242, 0.0
  %v2292 = vmax.f32 %v2243, 0.0
  %v2293 = vmax.f32 %v2244, 0.0
  %v2294 = vmax.f32 %v2245, 0.0
  %v2295 = vmax.f32 %v2246, 0.0
  %v2296 = vmax.f32 %v2247, 0.0
  %v2297 = vmax.f32 %v2248, 0.0
  %v2298 = vmax.f32 %v2249, 0.0
  %v2299 = vmax.f32 %v2250, 0.0
  %v2300 = vmax.f32 %v2251, 0.0
  %v2301 = vmax.f32 %v2252, 0.0
  %v2302 = vmax.f32 %v2253, 0.0
  %v2303 = vmax.f32 %v2254, 0.0
  %v2304 = vmax.f32 %v2255, 0.0
  %v2305 = vmax.f32 %v2256, 0.0
  %v2306 = vmax.f32 %v2257, 0.0
  %v2307 = vmax.f32 %v2258, 0.0
  %v2308 = vmax.f32 %v2259, 0.0
  %v2309 = vmax.f32 %v2260, 0.0
  %v2310 = vmax.f32 %v2261, 0.0
  %v2311 = vmax.f32 %v2262, 0.0
  %v2312 = vmax.f32 %v2263, 0.0
  %v2313 = vmax.f32 %v2264, 0.0
  %vm2314 = vcmask 48128
  %2315 = vst.msk [vmem:[%s6] sm:$0xff] %vm2314, %v2265
  %2316 = vst.msk [vmem:[%s6 + $0x8] sm:$0xff] %vm2314, %v2266
  %2317 = vst.msk [vmem:[%s6 + $0x10] sm:$0xff] %vm2314, %v2267
  %2318 = vst.msk [vmem:[%s6 + $0x18] sm:$0xff] %vm2314, %v2268
  %2319 = vst.msk [vmem:[%s6 + $0x20] sm:$0xff] %vm2314, %v2269
  %2320 = vst.msk [vmem:[%s6 + $0x28] sm:$0xff] %vm2314, %v2270
  %2321 = vst.msk [vmem:[%s6 + $0x30] sm:$0xff] %vm2314, %v2271
  %2322 = vst.msk [vmem:[%s6 + $0x38] sm:$0xff] %vm2314, %v2272
  %2323 = vst.msk [vmem:[%s6 + $0x40] sm:$0xff] %vm2314, %v2273
  %2324 = vst.msk [vmem:[%s6 + $0x48] sm:$0xff] %vm2314, %v2274
  %2325 = vst.msk [vmem:[%s6 + $0x50] sm:$0xff] %vm2314, %v2275
  %2326 = vst.msk [vmem:[%s6 + $0x58] sm:$0xff] %vm2314, %v2276
  %2327 = vst.msk [vmem:[%s6 + $0x60] sm:$0xff] %vm2314, %v2277
  %2328 = vst.msk [vmem:[%s6 + $0x68] sm:$0xff] %vm2314, %v2278
  %2329 = vst.msk [vmem:[%s6 + $0x70] sm:$0xff] %vm2314, %v2279
  %2330 = vst.msk [vmem:[%s6 + $0x78] sm:$0xff] %vm2314, %v2280
  %2331 = vst.msk [vmem:[%s6 + $0x80] sm:$0xff] %vm2314, %v2281
  %2332 = vst.msk [vmem:[%s6 + $0x88] sm:$0xff] %vm2314, %v2282
  %2333 = vst.msk [vmem:[%s6 + $0x90] sm:$0xff] %vm2314, %v2283
  %2334 = vst.msk [vmem:[%s6 + $0x98] sm:$0xff] %vm2314, %v2284
  %2335 = vst.msk [vmem:[%s6 + $0xa0] sm:$0xff] %vm2314, %v2285
  %2336 = vst.msk [vmem:[%s6 + $0xa8] sm:$0xff] %vm2314, %v2286
  %2337 = vst.msk [vmem:[%s6 + $0xb0] sm:$0xff] %vm2314, %v2287
  %2338 = vst.msk [vmem:[%s6 + $0xb8] sm:$0xff] %vm2314, %v2288
  %2339 = vst.msk [vmem:[%s6 + $0xc0] sm:$0xff] %vm2314, %v2289
  %2340 = vst.msk [vmem:[%s6 + $0xc8] sm:$0xff] %vm2314, %v2290
  %2341 = vst.msk [vmem:[%s6 + $0xd0] sm:$0xff] %vm2314, %v2291
  %2342 = vst.msk [vmem:[%s6 + $0xd8] sm:$0xff] %vm2314, %v2292
  %2343 = vst.msk [vmem:[%s6 + $0xe0] sm:$0xff] %vm2314, %v2293
  %2344 = vst.msk [vmem:[%s6 + $0xe8] sm:$0xff] %vm2314, %v2294
  %2345 = vst.msk [vmem:[%s6 + $0xf0] sm:$0xff] %vm2314, %v2295
  %2346 = vst.msk [vmem:[%s6 + $0xf8] sm:$0xff] %vm2314, %v2296
  %2347 = vst.msk [vmem:[%s6 + $0x100] sm:$0xff] %vm2314, %v2297
  %2348 = vst.msk [vmem:[%s6 + $0x108] sm:$0xff] %vm2314, %v2298
  %2349 = vst.msk [vmem:[%s6 + $0x110] sm:$0xff] %vm2314, %v2299
  %2350 = vst.msk [vmem:[%s6 + $0x118] sm:$0xff] %vm2314, %v2300
  %2351 = vst.msk [vmem:[%s6 + $0x120] sm:$0xff] %vm2314, %v2301
  %2352 = vst.msk [vmem:[%s6 + $0x128] sm:$0xff] %vm2314, %v2302
  %2353 = vst.msk [vmem:[%s6 + $0x130] sm:$0xff] %vm2314, %v2303
  %2354 = vst.msk [vmem:[%s6 + $0x138] sm:$0xff] %vm2314, %v2304
  %2355 = vst.msk [vmem:[%s6 + $0x140] sm:$0xff] %vm2314, %v2305
  %2356 = vst.msk [vmem:[%s6 + $0x148] sm:$0xff] %vm2314, %v2306
  %2357 = vst.msk [vmem:[%s6 + $0x150] sm:$0xff] %vm2314, %v2307
  %2358 = vst.msk [vmem:[%s6 + $0x158] sm:$0xff] %vm2314, %v2308
  %2359 = vst.msk [vmem:[%s6 + $0x160] sm:$0xff] %vm2314, %v2309
  %2360 = vst.msk [vmem:[%s6 + $0x168] sm:$0xff] %vm2314, %v2310
  %2361 = vst.msk [vmem:[%s6 + $0x170] sm:$0xff] %vm2314, %v2311
  %2362 = vst.msk [vmem:[%s6 + $0x178] sm:$0xff] %vm2314, %v2312
  %2363 = vst.msk [vmem:[%s6 + $0x180] sm:$0xff] %vm2314, %v2313
  // Predicated region
  $region26: #{simple_cnn_2_forward.3} parent=0 // pred_check
    _
  $region27: #{simple_cnn_2_forward.3} parent=0 // pred_check_branch
    %2365 = sbr.rel (0) target = $region29
  $region28: #{simple_cnn_2_forward.3} parent=0 // pred_region
    _
  $region29: #{simple_cnn_2_forward.3} parent=0 // pred_fallthru
    _
  // Predicated region
  $region30: #{simple_cnn_2_forward.3} parent=0 // pred_check
    _
  $region31: #{simple_cnn_2_forward.3} parent=0 // pred_check_branch
    %2367 = sbr.rel (0) target = $region33
  $region32: #{simple_cnn_2_forward.3} parent=0 // pred_region
    _
  $region33: #{simple_cnn_2_forward.3} parent=0 // pred_fallthru
    _

// kernel: simple_cnn_2_forward.4
$region0: #{simple_cnn_2_forward.4}
  #allocation0 [shape = 'u32[]', space=smem, size = 0x4, offset = 0x4, fixed_abs, tag = 'smem constant byte address 0x4 - core index']
  #allocation1 [shape = 'u32[144,128]{1,0:T(1,128)}', space=vmem, size = 0x12000, scoped, tag = 'internal scratch']
  %s0 = inlined_call_operand.vmem [shape: f32[50,150], index: 0, kind: input, shape index: {}]
  %s1 = inlined_call_operand.vmem [shape: f32[50,150], index: 1, kind: input, shape index: {}]
  %s2 = inlined_call_operand.vmem [shape: f32[50,150], index: 2, kind: input, shape index: {}]
  %s3 = inlined_call_operand.vmem [shape: f32[50,150], index: 3, kind: input, shape index: {}]
  %s4 = inlined_call_operand.vmem [shape: f32[150,16], index: 4, kind: input, shape index: {}]
  %s5 = inlined_call_operand.vmem [shape: f32[1,16], index: 5, kind: input, shape index: {}]
  %s6 = inlined_call_operand.vmem [shape: f32[50,16], index: 6, kind: output, shape index: {}]
  %s7 = sld [smem:[#allocation0]]
  $region34: #{simple_cnn_2_forward.4} parent=0
    _
  %s9 = ssub.s32 1, %s7
  %s10 = scalar_select 0, %s9, %s7
  // Predicated region
  $region2: #{simple_cnn_2_forward.4} parent=0 // pred_check
    _
  $region3: #{simple_cnn_2_forward.4} parent=0 // pred_check_branch
    %12 = sbr.rel (0) target = $region5
  $region4: #{simple_cnn_2_forward.4} parent=0 // pred_region
    _
  $region5: #{simple_cnn_2_forward.4} parent=0 // pred_fallthru
    _
  // Predicated region
  $region6: #{simple_cnn_2_forward.4} parent=0 // pred_check
    _
  $region7: #{simple_cnn_2_forward.4} parent=0 // pred_check_branch
    %14 = sbr.rel (0) target = $region9
  $region8: #{simple_cnn_2_forward.4} parent=0 // pred_region
    _
  $region9: #{simple_cnn_2_forward.4} parent=0 // pred_fallthru
    _
  // Predicated region
  $region10: #{simple_cnn_2_forward.4} parent=0 // pred_check
    _
  $region11: #{simple_cnn_2_forward.4} parent=0 // pred_check_branch
    %16 = sbr.rel (0) target = $region13
  $region12: #{simple_cnn_2_forward.4} parent=0 // pred_region
    _
  $region13: #{simple_cnn_2_forward.4} parent=0 // pred_fallthru
    _
  // Predicated region
  $region14: #{simple_cnn_2_forward.4} parent=0 // pred_check
    _
  $region15: #{simple_cnn_2_forward.4} parent=0 // pred_check_branch
    %18 = sbr.rel (0) target = $region17
  $region16: #{simple_cnn_2_forward.4} parent=0 // pred_region
    _
  $region17: #{simple_cnn_2_forward.4} parent=0 // pred_fallthru
    _
  // Predicated region
  $region18: #{simple_cnn_2_forward.4} parent=0 // pred_check
    _
  $region19: #{simple_cnn_2_forward.4} parent=0 // pred_check_branch
    %20 = sbr.rel (0) target = $region21
  $region20: #{simple_cnn_2_forward.4} parent=0 // pred_region
    _
  $region21: #{simple_cnn_2_forward.4} parent=0 // pred_fallthru
    _
  // Predicated region
  $region22: #{simple_cnn_2_forward.4} parent=0 // pred_check
    _
  $region23: #{simple_cnn_2_forward.4} parent=0 // pred_check_branch
    %22 = sbr.rel (0) target = $region25
  $region24: #{simple_cnn_2_forward.4} parent=0 // pred_region
    _
  $region25: #{simple_cnn_2_forward.4} parent=0 // pred_fallthru
    _
  %v23 = vld [vmem:[%s4] sm:$0xff]
  %v24 = vld [vmem:[%s4 + $0x8] sm:$0xff]
  %v25 = vld [vmem:[%s4 + $0x10] sm:$0xff]
  %v26 = vld [vmem:[%s4 + $0x18] sm:$0xff]
  %v27 = vld [vmem:[%s4 + $0x20] sm:$0xff]
  %v28 = vld [vmem:[%s4 + $0x28] sm:$0xff]
  %v29 = vld [vmem:[%s4 + $0x30] sm:$0xff]
  %v30 = vld [vmem:[%s4 + $0x38] sm:$0xff]
  %v31 = vld [vmem:[%s4 + $0x40] sm:$0xff]
  %v32 = vld [vmem:[%s4 + $0x48] sm:$0xff]
  %v33 = vld [vmem:[%s4 + $0x50] sm:$0xff]
  %v34 = vld [vmem:[%s4 + $0x58] sm:$0xff]
  %v35 = vld [vmem:[%s4 + $0x60] sm:$0xff]
  %v36 = vld [vmem:[%s4 + $0x68] sm:$0xff]
  %v37 = vld [vmem:[%s4 + $0x70] sm:$0xff]
  %v38 = vld [vmem:[%s4 + $0x78] sm:$0xff]
  %v39 = vld [vmem:[%s4 + $0x80] sm:$0xff]
  %v40 = vld [vmem:[%s4 + $0x88] sm:$0xff]
  %v41 = vld [vmem:[%s4 + $0x90] sm:$0x3f]
  %v42 = vld [vmem:[%s0] sm:$0xff]
  %v43 = vld [vmem:[%s0 + $0x8] sm:$0xff]
  %v44 = vld [vmem:[%s0 + $0x10] sm:$0xff]
  %v45 = vld [vmem:[%s0 + $0x18] sm:$0xff]
  %v46 = vld [vmem:[%s0 + $0x20] sm:$0xff]
  %v47 = vld [vmem:[%s0 + $0x28] sm:$0xff]
  %v48 = vld [vmem:[%s0 + $0x30] sm:$0xff]
  %v49 = vld [vmem:[%s0 + $0x38] sm:$0xff]
  %v50 = vld [vmem:[%s0 + $0x40] sm:$0xff]
  %v51 = vld [vmem:[%s0 + $0x48] sm:$0xff]
  %v52 = vld [vmem:[%s0 + $0x50] sm:$0xff]
  %v53 = vld [vmem:[%s0 + $0x58] sm:$0xff]
  %v54 = vld [vmem:[%s0 + $0x60] sm:$0x3]
  %v55 = vld [vmem:[%s0 + $0x68] sm:$0x3]
  %vm56 = vcmask 179200
  %v58 = vsel %vm56, %v43, 0
  %v61 = vsel %vm56, %v45, 0
  %v64 = vsel %vm56, %v47, 0
  %v67 = vsel %vm56, %v49, 0
  %v70 = vsel %vm56, %v51, 0
  %v73 = vsel %vm56, %v53, 0
  %v76 = vsel %vm56, %v55, 0
  %vm78 = vcmask 1045504
  %v80 = vsel %vm78, %v41, 0
  %82 = vmatprep.subr.mxu0 0.0
  %83 = vmatpush1.msra.mxu0 %v23
  %84 = vmatprep.subr.mxu0 0.0
  %85 = vmatpush1.msra.mxu0 %v24
  %86 = vmatprep.subr.mxu0 0.0
  %87 = vmatpush1.msra.mxu0 %v25
  %88 = vmatprep.subr.mxu0 0.0
  %89 = vmatpush1.msra.mxu0 %v26
  %90 = vmatprep.subr.mxu0 0.0
  %91 = vmatpush1.msra.mxu0 %v27
  %92 = vmatprep.subr.mxu0 0.0
  %93 = vmatpush1.msra.mxu0 %v28
  %94 = vmatprep.subr.mxu0 0.0
  %95 = vmatpush1.msra.mxu0 %v29
  %96 = vmatprep.subr.mxu0 0.0
  %97 = vmatpush1.msra.mxu0 %v30
  %98 = vmatprep.subr.mxu0 0.0
  %99 = vmatpush1.msra.mxu0 %v31
  %100 = vmatprep.subr.mxu0 0.0
  %101 = vmatpush1.msra.mxu0 %v32
  %102 = vmatprep.subr.mxu0 0.0
  %103 = vmatpush1.msra.mxu0 %v33
  %104 = vmatprep.subr.mxu0 0.0
  %105 = vmatpush1.msra.mxu0 %v34
  %106 = vmatprep.subr.mxu0 0.0
  %107 = vmatpush1.msra.mxu0 %v35
  %108 = vmatprep.subr.mxu0 0.0
  %109 = vmatpush1.msra.mxu0 %v36
  %110 = vmatprep.subr.mxu0 0.0
  %111 = vmatpush1.msra.mxu0 %v37
  %112 = vmatprep.subr.mxu0 0.0
  %113 = vmatpush1.msra.mxu0 %v38
  %114 = vmatprep.subr.mxu0 0.0
  %115 = vmatpush1.msra.mxu0 %v39
  %116 = vmatprep.subr.mxu0 0.0
  %117 = vmatpush1.msra.mxu0 %v40
  %118 = vmatprep.subr.mxu0 0.0
  %119 = vmatpush1.msra.mxu0 %v80
  %120 = vmatprep.subr.mxu0 0.0
  %121 = vmatpush1.msra.mxu0 0.0
  %122 = vmatprep.subr.mxu0 0.0
  %123 = vmatpush1.msra.mxu0 0.0
  %124 = vmatprep.subr.mxu0 0.0
  %125 = vmatpush1.msra.mxu0 0.0
  %126 = vmatprep.subr.mxu0 0.0
  %127 = vmatpush1.msra.mxu0 0.0
  %128 = vmatprep.subr.mxu0 0.0
  %129 = vmatpush1.msra.mxu0 0.0
  %130 = vmatprep.subr.mxu0 0.0
  %131 = vmatpush1.msra.mxu0 0.0
  %132 = vmatprep.subr.mxu0 0.0
  %133 = vmatpush1.msra.mxu0 0.0
  %134 = vmatprep.subr.mxu0 0.0
  %135 = vmatpush1.msra.mxu0 0.0
  %136 = vmatprep.subr.mxu0 0.0
  %137 = vmatpush1.msra.mxu0 0.0
  %138 = vmatprep.subr.mxu0 0.0
  %139 = vmatpush1.msra.mxu0 0.0
  %140 = vmatprep.subr.mxu0 0.0
  %141 = vmatpush1.msra.mxu0 0.0
  %142 = vmatprep.subr.mxu0 0.0
  %143 = vmatpush1.msra.mxu0 0.0
  %144 = vmatprep.subr.mxu0 0.0
  %145 = vmatpush1.msra.mxu0 0.0
  %146 = vmatprep.mubr.f32.mxu0 %v58
  %147 = vmatmul.mubr.f32.gmra.mrb[0].mxu0 %v42
  %v148 = vpop.f32.mrb[0].mxu0
  %v149 = vadd.f32 0.0, %v148
  %v150 = vpop.f32.mrb[0].mxu0
  %151 = vmatprep.mubr.f32.mxu0 %v61
  %152 = vmatmul.mubr.f32.gmra.mrb[0].mxu0 %v44
  %v153 = vpop.f32.mrb[0].mxu0
  %v154 = vadd.f32 0.0, %v153
  %v155 = vpop.f32.mrb[0].mxu0
  %156 = vmatprep.mubr.f32.mxu0 %v64
  %157 = vmatmul.mubr.f32.gmra.mrb[0].mxu0 %v46
  %v158 = vpop.f32.mrb[0].mxu0
  %v159 = vadd.f32 0.0, %v158
  %v160 = vpop.f32.mrb[0].mxu0
  %161 = vmatprep.mubr.f32.mxu0 %v67
  %162 = vmatmul.mubr.f32.gmra.mrb[0].mxu0 %v48
  %v163 = vpop.f32.mrb[0].mxu0
  %v164 = vadd.f32 0.0, %v163
  %v165 = vpop.f32.mrb[0].mxu0
  %166 = vmatprep.mubr.f32.mxu0 %v70
  %167 = vmatmul.mubr.f32.gmra.mrb[0].mxu0 %v50
  %v168 = vpop.f32.mrb[0].mxu0
  %v169 = vadd.f32 0.0, %v168
  %v170 = vpop.f32.mrb[0].mxu0
  %171 = vmatprep.mubr.f32.mxu0 %v73
  %172 = vmatmul.mubr.f32.gmra.mrb[0].mxu0 %v52
  %v173 = vpop.f32.mrb[0].mxu0
  %v174 = vadd.f32 0.0, %v173
  %v175 = vpop.f32.mrb[0].mxu0
  %176 = vmatprep.mubr.f32.mxu0 %v76
  %177 = vmatmul.mubr.f32.gmra.mrb[0].mxu0 %v54
  %v178 = vpop.f32.mrb[0].mxu0
  %v179 = vadd.f32 0.0, %v178
  %v180 = vpop.f32.mrb[0].mxu0
  %181 = vdwg.mxu0
  %v182 = vld [vmem:[%s1] sm:$0xff]
  %v183 = vld [vmem:[%s1 + $0x8] sm:$0xff]
  %v184 = vld [vmem:[%s1 + $0x10] sm:$0xff]
  %v185 = vld [vmem:[%s1 + $0x18] sm:$0xff]
  %v186 = vld [vmem:[%s1 + $0x20] sm:$0xff]
  %v187 = vld [vmem:[%s1 + $0x28] sm:$0xff]
  %v188 = vld [vmem:[%s1 + $0x30] sm:$0xff]
  %v189 = vld [vmem:[%s1 + $0x38] sm:$0xff]
  %v190 = vld [vmem:[%s1 + $0x40] sm:$0xff]
  %v191 = vld [vmem:[%s1 + $0x48] sm:$0xff]
  %v192 = vld [vmem:[%s1 + $0x50] sm:$0xff]
  %v193 = vld [vmem:[%s1 + $0x58] sm:$0xff]
  %v194 = vld [vmem:[%s1 + $0x60] sm:$0x3]
  %v195 = vld [vmem:[%s1 + $0x68] sm:$0x3]
  %v197 = vsel %vm56, %v183, 0
  %v200 = vsel %vm56, %v185, 0
  %v203 = vsel %vm56, %v187, 0
  %v206 = vsel %vm56, %v189, 0
  %v209 = vsel %vm56, %v191, 0
  %v212 = vsel %vm56, %v193, 0
  %v215 = vsel %vm56, %v195, 0
  %217 = vmatprep.subr.mxu0 0.0
  %218 = vmatpush1.msra.mxu0 %v23
  %219 = vmatprep.subr.mxu0 0.0
  %220 = vmatpush1.msra.mxu0 %v24
  %221 = vmatprep.subr.mxu0 0.0
  %222 = vmatpush1.msra.mxu0 %v25
  %223 = vmatprep.subr.mxu0 0.0
  %224 = vmatpush1.msra.mxu0 %v26
  %225 = vmatprep.subr.mxu0 0.0
  %226 = vmatpush1.msra.mxu0 %v27
  %227 = vmatprep.subr.mxu0 0.0
  %228 = vmatpush1.msra.mxu0 %v28
  %229 = vmatprep.subr.mxu0 0.0
  %230 = vmatpush1.msra.mxu0 %v29
  %231 = vmatprep.subr.mxu0 0.0
  %232 = vmatpush1.msra.mxu0 %v30
  %233 = vmatprep.subr.mxu0 0.0
  %234 = vmatpush1.msra.mxu0 %v31
  %235 = vmatprep.subr.mxu0 0.0
  %236 = vmatpush1.msra.mxu0 %v32
  %237 = vmatprep.subr.mxu0 0.0
  %238 = vmatpush1.msra.mxu0 %v33
  %239 = vmatprep.subr.mxu0 0.0
  %240 = vmatpush1.msra.mxu0 %v34
  %241 = vmatprep.subr.mxu0 0.0
  %242 = vmatpush1.msra.mxu0 %v35
  %243 = vmatprep.subr.mxu0 0.0
  %244 = vmatpush1.msra.mxu0 %v36
  %245 = vmatprep.subr.mxu0 0.0
  %246 = vmatpush1.msra.mxu0 %v37
  %247 = vmatprep.subr.mxu0 0.0
  %248 = vmatpush1.msra.mxu0 %v38
  %249 = vmatprep.subr.mxu0 0.0
  %250 = vmatpush1.msra.mxu0 %v39
  %251 = vmatprep.subr.mxu0 0.0
  %252 = vmatpush1.msra.mxu0 %v40
  %253 = vmatprep.subr.mxu0 0.0
  %254 = vmatpush1.msra.mxu0 %v80
  %255 = vmatprep.subr.mxu0 0.0
  %256 = vmatpush1.msra.mxu0 0.0
  %257 = vmatprep.subr.mxu0 0.0
  %258 = vmatpush1.msra.mxu0 0.0
  %259 = vmatprep.subr.mxu0 0.0
  %260 = vmatpush1.msra.mxu0 0.0
  %261 = vmatprep.subr.mxu0 0.0
  %262 = vmatpush1.msra.mxu0 0.0
  %263 = vmatprep.subr.mxu0 0.0
  %264 = vmatpush1.msra.mxu0 0.0
  %265 = vmatprep.subr.mxu0 0.0
  %266 = vmatpush1.msra.mxu0 0.0
  %267 = vmatprep.subr.mxu0 0.0
  %268 = vmatpush1.msra.mxu0 0.0
  %269 = vmatprep.subr.mxu0 0.0
  %270 = vmatpush1.msra.mxu0 0.0
  %271 = vmatprep.subr.mxu0 0.0
  %272 = vmatpush1.msra.mxu0 0.0
  %273 = vmatprep.subr.mxu0 0.0
  %274 = vmatpush1.msra.mxu0 0.0
  %275 = vmatprep.subr.mxu0 0.0
  %276 = vmatpush1.msra.mxu0 0.0
  %277 = vmatprep.subr.mxu0 0.0
  %278 = vmatpush1.msra.mxu0 0.0
  %279 = vmatprep.subr.mxu0 0.0
  %280 = vmatpush1.msra.mxu0 0.0
  %281 = vmatprep.mubr.f32.mxu0 %v197
  %282 = vmatmul.mubr.f32.gmra.mrb[0].mxu0 %v182
  %v283 = vpop.f32.mrb[0].mxu0
  %v284 = vadd.f32 0.0, %v283
  %v285 = vpop.f32.mrb[0].mxu0
  %286 = vmatprep.mubr.f32.mxu0 %v200
  %287 = vmatmul.mubr.f32.gmra.mrb[0].mxu0 %v184
  %v288 = vpop.f32.mrb[0].mxu0
  %v289 = vadd.f32 0.0, %v288
  %v290 = vpop.f32.mrb[0].mxu0
  %291 = vmatprep.mubr.f32.mxu0 %v203
  %292 = vmatmul.mubr.f32.gmra.mrb[0].mxu0 %v186
  %v293 = vpop.f32.mrb[0].mxu0
  %v294 = vadd.f32 0.0, %v293
  %v295 = vpop.f32.mrb[0].mxu0
  %296 = vmatprep.mubr.f32.mxu0 %v206
  %297 = vmatmul.mubr.f32.gmra.mrb[0].mxu0 %v188
  %v298 = vpop.f32.mrb[0].mxu0
  %v299 = vadd.f32 0.0, %v298
  %v300 = vpop.f32.mrb[0].mxu0
  %301 = vmatprep.mubr.f32.mxu0 %v209
  %302 = vmatmul.mubr.f32.gmra.mrb[0].mxu0 %v190
  %v303 = vpop.f32.mrb[0].mxu0
  %v304 = vadd.f32 0.0, %v303
  %v305 = vpop.f32.mrb[0].mxu0
  %306 = vmatprep.mubr.f32.mxu0 %v212
  %307 = vmatmul.mubr.f32.gmra.mrb[0].mxu0 %v192
  %v308 = vpop.f32.mrb[0].mxu0
  %v309 = vadd.f32 0.0, %v308
  %v310 = vpop.f32.mrb[0].mxu0
  %311 = vmatprep.mubr.f32.mxu0 %v215
  %312 = vmatmul.mubr.f32.gmra.mrb[0].mxu0 %v194
  %v313 = vpop.f32.mrb[0].mxu0
  %v314 = vadd.f32 0.0, %v313
  %v315 = vpop.f32.mrb[0].mxu0
  %316 = vdwg.mxu0
  %v317 = vld [vmem:[%s2] sm:$0xff]
  %v318 = vld [vmem:[%s2 + $0x8] sm:$0xff]
  %v319 = vld [vmem:[%s2 + $0x10] sm:$0xff]
  %v320 = vld [vmem:[%s2 + $0x18] sm:$0xff]
  %v321 = vld [vmem:[%s2 + $0x20] sm:$0xff]
  %v322 = vld [vmem:[%s2 + $0x28] sm:$0xff]
  %v323 = vld [vmem:[%s2 + $0x30] sm:$0xff]
  %v324 = vld [vmem:[%s2 + $0x38] sm:$0xff]
  %v325 = vld [vmem:[%s2 + $0x40] sm:$0xff]
  %v326 = vld [vmem:[%s2 + $0x48] sm:$0xff]
  %v327 = vld [vmem:[%s2 + $0x50] sm:$0xff]
  %v328 = vld [vmem:[%s2 + $0x58] sm:$0xff]
  %v329 = vld [vmem:[%s2 + $0x60] sm:$0x3]
  %v330 = vld [vmem:[%s2 + $0x68] sm:$0x3]
  %v332 = vsel %vm56, %v318, 0
  %v335 = vsel %vm56, %v320, 0
  %v338 = vsel %vm56, %v322, 0
  %v341 = vsel %vm56, %v324, 0
  %v344 = vsel %vm56, %v326, 0
  %v347 = vsel %vm56, %v328, 0
  %v350 = vsel %vm56, %v330, 0
  %352 = vmatprep.subr.mxu0 0.0
  %353 = vmatpush1.msra.mxu0 %v23
  %354 = vmatprep.subr.mxu0 0.0
  %355 = vmatpush1.msra.mxu0 %v24
  %356 = vmatprep.subr.mxu0 0.0
  %357 = vmatpush1.msra.mxu0 %v25
  %358 = vmatprep.subr.mxu0 0.0
  %359 = vmatpush1.msra.mxu0 %v26
  %360 = vmatprep.subr.mxu0 0.0
  %361 = vmatpush1.msra.mxu0 %v27
  %362 = vmatprep.subr.mxu0 0.0
  %363 = vmatpush1.msra.mxu0 %v28
  %364 = vmatprep.subr.mxu0 0.0
  %365 = vmatpush1.msra.mxu0 %v29
  %366 = vmatprep.subr.mxu0 0.0
  %367 = vmatpush1.msra.mxu0 %v30
  %368 = vmatprep.subr.mxu0 0.0
  %369 = vmatpush1.msra.mxu0 %v31
  %370 = vmatprep.subr.mxu0 0.0
  %371 = vmatpush1.msra.mxu0 %v32
  %372 = vmatprep.subr.mxu0 0.0
  %373 = vmatpush1.msra.mxu0 %v33
  %374 = vmatprep.subr.mxu0 0.0
  %375 = vmatpush1.msra.mxu0 %v34
  %376 = vmatprep.subr.mxu0 0.0
  %377 = vmatpush1.msra.mxu0 %v35
  %378 = vmatprep.subr.mxu0 0.0
  %379 = vmatpush1.msra.mxu0 %v36
  %380 = vmatprep.subr.mxu0 0.0
  %381 = vmatpush1.msra.mxu0 %v37
  %382 = vmatprep.subr.mxu0 0.0
  %383 = vmatpush1.msra.mxu0 %v38
  %384 = vmatprep.subr.mxu0 0.0
  %385 = vmatpush1.msra.mxu0 %v39
  %386 = vmatprep.subr.mxu0 0.0
  %387 = vmatpush1.msra.mxu0 %v40
  %388 = vmatprep.subr.mxu0 0.0
  %389 = vmatpush1.msra.mxu0 %v80
  %390 = vmatprep.subr.mxu0 0.0
  %391 = vmatpush1.msra.mxu0 0.0
  %392 = vmatprep.subr.mxu0 0.0
  %393 = vmatpush1.msra.mxu0 0.0
  %394 = vmatprep.subr.mxu0 0.0
  %395 = vmatpush1.msra.mxu0 0.0
  %396 = vmatprep.subr.mxu0 0.0
  %397 = vmatpush1.msra.mxu0 0.0
  %398 = vmatprep.subr.mxu0 0.0
  %399 = vmatpush1.msra.mxu0 0.0
  %400 = vmatprep.subr.mxu0 0.0
  %401 = vmatpush1.msra.mxu0 0.0
  %402 = vmatprep.subr.mxu0 0.0
  %403 = vmatpush1.msra.mxu0 0.0
  %404 = vmatprep.subr.mxu0 0.0
  %405 = vmatpush1.msra.mxu0 0.0
  %406 = vmatprep.subr.mxu0 0.0
  %407 = vmatpush1.msra.mxu0 0.0
  %408 = vmatprep.subr.mxu0 0.0
  %409 = vmatpush1.msra.mxu0 0.0
  %410 = vmatprep.subr.mxu0 0.0
  %411 = vmatpush1.msra.mxu0 0.0
  %412 = vmatprep.subr.mxu0 0.0
  %413 = vmatpush1.msra.mxu0 0.0
  %414 = vmatprep.subr.mxu0 0.0
  %415 = vmatpush1.msra.mxu0 0.0
  %416 = vmatprep.mubr.f32.mxu0 %v332
  %417 = vmatmul.mubr.f32.gmra.mrb[0].mxu0 %v317
  %v418 = vpop.f32.mrb[0].mxu0
  %v419 = vadd.f32 0.0, %v418
  %v420 = vpop.f32.mrb[0].mxu0
  %421 = vmatprep.mubr.f32.mxu0 %v335
  %422 = vmatmul.mubr.f32.gmra.mrb[0].mxu0 %v319
  %v423 = vpop.f32.mrb[0].mxu0
  %v424 = vadd.f32 0.0, %v423
  %v425 = vpop.f32.mrb[0].mxu0
  %426 = vmatprep.mubr.f32.mxu0 %v338
  %427 = vmatmul.mubr.f32.gmra.mrb[0].mxu0 %v321
  %v428 = vpop.f32.mrb[0].mxu0
  %v429 = vadd.f32 0.0, %v428
  %v430 = vpop.f32.mrb[0].mxu0
  %431 = vmatprep.mubr.f32.mxu0 %v341
  %432 = vmatmul.mubr.f32.gmra.mrb[0].mxu0 %v323
  %v433 = vpop.f32.mrb[0].mxu0
  %v434 = vadd.f32 0.0, %v433
  %v435 = vpop.f32.mrb[0].mxu0
  %436 = vmatprep.mubr.f32.mxu0 %v344
  %437 = vmatmul.mubr.f32.gmra.mrb[0].mxu0 %v325
  %v438 = vpop.f32.mrb[0].mxu0
  %v439 = vadd.f32 0.0, %v438
  %v440 = vpop.f32.mrb[0].mxu0
  %441 = vmatprep.mubr.f32.mxu0 %v347
  %442 = vmatmul.mubr.f32.gmra.mrb[0].mxu0 %v327
  %v443 = vpop.f32.mrb[0].mxu0
  %v444 = vadd.f32 0.0, %v443
  %v445 = vpop.f32.mrb[0].mxu0
  %446 = vmatprep.mubr.f32.mxu0 %v350
  %447 = vmatmul.mubr.f32.gmra.mrb[0].mxu0 %v329
  %v448 = vpop.f32.mrb[0].mxu0
  %v449 = vadd.f32 0.0, %v448
  %v450 = vpop.f32.mrb[0].mxu0
  %451 = vdwg.mxu0
  %v452 = vld [vmem:[%s3] sm:$0xff]
  %v453 = vld [vmem:[%s3 + $0x8] sm:$0xff]
  %v454 = vld [vmem:[%s3 + $0x10] sm:$0xff]
  %v455 = vld [vmem:[%s3 + $0x18] sm:$0xff]
  %v456 = vld [vmem:[%s3 + $0x20] sm:$0xff]
  %v457 = vld [vmem:[%s3 + $0x28] sm:$0xff]
  %v458 = vld [vmem:[%s3 + $0x30] sm:$0xff]
  %v459 = vld [vmem:[%s3 + $0x38] sm:$0xff]
  %v460 = vld [vmem:[%s3 + $0x40] sm:$0xff]
  %v461 = vld [vmem:[%s3 + $0x48] sm:$0xff]
  %v462 = vld [vmem:[%s3 + $0x50] sm:$0xff]
  %v463 = vld [vmem:[%s3 + $0x58] sm:$0xff]
  %v464 = vld [vmem:[%s3 + $0x60] sm:$0x3]
  %v465 = vld [vmem:[%s3 + $0x68] sm:$0x3]
  %v467 = vsel %vm56, %v453, 0
  %v470 = vsel %vm56, %v455, 0
  %v473 = vsel %vm56, %v457, 0
  %v476 = vsel %vm56, %v459, 0
  %v479 = vsel %vm56, %v461, 0
  %v482 = vsel %vm56, %v463, 0
  %v485 = vsel %vm56, %v465, 0
  %487 = vmatprep.subr.mxu0 0.0
  %488 = vmatpush1.msra.mxu0 %v23
  %489 = vmatprep.subr.mxu0 0.0
  %490 = vmatpush1.msra.mxu0 %v24
  %491 = vmatprep.subr.mxu0 0.0
  %492 = vmatpush1.msra.mxu0 %v25
  %493 = vmatprep.subr.mxu0 0.0
  %494 = vmatpush1.msra.mxu0 %v26
  %495 = vmatprep.subr.mxu0 0.0
  %496 = vmatpush1.msra.mxu0 %v27
  %497 = vmatprep.subr.mxu0 0.0
  %498 = vmatpush1.msra.mxu0 %v28
  %499 = vmatprep.subr.mxu0 0.0
  %500 = vmatpush1.msra.mxu0 %v29
  %501 = vmatprep.subr.mxu0 0.0
  %502 = vmatpush1.msra.mxu0 %v30
  %503 = vmatprep.subr.mxu0 0.0
  %504 = vmatpush1.msra.mxu0 %v31
  %505 = vmatprep.subr.mxu0 0.0
  %506 = vmatpush1.msra.mxu0 %v32
  %507 = vmatprep.subr.mxu0 0.0
  %508 = vmatpush1.msra.mxu0 %v33
  %509 = vmatprep.subr.mxu0 0.0
  %510 = vmatpush1.msra.mxu0 %v34
  %511 = vmatprep.subr.mxu0 0.0
  %512 = vmatpush1.msra.mxu0 %v35
  %513 = vmatprep.subr.mxu0 0.0
  %514 = vmatpush1.msra.mxu0 %v36
  %515 = vmatprep.subr.mxu0 0.0
  %516 = vmatpush1.msra.mxu0 %v37
  %517 = vmatprep.subr.mxu0 0.0
  %518 = vmatpush1.msra.mxu0 %v38
  %519 = vmatprep.subr.mxu0 0.0
  %520 = vmatpush1.msra.mxu0 %v39
  %521 = vmatprep.subr.mxu0 0.0
  %522 = vmatpush1.msra.mxu0 %v40
  %523 = vmatprep.subr.mxu0 0.0
  %524 = vmatpush1.msra.mxu0 %v80
  %525 = vmatprep.subr.mxu0 0.0
  %526 = vmatpush1.msra.mxu0 0.0
  %527 = vmatprep.subr.mxu0 0.0
  %528 = vmatpush1.msra.mxu0 0.0
  %529 = vmatprep.subr.mxu0 0.0
  %530 = vmatpush1.msra.mxu0 0.0
  %531 = vmatprep.subr.mxu0 0.0
  %532 = vmatpush1.msra.mxu0 0.0
  %533 = vmatprep.subr.mxu0 0.0
  %534 = vmatpush1.msra.mxu0 0.0
  %535 = vmatprep.subr.mxu0 0.0
  %536 = vmatpush1.msra.mxu0 0.0
  %537 = vmatprep.subr.mxu0 0.0
  %538 = vmatpush1.msra.mxu0 0.0
  %539 = vmatprep.subr.mxu0 0.0
  %540 = vmatpush1.msra.mxu0 0.0
  %541 = vmatprep.subr.mxu0 0.0
  %542 = vmatpush1.msra.mxu0 0.0
  %543 = vmatprep.subr.mxu0 0.0
  %544 = vmatpush1.msra.mxu0 0.0
  %545 = vmatprep.subr.mxu0 0.0
  %546 = vmatpush1.msra.mxu0 0.0
  %547 = vmatprep.subr.mxu0 0.0
  %548 = vmatpush1.msra.mxu0 0.0
  %549 = vmatprep.subr.mxu0 0.0
  %550 = vmatpush1.msra.mxu0 0.0
  %551 = vmatprep.mubr.f32.mxu0 %v467
  %552 = vmatmul.mubr.f32.gmra.mrb[0].mxu0 %v452
  %v553 = vpop.f32.mrb[0].mxu0
  %v554 = vadd.f32 0.0, %v553
  %v555 = vpop.f32.mrb[0].mxu0
  %556 = vmatprep.mubr.f32.mxu0 %v470
  %557 = vmatmul.mubr.f32.gmra.mrb[0].mxu0 %v454
  %v558 = vpop.f32.mrb[0].mxu0
  %v559 = vadd.f32 0.0, %v558
  %v560 = vpop.f32.mrb[0].mxu0
  %561 = vmatprep.mubr.f32.mxu0 %v473
  %562 = vmatmul.mubr.f32.gmra.mrb[0].mxu0 %v456
  %v563 = vpop.f32.mrb[0].mxu0
  %v564 = vadd.f32 0.0, %v563
  %v565 = vpop.f32.mrb[0].mxu0
  %566 = vmatprep.mubr.f32.mxu0 %v476
  %567 = vmatmul.mubr.f32.gmra.mrb[0].mxu0 %v458
  %v568 = vpop.f32.mrb[0].mxu0
  %v569 = vadd.f32 0.0, %v568
  %v570 = vpop.f32.mrb[0].mxu0
  %571 = vmatprep.mubr.f32.mxu0 %v479
  %572 = vmatmul.mubr.f32.gmra.mrb[0].mxu0 %v460
  %v573 = vpop.f32.mrb[0].mxu0
  %v574 = vadd.f32 0.0, %v573
  %v575 = vpop.f32.mrb[0].mxu0
  %576 = vmatprep.mubr.f32.mxu0 %v482
  %577 = vmatmul.mubr.f32.gmra.mrb[0].mxu0 %v462
  %v578 = vpop.f32.mrb[0].mxu0
  %v579 = vadd.f32 0.0, %v578
  %v580 = vpop.f32.mrb[0].mxu0
  %581 = vmatprep.mubr.f32.mxu0 %v485
  %582 = vmatmul.mubr.f32.gmra.mrb[0].mxu0 %v464
  %v583 = vpop.f32.mrb[0].mxu0
  %v584 = vadd.f32 0.0, %v583
  %v585 = vpop.f32.mrb[0].mxu0
  %586 = vdwg.mxu0
  %v587 = vmax.f32 %v149, %v284
  %v588 = vmax.f32 %v154, %v289
  %v589 = vmax.f32 %v159, %v294
  %v590 = vmax.f32 %v164, %v299
  %v591 = vmax.f32 %v169, %v304
  %v592 = vmax.f32 %v174, %v309
  %v593 = vmax.f32 %v179, %v314
  %v594 = vmax.f32 %v419, %v554
  %v595 = vmax.f32 %v424, %v559
  %v596 = vmax.f32 %v429, %v564
  %v597 = vmax.f32 %v434, %v569
  %v598 = vmax.f32 %v439, %v574
  %v599 = vmax.f32 %v444, %v579
  %v600 = vmax.f32 %v449, %v584
  %v601 = vmax.f32 %v587, %v594
  %v602 = vmax.f32 %v588, %v595
  %v603 = vmax.f32 %v589, %v596
  %v604 = vmax.f32 %v590, %v597
  %v605 = vmax.f32 %v591, %v598
  %v606 = vmax.f32 %v592, %v599
  %v607 = vmax.f32 %v593, %v600
  %v608 = vld [vmem:[%s5] sm:$0x1]
  %v610 = vlaneseq
  %v611 = vshrl.u32 %v610, 7
  %v612 = vsub.s32 0, %v611
  %v613 = vrot.slane %v608, %v612
  %v615 = vadd.f32 %v601, %v613
  %v616 = vadd.f32 %v602, %v613
  %v617 = vadd.f32 %v603, %v613
  %v618 = vadd.f32 %v604, %v613
  %v619 = vadd.f32 %v605, %v613
  %v620 = vadd.f32 %v606, %v613
  %v621 = vadd.f32 %v607, %v613
  %v622 = vmax.f32 %v615, 0.0
  %v623 = vmax.f32 %v616, 0.0
  %v624 = vmax.f32 %v617, 0.0
  %v625 = vmax.f32 %v618, 0.0
  %v626 = vmax.f32 %v619, 0.0
  %v627 = vmax.f32 %v620, 0.0
  %v628 = vmax.f32 %v621, 0.0
  %vm629 = vcmask 130048
  %630 = vst.msk [vmem:[%s6] sm:$0xff] %vm629, %v622
  %631 = vst.msk [vmem:[%s6 + $0x8] sm:$0xff] %vm629, %v623
  %632 = vst.msk [vmem:[%s6 + $0x10] sm:$0xff] %vm629, %v624
  %633 = vst.msk [vmem:[%s6 + $0x18] sm:$0xff] %vm629, %v625
  %634 = vst.msk [vmem:[%s6 + $0x20] sm:$0xff] %vm629, %v626
  %635 = vst.msk [vmem:[%s6 + $0x28] sm:$0xff] %vm629, %v627
  %vm636 = vcmask 123904
  %637 = vst.msk [vmem:[%s6 + $0x30] sm:$0x3] %vm636, %v628
  // Predicated region
  $region26: #{simple_cnn_2_forward.4} parent=0 // pred_check
    _
  $region27: #{simple_cnn_2_forward.4} parent=0 // pred_check_branch
    %639 = sbr.rel (0) target = $region29
  $region28: #{simple_cnn_2_forward.4} parent=0 // pred_region
    _
  $region29: #{simple_cnn_2_forward.4} parent=0 // pred_fallthru
    _
  // Predicated region
  $region30: #{simple_cnn_2_forward.4} parent=0 // pred_check
    _
  $region31: #{simple_cnn_2_forward.4} parent=0 // pred_check_branch
    %641 = sbr.rel (0) target = $region33
  $region32: #{simple_cnn_2_forward.4} parent=0 // pred_region
    _
  $region33: #{simple_cnn_2_forward.4} parent=0 // pred_fallthru
    _

// kernel: simple_cnn_2_forward.5
$region0: #{simple_cnn_2_forward.5}
  #allocation0 [shape = 'u32[]', space=smem, size = 0x4, offset = 0x4, fixed_abs, tag = 'smem constant byte address 0x4 - core index']
  #allocation1 [shape = 'u32[144,128]{1,0:T(1,128)}', space=vmem, size = 0x12000, scoped, tag = 'internal scratch']
  %s0 = inlined_call_operand.vmem [shape: f32[2,400], index: 0, kind: input, shape index: {}]
  %s1 = inlined_call_operand.vmem [shape: f32[400,120], index: 1, kind: input, shape index: {}]
  %s2 = inlined_call_operand.vmem [shape: f32[1,120], index: 2, kind: input, shape index: {}]
  %s3 = inlined_call_operand.vmem [shape: f32[120,84], index: 3, kind: input, shape index: {}]
  %s4 = inlined_call_operand.vmem [shape: f32[1,84], index: 4, kind: input, shape index: {}]
  %s5 = inlined_call_operand.vmem [shape: f32[84,10], index: 5, kind: input, shape index: {}]
  %s6 = inlined_call_operand.vmem [shape: f32[1,10], index: 6, kind: input, shape index: {}]
  %s7 = inlined_call_operand.hbm [shape: f32[2,10], index: 7, kind: output, shape index: {}]
  %s8 = sld [smem:[#allocation0]]
  $region38: #{simple_cnn_2_forward.5} parent=0
    _
  %s10 = ssub.s32 1, %s8
  %s11 = scalar_select 0, %s10, %s8
  $region1: #{simple_cnn_2_forward.5} parent=0
    #allocation2 [shape = 'u8[1024]{0}', space=vmem, size = 0x400, scoped, tag = 'output window, operand 0, single buffered']
    #allocation3 [shape = 's32[1]{0}', space=sflag, size = 0x4, scoped, tag = 'scoped memory for simple_cnn_2_forward.5']
    %12 = vsyncpa [#allocation3], 0
    // Predicated region
    $region2: #{simple_cnn_2_forward.5} parent=1 // pred_check
      _
    $region3: #{simple_cnn_2_forward.5} parent=1 // pred_check_branch
      %14 = sbr.rel (0) target = $region5
    $region4: #{simple_cnn_2_forward.5} parent=1 // pred_region
      _
    $region5: #{simple_cnn_2_forward.5} parent=1 // pred_fallthru
      _
    // Predicated region
    $region6: #{simple_cnn_2_forward.5} parent=1 // pred_check
      _
    $region7: #{simple_cnn_2_forward.5} parent=1 // pred_check_branch
      %16 = sbr.rel (0) target = $region9
    $region8: #{simple_cnn_2_forward.5} parent=1 // pred_region
      _
    $region9: #{simple_cnn_2_forward.5} parent=1 // pred_fallthru
      _
    // Predicated region
    $region10: #{simple_cnn_2_forward.5} parent=1 // pred_check
      _
    $region11: #{simple_cnn_2_forward.5} parent=1 // pred_check_branch
      %18 = sbr.rel (0) target = $region13
    $region12: #{simple_cnn_2_forward.5} parent=1 // pred_region
      _
    $region13: #{simple_cnn_2_forward.5} parent=1 // pred_fallthru
      _
    // Predicated region
    $region14: #{simple_cnn_2_forward.5} parent=1 // pred_check
      _
    $region15: #{simple_cnn_2_forward.5} parent=1 // pred_check_branch
      %20 = sbr.rel (0) target = $region17
    $region16: #{simple_cnn_2_forward.5} parent=1 // pred_region
      _
    $region17: #{simple_cnn_2_forward.5} parent=1 // pred_fallthru
      _
    // Predicated region
    $region18: #{simple_cnn_2_forward.5} parent=1 // pred_check
      _
    $region19: #{simple_cnn_2_forward.5} parent=1 // pred_check_branch
      %22 = sbr.rel (0) target = $region21
    $region20: #{simple_cnn_2_forward.5} parent=1 // pred_region
      _
    $region21: #{simple_cnn_2_forward.5} parent=1 // pred_fallthru
      _
    // Predicated region
    $region22: #{simple_cnn_2_forward.5} parent=1 // pred_check
      _
    $region23: #{simple_cnn_2_forward.5} parent=1 // pred_check_branch
      %24 = sbr.rel (0) target = $region25
    $region24: #{simple_cnn_2_forward.5} parent=1 // pred_region
      _
    $region25: #{simple_cnn_2_forward.5} parent=1 // pred_fallthru
      _
    // Predicated region
    $region26: #{simple_cnn_2_forward.5} parent=1 // pred_check
      _
    $region27: #{simple_cnn_2_forward.5} parent=1 // pred_check_branch
      %26 = sbr.rel (0) target = $region29
    $region28: #{simple_cnn_2_forward.5} parent=1 // pred_region
      _
    $region29: #{simple_cnn_2_forward.5} parent=1 // pred_fallthru
      _
    %v27 = vld [vmem:[%s0] sm:$0xff]
    %v28 = vld [vmem:[%s1] sm:$0xff]
    %v29 = vld [vmem:[%s1 + $0x8] sm:$0xff]
    %v30 = vld [vmem:[%s1 + $0x10] sm:$0xff]
    %v31 = vld [vmem:[%s1 + $0x18] sm:$0xff]
    %v32 = vld [vmem:[%s1 + $0x20] sm:$0xff]
    %v33 = vld [vmem:[%s1 + $0x28] sm:$0xff]
    %v34 = vld [vmem:[%s1 + $0x30] sm:$0xff]
    %v35 = vld [vmem:[%s1 + $0x38] sm:$0xff]
    %v36 = vld [vmem:[%s1 + $0x40] sm:$0xff]
    %v37 = vld [vmem:[%s1 + $0x48] sm:$0xff]
    %v38 = vld [vmem:[%s1 + $0x50] sm:$0xff]
    %v39 = vld [vmem:[%s1 + $0x58] sm:$0xff]
    %v40 = vld [vmem:[%s1 + $0x60] sm:$0xff]
    %v41 = vld [vmem:[%s1 + $0x68] sm:$0xff]
    %v42 = vld [vmem:[%s1 + $0x70] sm:$0xff]
    %v43 = vld [vmem:[%s1 + $0x78] sm:$0xff]
    %v44 = vld [vmem:[%s1 + $0x80] sm:$0xff]
    %v45 = vld [vmem:[%s1 + $0x88] sm:$0xff]
    %v46 = vld [vmem:[%s1 + $0x90] sm:$0xff]
    %v47 = vld [vmem:[%s1 + $0x98] sm:$0xff]
    %v48 = vld [vmem:[%s1 + $0xa0] sm:$0xff]
    %v49 = vld [vmem:[%s1 + $0xa8] sm:$0xff]
    %v50 = vld [vmem:[%s1 + $0xb0] sm:$0xff]
    %v51 = vld [vmem:[%s1 + $0xb8] sm:$0xff]
    %v52 = vld [vmem:[%s1 + $0xc0] sm:$0xff]
    %v53 = vld [vmem:[%s1 + $0xc8] sm:$0xff]
    %v54 = vld [vmem:[%s1 + $0xd0] sm:$0xff]
    %v55 = vld [vmem:[%s1 + $0xd8] sm:$0xff]
    %v56 = vld [vmem:[%s1 + $0xe0] sm:$0xff]
    %v57 = vld [vmem:[%s1 + $0xe8] sm:$0xff]
    %v58 = vld [vmem:[%s1 + $0xf0] sm:$0xff]
    %v59 = vld [vmem:[%s1 + $0xf8] sm:$0xff]
    %v60 = vld [vmem:[%s1 + $0x100] sm:$0xff]
    %v61 = vld [vmem:[%s1 + $0x108] sm:$0xff]
    %v62 = vld [vmem:[%s1 + $0x110] sm:$0xff]
    %v63 = vld [vmem:[%s1 + $0x118] sm:$0xff]
    %v64 = vld [vmem:[%s1 + $0x120] sm:$0xff]
    %v65 = vld [vmem:[%s1 + $0x128] sm:$0xff]
    %v66 = vld [vmem:[%s1 + $0x130] sm:$0xff]
    %v67 = vld [vmem:[%s1 + $0x138] sm:$0xff]
    %v68 = vld [vmem:[%s1 + $0x140] sm:$0xff]
    %v69 = vld [vmem:[%s1 + $0x148] sm:$0xff]
    %v70 = vld [vmem:[%s1 + $0x150] sm:$0xff]
    %v71 = vld [vmem:[%s1 + $0x158] sm:$0xff]
    %v72 = vld [vmem:[%s1 + $0x160] sm:$0xff]
    %v73 = vld [vmem:[%s1 + $0x168] sm:$0xff]
    %v74 = vld [vmem:[%s1 + $0x170] sm:$0xff]
    %v75 = vld [vmem:[%s1 + $0x178] sm:$0xff]
    %v76 = vld [vmem:[%s1 + $0x180] sm:$0xff]
    %v77 = vld [vmem:[%s1 + $0x188] sm:$0xff]
    %v78 = vld [vmem:[%s2] sm:$0x1]
    %v80 = vlaneseq
    %v81 = vshrl.u32 %v80, 7
    %v82 = vsub.s32 0, %v81
    %v83 = vrot.slane %v78, %v82
    %v86 = vcombine.high %v27, %v27
    %v88 = vunpack.c.l.s4 1983009808
    %v89 = vunpack.c.0.s8 %v88
    %v90 = vlaneseq
    %v91 = vshrl.u32 %v90, 7
    %v92 = vsub.s32 %v89, %v91
    %v93 = vrot.slane %v27, %v92
    %v95 = vunpack.c.l.s4 1983009808
    %v96 = vunpack.c.0.s8 %v95
    %v97 = vlaneseq
    %v98 = vshrl.u32 %v97, 7
    %v99 = vsub.s32 %v96, %v98
    %v100 = vrot.slane %v86, %v99
    %v101 = vcombine.high %v93, %v93
    %v102 = vcombine.high %v100, %v100
    %vm106 = vcmask 130048
    %v107 = vsel %vm106, %v102, 0
    %109 = vmatprep.subr.mxu0 0.0
    %110 = vmatpush1.msra.mxu0 %v28
    %111 = vmatprep.subr.mxu0 0.0
    %112 = vmatpush1.msra.mxu0 %v29
    %113 = vmatprep.subr.mxu0 0.0
    %114 = vmatpush1.msra.mxu0 %v30
    %115 = vmatprep.subr.mxu0 0.0
    %116 = vmatpush1.msra.mxu0 %v31
    %117 = vmatprep.subr.mxu0 0.0
    %118 = vmatpush1.msra.mxu0 %v32
    %119 = vmatprep.subr.mxu0 0.0
    %120 = vmatpush1.msra.mxu0 %v33
    %121 = vmatprep.subr.mxu0 0.0
    %122 = vmatpush1.msra.mxu0 %v34
    %123 = vmatprep.subr.mxu0 0.0
    %124 = vmatpush1.msra.mxu0 %v35
    %125 = vmatprep.subr.mxu0 0.0
    %126 = vmatpush1.msra.mxu0 %v36
    %127 = vmatprep.subr.mxu0 0.0
    %128 = vmatpush1.msra.mxu0 %v37
    %129 = vmatprep.subr.mxu0 0.0
    %130 = vmatpush1.msra.mxu0 %v38
    %131 = vmatprep.subr.mxu0 0.0
    %132 = vmatpush1.msra.mxu0 %v39
    %133 = vmatprep.subr.mxu0 0.0
    %134 = vmatpush1.msra.mxu0 %v40
    %135 = vmatprep.subr.mxu0 0.0
    %136 = vmatpush1.msra.mxu0 %v41
    %137 = vmatprep.subr.mxu0 0.0
    %138 = vmatpush1.msra.mxu0 %v42
    %139 = vmatprep.subr.mxu0 0.0
    %140 = vmatpush1.msra.mxu0 %v43
    %141 = vmatprep.subr.mxu0 0.0
    %142 = vmatpush1.msra.mxu0 %v44
    %143 = vmatprep.subr.mxu0 0.0
    %144 = vmatpush1.msra.mxu0 %v45
    %145 = vmatprep.subr.mxu0 0.0
    %146 = vmatpush1.msra.mxu0 %v46
    %147 = vmatprep.subr.mxu0 0.0
    %148 = vmatpush1.msra.mxu0 %v47
    %149 = vmatprep.subr.mxu0 0.0
    %150 = vmatpush1.msra.mxu0 %v48
    %151 = vmatprep.subr.mxu0 0.0
    %152 = vmatpush1.msra.mxu0 %v49
    %153 = vmatprep.subr.mxu0 0.0
    %154 = vmatpush1.msra.mxu0 %v50
    %155 = vmatprep.subr.mxu0 0.0
    %156 = vmatpush1.msra.mxu0 %v51
    %157 = vmatprep.subr.mxu0 0.0
    %158 = vmatpush1.msra.mxu0 %v52
    %159 = vmatprep.subr.mxu0 0.0
    %160 = vmatpush1.msra.mxu0 %v53
    %161 = vmatprep.subr.mxu0 0.0
    %162 = vmatpush1.msra.mxu0 %v54
    %163 = vmatprep.subr.mxu0 0.0
    %164 = vmatpush1.msra.mxu0 %v55
    %165 = vmatprep.subr.mxu0 0.0
    %166 = vmatpush1.msra.mxu0 %v56
    %167 = vmatprep.subr.mxu0 0.0
    %168 = vmatpush1.msra.mxu0 %v57
    %169 = vmatprep.subr.mxu0 0.0
    %170 = vmatpush1.msra.mxu0 %v58
    %171 = vmatprep.subr.mxu0 0.0
    %172 = vmatpush1.msra.mxu0 %v59
    %173 = vmatprep.mubr.f32.mxu0 %v101
    %174 = vmatmul.mubr.f32.gmra.mrb[0].mxu0 %v93
    %v175 = vpop.f32.mrb[0].mxu0
    %v176 = vadd.f32 %v83, %v175
    %v177 = vpop.f32.mrb[0].mxu0
    %178 = vdwg.mxu0
    %179 = vmatprep.subr.mxu0 0.0
    %180 = vmatpush1.msra.mxu0 %v60
    %181 = vmatprep.subr.mxu0 0.0
    %182 = vmatpush1.msra.mxu0 %v61
    %183 = vmatprep.subr.mxu0 0.0
    %184 = vmatpush1.msra.mxu0 %v62
    %185 = vmatprep.subr.mxu0 0.0
    %186 = vmatpush1.msra.mxu0 %v63
    %187 = vmatprep.subr.mxu0 0.0
    %188 = vmatpush1.msra.mxu0 %v64
    %189 = vmatprep.subr.mxu0 0.0
    %190 = vmatpush1.msra.mxu0 %v65
    %191 = vmatprep.subr.mxu0 0.0
    %192 = vmatpush1.msra.mxu0 %v66
    %193 = vmatprep.subr.mxu0 0.0
    %194 = vmatpush1.msra.mxu0 %v67
    %195 = vmatprep.subr.mxu0 0.0
    %196 = vmatpush1.msra.mxu0 %v68
    %197 = vmatprep.subr.mxu0 0.0
    %198 = vmatpush1.msra.mxu0 %v69
    %199 = vmatprep.subr.mxu0 0.0
    %200 = vmatpush1.msra.mxu0 %v70
    %201 = vmatprep.subr.mxu0 0.0
    %202 = vmatpush1.msra.mxu0 %v71
    %203 = vmatprep.subr.mxu0 0.0
    %204 = vmatpush1.msra.mxu0 %v72
    %205 = vmatprep.subr.mxu0 0.0
    %206 = vmatpush1.msra.mxu0 %v73
    %207 = vmatprep.subr.mxu0 0.0
    %208 = vmatpush1.msra.mxu0 %v74
    %209 = vmatprep.subr.mxu0 0.0
    %210 = vmatpush1.msra.mxu0 %v75
    %211 = vmatprep.subr.mxu0 0.0
    %212 = vmatpush1.msra.mxu0 %v76
    %213 = vmatprep.subr.mxu0 0.0
    %214 = vmatpush1.msra.mxu0 %v77
    %215 = vmatprep.subr.mxu0 0.0
    %216 = vmatpush1.msra.mxu0 0.0
    %217 = vmatprep.subr.mxu0 0.0
    %218 = vmatpush1.msra.mxu0 0.0
    %219 = vmatprep.subr.mxu0 0.0
    %220 = vmatpush1.msra.mxu0 0.0
    %221 = vmatprep.subr.mxu0 0.0
    %222 = vmatpush1.msra.mxu0 0.0
    %223 = vmatprep.subr.mxu0 0.0
    %224 = vmatpush1.msra.mxu0 0.0
    %225 = vmatprep.subr.mxu0 0.0
    %226 = vmatpush1.msra.mxu0 0.0
    %227 = vmatprep.subr.mxu0 0.0
    %228 = vmatpush1.msra.mxu0 0.0
    %229 = vmatprep.subr.mxu0 0.0
    %230 = vmatpush1.msra.mxu0 0.0
    %231 = vmatprep.subr.mxu0 0.0
    %232 = vmatpush1.msra.mxu0 0.0
    %233 = vmatprep.subr.mxu0 0.0
    %234 = vmatpush1.msra.mxu0 0.0
    %235 = vmatprep.subr.mxu0 0.0
    %236 = vmatpush1.msra.mxu0 0.0
    %237 = vmatprep.subr.mxu0 0.0
    %238 = vmatpush1.msra.mxu0 0.0
    %239 = vmatprep.subr.mxu0 0.0
    %240 = vmatpush1.msra.mxu0 0.0
    %241 = vmatprep.subr.mxu0 0.0
    %242 = vmatpush1.msra.mxu0 0.0
    %243 = vmatprep.mubr.f32.mxu0 %v107
    %244 = vmatmul.mubr.f32.gmra.mrb[0].mxu0 %v100
    %v245 = vpop.f32.mrb[0].mxu0
    %v246 = vadd.f32 %v176, %v245
    %v247 = vpop.f32.mrb[0].mxu0
    %248 = vdwg.mxu0
    %v249 = vmax.f32 %v246, 0.0
    %v250 = vld [vmem:[%s3] sm:$0xff]
    %v251 = vld [vmem:[%s3 + $0x8] sm:$0xff]
    %v252 = vld [vmem:[%s3 + $0x10] sm:$0xff]
    %v253 = vld [vmem:[%s3 + $0x18] sm:$0xff]
    %v254 = vld [vmem:[%s3 + $0x20] sm:$0xff]
    %v255 = vld [vmem:[%s3 + $0x28] sm:$0xff]
    %v256 = vld [vmem:[%s3 + $0x30] sm:$0xff]
    %v257 = vld [vmem:[%s3 + $0x38] sm:$0xff]
    %v258 = vld [vmem:[%s3 + $0x40] sm:$0xff]
    %v259 = vld [vmem:[%s3 + $0x48] sm:$0xff]
    %v260 = vld [vmem:[%s3 + $0x50] sm:$0xff]
    %v261 = vld [vmem:[%s3 + $0x58] sm:$0xff]
    %v262 = vld [vmem:[%s3 + $0x60] sm:$0xff]
    %v263 = vld [vmem:[%s3 + $0x68] sm:$0xff]
    %v264 = vld [vmem:[%s3 + $0x70] sm:$0xff]
    %v265 = vld [vmem:[%s4] sm:$0x1]
    %v267 = vlaneseq
    %v268 = vshrl.u32 %v267, 7
    %v269 = vsub.s32 0, %v268
    %v270 = vrot.slane %v265, %v269
    %vm272 = vcmask 982016
    %v274 = vsel %vm272, %v249, 0
    %276 = vmatprep.subr.mxu0 0.0
    %277 = vmatpush1.msra.mxu0 %v250
    %278 = vmatprep.subr.mxu0 0.0
    %279 = vmatpush1.msra.mxu0 %v251
    %280 = vmatprep.subr.mxu0 0.0
    %281 = vmatpush1.msra.mxu0 %v252
    %282 = vmatprep.subr.mxu0 0.0
    %283 = vmatpush1.msra.mxu0 %v253
    %284 = vmatprep.subr.mxu0 0.0
    %285 = vmatpush1.msra.mxu0 %v254
    %286 = vmatprep.subr.mxu0 0.0
    %287 = vmatpush1.msra.mxu0 %v255
    %288 = vmatprep.subr.mxu0 0.0
    %289 = vmatpush1.msra.mxu0 %v256
    %290 = vmatprep.subr.mxu0 0.0
    %291 = vmatpush1.msra.mxu0 %v257
    %292 = vmatprep.subr.mxu0 0.0
    %293 = vmatpush1.msra.mxu0 %v258
    %294 = vmatprep.subr.mxu0 0.0
    %295 = vmatpush1.msra.mxu0 %v259
    %296 = vmatprep.subr.mxu0 0.0
    %297 = vmatpush1.msra.mxu0 %v260
    %298 = vmatprep.subr.mxu0 0.0
    %299 = vmatpush1.msra.mxu0 %v261
    %300 = vmatprep.subr.mxu0 0.0
    %301 = vmatpush1.msra.mxu0 %v262
    %302 = vmatprep.subr.mxu0 0.0
    %303 = vmatpush1.msra.mxu0 %v263
    %304 = vmatprep.subr.mxu0 0.0
    %305 = vmatpush1.msra.mxu0 %v264
    %306 = vmatprep.subr.mxu0 0.0
    %307 = vmatpush1.msra.mxu0 0.0
    %308 = vmatprep.subr.mxu0 0.0
    %309 = vmatpush1.msra.mxu0 0.0
    %310 = vmatprep.subr.mxu0 0.0
    %311 = vmatpush1.msra.mxu0 0.0
    %312 = vmatprep.subr.mxu0 0.0
    %313 = vmatpush1.msra.mxu0 0.0
    %314 = vmatprep.subr.mxu0 0.0
    %315 = vmatpush1.msra.mxu0 0.0
    %316 = vmatprep.subr.mxu0 0.0
    %317 = vmatpush1.msra.mxu0 0.0
    %318 = vmatprep.subr.mxu0 0.0
    %319 = vmatpush1.msra.mxu0 0.0
    %320 = vmatprep.subr.mxu0 0.0
    %321 = vmatpush1.msra.mxu0 0.0
    %322 = vmatprep.subr.mxu0 0.0
    %323 = vmatpush1.msra.mxu0 0.0
    %324 = vmatprep.subr.mxu0 0.0
    %325 = vmatpush1.msra.mxu0 0.0
    %326 = vmatprep.subr.mxu0 0.0
    %327 = vmatpush1.msra.mxu0 0.0
    %328 = vmatprep.subr.mxu0 0.0
    %329 = vmatpush1.msra.mxu0 0.0
    %330 = vmatprep.subr.mxu0 0.0
    %331 = vmatpush1.msra.mxu0 0.0
    %332 = vmatprep.subr.mxu0 0.0
    %333 = vmatpush1.msra.mxu0 0.0
    %334 = vmatprep.subr.mxu0 0.0
    %335 = vmatpush1.msra.mxu0 0.0
    %336 = vmatprep.subr.mxu0 0.0
    %337 = vmatpush1.msra.mxu0 0.0
    %338 = vmatprep.subr.mxu0 0.0
    %339 = vmatpush1.msra.mxu0 0.0
    %340 = vmatprep.mubr.f32.mxu0 0.0
    %341 = vmatmul.mubr.f32.gmra.mrb[0].mxu0 %v274
    %v342 = vpop.f32.mrb[0].mxu0
    %v343 = vadd.f32 %v270, %v342
    %v344 = vpop.f32.mrb[0].mxu0
    %345 = vdwg.mxu0
    %v346 = vmax.f32 %v343, 0.0
    %v347 = vld [vmem:[%s5] sm:$0xff]
    %v348 = vld [vmem:[%s5 + $0x8] sm:$0xff]
    %v349 = vld [vmem:[%s5 + $0x10] sm:$0xff]
    %v350 = vld [vmem:[%s5 + $0x18] sm:$0xff]
    %v351 = vld [vmem:[%s5 + $0x20] sm:$0xff]
    %v352 = vld [vmem:[%s5 + $0x28] sm:$0xff]
    %v353 = vld [vmem:[%s5 + $0x30] sm:$0xff]
    %v354 = vld [vmem:[%s5 + $0x38] sm:$0xff]
    %v355 = vld [vmem:[%s5 + $0x40] sm:$0xff]
    %v356 = vld [vmem:[%s5 + $0x48] sm:$0xff]
    %v357 = vld [vmem:[%s5 + $0x50] sm:$0xf]
    %v358 = vld [vmem:[%s6] sm:$0x1]
    %v360 = vlaneseq
    %v361 = vshrl.u32 %v360, 7
    %v362 = vsub.s32 0, %v361
    %v363 = vrot.slane %v358, %v362
    %vm365 = vcmask 687104
    %v367 = vsel %vm365, %v346, 0
    %vm369 = vcmask 1043456
    %v371 = vsel %vm369, %v357, 0
    %373 = vmatprep.subr.mxu0 0.0
    %374 = vmatpush1.msra.mxu0 %v347
    %375 = vmatprep.subr.mxu0 0.0
    %376 = vmatpush1.msra.mxu0 %v348
    %377 = vmatprep.subr.mxu0 0.0
    %378 = vmatpush1.msra.mxu0 %v349
    %379 = vmatprep.subr.mxu0 0.0
    %380 = vmatpush1.msra.mxu0 %v350
    %381 = vmatprep.subr.mxu0 0.0
    %382 = vmatpush1.msra.mxu0 %v351
    %383 = vmatprep.subr.mxu0 0.0
    %384 = vmatpush1.msra.mxu0 %v352
    %385 = vmatprep.subr.mxu0 0.0
    %386 = vmatpush1.msra.mxu0 %v353
    %387 = vmatprep.subr.mxu0 0.0
    %388 = vmatpush1.msra.mxu0 %v354
    %389 = vmatprep.subr.mxu0 0.0
    %390 = vmatpush1.msra.mxu0 %v355
    %391 = vmatprep.subr.mxu0 0.0
    %392 = vmatpush1.msra.mxu0 %v356
    %393 = vmatprep.subr.mxu0 0.0
    %394 = vmatpush1.msra.mxu0 %v371
    %395 = vmatprep.subr.mxu0 0.0
    %396 = vmatpush1.msra.mxu0 0.0
    %397 = vmatprep.subr.mxu0 0.0
    %398 = vmatpush1.msra.mxu0 0.0
    %399 = vmatprep.subr.mxu0 0.0
    %400 = vmatpush1.msra.mxu0 0.0
    %401 = vmatprep.subr.mxu0 0.0
    %402 = vmatpush1.msra.mxu0 0.0
    %403 = vmatprep.subr.mxu0 0.0
    %404 = vmatpush1.msra.mxu0 0.0
    %405 = vmatprep.subr.mxu0 0.0
    %406 = vmatpush1.msra.mxu0 0.0
    %407 = vmatprep.subr.mxu0 0.0
    %408 = vmatpush1.msra.mxu0 0.0
    %409 = vmatprep.subr.mxu0 0.0
    %410 = vmatpush1.msra.mxu0 0.0
    %411 = vmatprep.subr.mxu0 0.0
    %412 = vmatpush1.msra.mxu0 0.0
    %413 = vmatprep.subr.mxu0 0.0
    %414 = vmatpush1.msra.mxu0 0.0
    %415 = vmatprep.subr.mxu0 0.0
    %416 = vmatpush1.msra.mxu0 0.0
    %417 = vmatprep.subr.mxu0 0.0
    %418 = vmatpush1.msra.mxu0 0.0
    %419 = vmatprep.subr.mxu0 0.0
    %420 = vmatpush1.msra.mxu0 0.0
    %421 = vmatprep.subr.mxu0 0.0
    %422 = vmatpush1.msra.mxu0 0.0
    %423 = vmatprep.subr.mxu0 0.0
    %424 = vmatpush1.msra.mxu0 0.0
    %425 = vmatprep.subr.mxu0 0.0
    %426 = vmatpush1.msra.mxu0 0.0
    %427 = vmatprep.subr.mxu0 0.0
    %428 = vmatpush1.msra.mxu0 0.0
    %429 = vmatprep.subr.mxu0 0.0
    %430 = vmatpush1.msra.mxu0 0.0
    %431 = vmatprep.subr.mxu0 0.0
    %432 = vmatpush1.msra.mxu0 0.0
    %433 = vmatprep.subr.mxu0 0.0
    %434 = vmatpush1.msra.mxu0 0.0
    %435 = vmatprep.subr.mxu0 0.0
    %436 = vmatpush1.msra.mxu0 0.0
    %437 = vmatprep.mubr.f32.mxu0 0.0
    %438 = vmatmul.mubr.f32.gmra.mrb[0].mxu0 %v367
    %v439 = vpop.f32.mrb[0].mxu0
    %v440 = vadd.f32 %v363, %v439
    %v441 = vpop.f32.mrb[0].mxu0
    %442 = vdwg.mxu0
    %vm443 = vcmask 74752
    %444 = vst.msk [vmem:[#allocation2] sm:$0x3] %vm443, %v440
    // Predicated region
    $region30: #{simple_cnn_2_forward.5} parent=1 // pred_check
      _
    $region31: #{simple_cnn_2_forward.5} parent=1 // pred_check_branch
      %446 = sbr.rel (0) target = $region33
    $region32: #{simple_cnn_2_forward.5} parent=1 // pred_region
      %s448 = ssub.s32 32, 32
      %449 = vsyncadd [#allocation3], %s448
      %s451 = sshll.u32 [#allocation2], 4
      %s452 = int_to_ptr.vmem [resolvable:$true] %s451
      %454 = dma.vmem_to_hbm [thread:$0]  %s452, 32, %s7, [#allocation3]
    $region33: #{simple_cnn_2_forward.5} parent=1 // pred_fallthru
      _
    // Predicated region
    $region34: #{simple_cnn_2_forward.5} parent=1 // pred_check
      _
    $region35: #{simple_cnn_2_forward.5} parent=1 // pred_check_branch
      %456 = sbr.rel (0) target = $region37
    $region36: #{simple_cnn_2_forward.5} parent=1 // pred_region
      %457 = dma.done [#allocation3], 32
    $region37: #{simple_cnn_2_forward.5} parent=1 // pred_fallthru
      _
    %458 = vsyncpa [#allocation3], 1

</llo_original>
